<compile_context>
chip_gen: v7x
topology: tpu7x:2x2x1
jax: 0.10.0
libtpu: 0.0.40
codegen_flags: <defaults>
</compile_context>

<pallas_src>
import functools
import math

import jax
import jax.numpy as jnp
from jax.experimental import pallas as pl
from jax.experimental.pallas import tpu as pltpu


_VMEM_LIMIT_BYTES = 32 * 1024 * 1024


# ------------------------------ Pallas kernels ------------------------------

def _matmul_bn_kernel(x_ref, w_ref, s_ref, b_ref, o_ref, acc_ref, *, nk, relu):
    """o = act((x @ w) * scale + bias), K-tiled with f32 VMEM accumulator."""
    k = pl.program_id(2)

    @pl.when(k == 0)
    def _init():
        acc_ref[...] = jnp.zeros_like(acc_ref)

    acc_ref[...] += jnp.dot(x_ref[...], w_ref[...],
                            preferred_element_type=jnp.float32)

    @pl.when(k == nk - 1)
    def _finalize():
        y = acc_ref[...] * s_ref[...] + b_ref[...]
        if relu:
            y = jnp.maximum(y, 0.0)
        o_ref[...] = y.astype(o_ref.dtype)


def _matmul_bn_res_relu_kernel(x_ref, w_ref, s_ref, b_ref, r_ref, o_ref,
                               acc_ref, *, nk):
    """o = relu((x @ w) * scale + bias + residual), K-tiled."""
    k = pl.program_id(2)

    @pl.when(k == 0)
    def _init():
        acc_ref[...] = jnp.zeros_like(acc_ref)

    acc_ref[...] += jnp.dot(x_ref[...], w_ref[...],
                            preferred_element_type=jnp.float32)

    @pl.when(k == nk - 1)
    def _finalize():
        y = (acc_ref[...] * s_ref[...] + b_ref[...]
             + r_ref[...].astype(jnp.float32))
        o_ref[...] = jnp.maximum(y, 0.0).astype(o_ref.dtype)


def _conv3x3_bn_kernel(ph_ref, w_ref, s_ref, b_ref, o_ref, patch_ref, *,
                       stride, Ho, Wo, relu):
    """Implicit-GEMM 3x3 conv + folded BN (+ ReLU) for ONE image / O-tile.

    ph_ref   : (s*s, 1, Hq, Wq, C) bf16 stride-phases of one padded image.
    w_ref    : (9*C, tO) bf16 — K is tap-major (kh, kw, Cin).
    patch_ref: (Ho*Wo, 9*C) bf16 VMEM scratch — in-VMEM im2col of this image
               so a single MXU matmul sees K = 9*C.
    """
    s = stride
    C = ph_ref.shape[-1]
    for t in range(9):
        ki, kj = t // 3, t % 3
        a, b = ki % s, kj % s              # which stride phase holds this tap
        r0, c0 = ki // s, kj // s          # offset inside the phase
        tile = ph_ref[a * s + b, 0]        # (Hq, Wq, C), static index
        patch_ref[:, t * C:(t + 1) * C] = (
            tile[r0:r0 + Ho, c0:c0 + Wo, :].reshape(Ho * Wo, C))
    acc = jnp.dot(patch_ref[...], w_ref[...],
                  preferred_element_type=jnp.float32)
    y = acc * s_ref[...] + b_ref[...]
    if relu:
        y = jnp.maximum(y, 0.0)
    o_ref[...] = y.reshape(o_ref.shape).astype(o_ref.dtype)


def _matmul_bn_strided_kernel(x_ref, w_ref, s_ref, b_ref, o_ref, *, relu):
    """Strided 1x1 conv + folded BN.

    x_ref: (tmo, 1, Wo, s*Cin) bf16 — only row-phase-0 input rows (selected by
           the BlockSpec).  Column-phase selection is folded into zero rows of
           the padded weight, so no in-kernel gather is needed.
    """
    tmo, _, wo, sk = x_ref.shape
    x2d = x_ref[:, 0].reshape(tmo * wo, sk)
    acc = jnp.dot(x2d, w_ref[...], preferred_element_type=jnp.float32)
    y = acc * s_ref[...] + b_ref[...]
    if relu:
        y = jnp.maximum(y, 0.0)
    o_ref[...] = y.astype(o_ref.dtype)


# ------------------------------ kernel wrappers ------------------------------

def _pick_tile(m, candidates):
    # Falls back to the full dimension (always a legal, un-tiled block);
    # candidates include small values so huge fallbacks are rare.
    for t in candidates:
        if m % t == 0:
            return t
    return m


def matmul_bn(x, w, scale, bias, *, relu, residual=None,
              out_dtype=jnp.bfloat16):
    """Fused (x @ w) * scale + bias [+ residual] [relu]; bf16 MXU, f32 acc."""
    M, K = x.shape
    Kw, N = w.shape
    assert K == Kw
    tm = _pick_tile(M, (512, 256, 128, 64, 32, 16, 8))
    tn = _pick_tile(N, (512, 256, 128))
    # tk<=256 keeps v5e's 128-deep MXU / VMEM residency reasonable while still
    # feeding v6e/v7x; larger K is tiled across the "arbitrary" grid axis.
    tk = K if K <= 256 else _pick_tile(K, (256, 128))
    nk = K // tk
    grid = (M // tm, N // tn, nk)

    scale2 = scale.reshape(1, N).astype(jnp.float32)
    bias2 = bias.reshape(1, N).astype(jnp.float32)

    in_specs = [
        pl.BlockSpec((tm, tk), lambda i, j, k: (i, k)),
        pl.BlockSpec((tk, tn), lambda i, j, k: (k, j)),
        pl.BlockSpec((1, tn), lambda i, j, k: (0, j)),
        pl.BlockSpec((1, tn), lambda i, j, k: (0, j)),
    ]
    args = [x, w, scale2, bias2]
    if residual is None:
        kernel = functools.partial(_matmul_bn_kernel, nk=nk, relu=relu)
    else:
        kernel = functools.partial(_matmul_bn_res_relu_kernel, nk=nk)
        in_specs.append(pl.BlockSpec((tm, tn), lambda i, j, k: (i, j)))
        args.append(residual)

    return pl.pallas_call(
        kernel,
        out_shape=jax.ShapeDtypeStruct((M, N), out_dtype),
        grid=grid,
        in_specs=in_specs,
        out_specs=pl.BlockSpec((tm, tn), lambda i, j, k: (i, j)),
        scratch_shapes=[pltpu.VMEM((tm, tn), jnp.float32)],
        compiler_params=pltpu.CompilerParams(
            dimension_semantics=("parallel", "parallel", "arbitrary"),
            vmem_limit_bytes=_VMEM_LIMIT_BYTES,
        ),
    )(*args)


def conv1x1_bn(x_nhwc, w2d, scale, bias, *, stride=1, relu, residual=None,
               out_dtype=jnp.bfloat16):
    """1x1 conv (optionally strided via slicing) + folded BN [+ res] [relu]."""
    if stride > 1:
        x_nhwc = x_nhwc[:, ::stride, ::stride, :]
    N, H, W, C = x_nhwc.shape
    O = w2d.shape[1]
    x2d = x_nhwc.reshape(N * H * W, C)
    res2d = None if residual is None else residual.reshape(N * H * W, O)
    out = matmul_bn(x2d, w2d, scale, bias, relu=relu, residual=res2d,
                    out_dtype=out_dtype)
    return out.reshape(N, H, W, O)


def conv1x1_bn_strided(x_nhwc, w2d, scale, bias, *, stride, relu,
                       out_dtype=jnp.bfloat16):
    """Strided 1x1 conv + folded BN with NO wrapper-side subsampling pass.

    Row subsampling: x is reshaped (free) to (N*Ho, s, Wo, s*C) and only the
    row-phase-0 plane is DMA'd via a size-1 block on the phase axis.
    Column subsampling: the (C, O) weight is zero-padded to (s*C, O) so the
    unwanted column phases multiply by zero inside the MXU.
    Returns a 2D (N*Ho*Wo, O) slab (row-major over (n, oh, ow))."""
    N, H, W, C = x_nhwc.shape
    O = w2d.shape[1]
    s = stride
    assert H % s == 0 and W % s == 0
    Ho, Wo = H // s, W // s
    M = N * Ho

    x_r = x_nhwc.reshape(M, s, Wo, s * C)                 # free reshape
    w_pad = jnp.pad(w2d, ((0, (s - 1) * C), (0, 0)))      # zero col-phases > 0
    scale2 = scale.reshape(1, O).astype(jnp.float32)
    bias2 = bias.reshape(1, O).astype(jnp.float32)

    tmo = _pick_tile(M, (32, 16, 8))        # multiples of 8 keep blocks clean
    tn = _pick_tile(O, (256, 128)) if O >= 128 else O
    grid = (M // tmo, O // tn)

    kernel = functools.partial(_matmul_bn_strided_kernel, relu=relu)
    out = pl.pallas_call(
        kernel,
        out_shape=jax.ShapeDtypeStruct((M * Wo, O), out_dtype),
        grid=grid,
        in_specs=[
            pl.BlockSpec((tmo, 1, Wo, s * C), lambda i, j: (i, 0, 0, 0)),
            pl.BlockSpec((s * C, tn), lambda i, j: (0, j)),
            pl.BlockSpec((1, tn), lambda i, j: (0, j)),
            pl.BlockSpec((1, tn), lambda i, j: (0, j)),
        ],
        out_specs=pl.BlockSpec((tmo * Wo, tn), lambda i, j: (i, j)),
        compiler_params=pltpu.CompilerParams(
            dimension_semantics=("parallel", "parallel"),
            vmem_limit_bytes=_VMEM_LIMIT_BYTES,
        ),
    )(x_r, w_pad, scale2, bias2)
    return out


def conv3x3_bn(x_nhwc, wk, scale, bias, *, stride, relu,
               out_dtype=jnp.bfloat16):
    """3x3 conv, pad=1, given stride, + folded BN [+ relu] (implicit GEMM).

    wk: (9*Cin, Cout) tap-major weight.  Returns NHWC."""
    N, H, W, C = x_nhwc.shape
    O = wk.shape[-1]
    s = stride
    Ho = (H - 1) // s + 1
    Wo = (W - 1) // s + 1
    xp = jnp.pad(x_nhwc, ((0, 0), (1, 1), (1, 1), (0, 0)))
    if s == 1:
        Hq, Wq = H + 2, W + 2
        ph = xp[None]                                    # no extra HBM pass
    else:
        Hp, Wp = H + 2, W + 2
        Hq, Wq = -(-Hp // s), -(-Wp // s)
        xp = jnp.pad(xp, ((0, 0), (0, Hq * s - Hp), (0, Wq * s - Wp), (0, 0)))
        # Split into s*s stride phases (total bytes == padded activation
        # bytes, i.e. no 9x im2col blow-up in HBM).
        ph = (xp.reshape(N, Hq, s, Wq, s, C)
                .transpose(2, 4, 0, 1, 3, 5)
                .reshape(s * s, N, Hq, Wq, C))

    tO = _pick_tile(O, (256, 128)) if O >= 128 else O
    grid = (N, O // tO)

    kernel = functools.partial(_conv3x3_bn_kernel, stride=s, Ho=Ho, Wo=Wo,
                               relu=relu)
    out = pl.pallas_call(
        kernel,
        out_shape=jax.ShapeDtypeStruct((N, Ho * Wo, O), out_dtype),
        grid=grid,
        in_specs=[
            pl.BlockSpec((s * s, 1, Hq, Wq, C), lambda n, j: (0, n, 0, 0, 0)),
            pl.BlockSpec((9 * C, tO), lambda n, j: (0, j)),
            pl.BlockSpec((1, tO), lambda n, j: (0, j)),
            pl.BlockSpec((1, tO), lambda n, j: (0, j)),
        ],
        out_specs=pl.BlockSpec((1, Ho * Wo, tO), lambda n, j: (n, 0, j)),
        scratch_shapes=[pltpu.VMEM((Ho * Wo, 9 * C), x_nhwc.dtype)],
        compiler_params=pltpu.CompilerParams(
            dimension_semantics=("parallel", "parallel"),
            vmem_limit_bytes=_VMEM_LIMIT_BYTES,
        ),
    )(ph, wk, scale.reshape(1, O).astype(jnp.float32),
      bias.reshape(1, O).astype(jnp.float32))
    return out.reshape(N, Ho, Wo, O)                      # free reshape


# ------------------------------ parameter init -------------------------------

_EXPANSION = 4


def _fold_bn(key, cout):
    kg, kb = jax.random.split(key)
    gamma = 1.0 + 0.1 * jax.random.normal(kg, (cout,), jnp.float32)
    beta = 0.1 * jax.random.normal(kb, (cout,), jnp.float32)
    running_mean = jnp.zeros((cout,), jnp.float32)
    running_var = jnp.ones((cout,), jnp.float32)
    eps = 1e-5
    scale = gamma / jnp.sqrt(running_var + eps)
    bias = beta - running_mean * scale
    return scale, bias


def init_bottleneck_params(key, in_planes, planes, stride):
    ks = jax.random.split(key, 8)

    def conv_w(k, cin, cout, ksz):
        fan_in = cin * ksz * ksz
        return (jax.random.normal(k, (cout, cin, ksz, ksz), jnp.float32)
                / math.sqrt(fan_in))

    p = {'stride': stride}

    w1 = conv_w(ks[0], in_planes, planes, 1)
    s1, b1 = _fold_bn(ks[1], planes)
    p['conv1'] = (jnp.transpose(w1[:, :, 0, 0]).astype(jnp.bfloat16), s1, b1)

    w2 = conv_w(ks[2], planes, planes, 3)                  # OIHW
    s2, b2 = _fold_bn(ks[3], planes)
    w2k = (jnp.transpose(w2, (2, 3, 1, 0))                 # (kh,kw,Cin,Cout)
           .reshape(9 * planes, planes).astype(jnp.bfloat16))
    p['conv2'] = (w2k, s2, b2)

    w3 = conv_w(ks[4], planes, _EXPANSION * planes, 1)
    s3, b3 = _fold_bn(ks[5], _EXPANSION * planes)
    p['conv3'] = (jnp.transpose(w3[:, :, 0, 0]).astype(jnp.bfloat16), s3, b3)

    if stride != 1 or in_planes != _EXPANSION * planes:
        wd = conv_w(ks[6], in_planes, _EXPANSION * planes, 1)
        sd, bd = _fold_bn(ks[7], _EXPANSION * planes)
        p['shortcut'] = (jnp.transpose(wd[:, :, 0, 0]).astype(jnp.bfloat16),
                         sd, bd)
    return p


# -------------------------------- forward pass --------------------------------

def bottleneck_forward(x_nchw, params):
    stride = params['stride']
    x = jnp.transpose(x_nchw, (0, 2, 3, 1)).astype(jnp.bfloat16)   # NHWC bf16
    N, H, W, Cin = x.shape

    out = conv1x1_bn(x, *params['conv1'], relu=True)                # bn1+relu
    out = conv3x3_bn(out, *params['conv2'], stride=stride, relu=True)  # bn2+relu
    _, Ho, Wo, p2 = out.shape

    if 'shortcut' in params:
        if stride != 1 and H % stride == 0 and W % stride == 0:
            sc2d = conv1x1_bn_strided(x, *params['shortcut'], stride=stride,
                                      relu=False)
        else:
            sc = conv1x1_bn(x, *params['shortcut'], stride=stride, relu=False)
            sc2d = sc.reshape(N * Ho * Wo, -1)
    else:
        sc2d = x.reshape(N * Ho * Wo, Cin)

    # conv3 + bn3 + residual add + relu fused in one Pallas kernel epilogue;
    # bf16 output halves the writeback of the largest tensor.
    out2d = out.reshape(N * Ho * Wo, p2)
    y2d = matmul_bn(out2d, *params['conv3'], relu=True, residual=sc2d,
                    out_dtype=jnp.bfloat16)
    y = y2d.reshape(N, Ho, Wo, -1)
    # TODO(synk): fuse the NHWC->NCHW transpose into the epilogue out_spec.
    return jnp.transpose(y, (0, 3, 1, 2))


# --------------------------- pure-JAX reference check -------------------------

def _ref_conv1x1(x, w2d, scale, bias, *, stride=1, relu, residual=None):
    if stride > 1:
        x = x[:, ::stride, ::stride, :]
    y = jnp.einsum('nhwc,co->nhwo', x.astype(jnp.float32),
                   w2d.astype(jnp.float32), precision='highest')
    y = y * scale + bias
    if residual is not None:
        y = y + residual.astype(jnp.float32)
    if relu:
        y = jnp.maximum(y, 0.0)
    return y


def _ref_conv3x3(x, wk, scale, bias, *, stride, relu):
    N, H, W, C = x.shape
    s = stride
    Ho = (H - 1) // s + 1
    Wo = (W - 1) // s + 1
    xp = jnp.pad(x.astype(jnp.float32), ((0, 0), (1, 1), (1, 1), (0, 0)))
    w9 = wk.astype(jnp.float32).reshape(3, 3, C, -1)
    y = 0.0
    for ki in range(3):
        for kj in range(3):
            xs = xp[:, ki:ki + s * (Ho - 1) + 1:s, kj:kj + s * (Wo - 1) + 1:s, :]
            y = y + jnp.einsum('nhwc,co->nhwo', xs, w9[ki, kj],
                               precision='highest')
    y = y * scale + bias
    if relu:
        y = jnp.maximum(y, 0.0)
    return y


def ref_bottleneck(x_nchw, params):
    stride = params['stride']
    x = jnp.transpose(x_nchw, (0, 2, 3, 1)).astype(jnp.bfloat16)
    out = _ref_conv1x1(x, *params['conv1'], relu=True).astype(jnp.bfloat16)
    out = _ref_conv3x3(out, *params['conv2'], stride=stride,
                       relu=True).astype(jnp.bfloat16)
    if 'shortcut' in params:
        sc = _ref_conv1x1(x, *params['shortcut'], stride=stride,
                          relu=False).astype(jnp.bfloat16)
    else:
        sc = x
    out = _ref_conv1x1(out, *params['conv3'], relu=True, residual=sc)
    out = out.astype(jnp.bfloat16)            # mirror the kernel's bf16 output
    return jnp.transpose(out, (0, 3, 1, 2))


# ------------------------------------ main ------------------------------------

if __name__ == "__main__":
    key = jax.random.PRNGKey(0)
    k_param, k_x = jax.random.split(key)

    # Small Bottleneck: in_planes=64, planes=32 -> out channels 128, stride 2,
    # so the projection (1x1 strided conv + BN) shortcut path is exercised.
    in_planes, planes, stride = 64, 32, 2
    N, H, W = 2, 16, 16

    params = init_bottleneck_params(k_param, in_planes, planes, stride)
    x = jax.random.normal(k_x, (N, in_planes, H, W), jnp.float32)   # NCHW

    fwd = jax.jit(lambda inp: bottleneck_forward(inp, params))
    out = fwd(x)
    jax.block_until_ready(out)

    assert out.shape == (N, _EXPANSION * planes, H // stride, W // stride), out.shape
    ref = ref_bottleneck(x, params)
    diff = jnp.abs(out.astype(jnp.float32) - ref.astype(jnp.float32))
    max_err = float(jnp.max(diff))
    mean_err = float(jnp.mean(diff))
    # bf16 inter-layer activations + bf16 final store on both sides; bound is
    # a couple of bf16 ulps at the output magnitude.
    assert max_err < 1e-1, f"max abs err {max_err}"
    assert mean_err < 1e-2, f"mean abs err {mean_err}"
    print("KERNEL_OK")
</pallas_src>

<mosaic_0001>
module attributes {stable_mosaic.version = 11 : i64} {
  func.func @_matmul_bn_kernel(%arg0: i32, %arg1: i32, %arg2: i32, %arg3: memref<512x64xbf16, #tpu.memory_space<vmem>>, %arg4: memref<64x32xbf16, #tpu.memory_space<vmem>>, %arg5: memref<1x32xf32, #tpu.memory_space<vmem>>, %arg6: memref<1x32xf32, #tpu.memory_space<vmem>>, %arg7: memref<512x32xbf16, #tpu.memory_space<vmem>>, %arg8: memref<512x32xf32, #tpu.memory_space<vmem>>) attributes {dimension_semantics = [#tpu.dimension_semantics<parallel>, #tpu.dimension_semantics<parallel>, #tpu.dimension_semantics<arbitrary>], iteration_bounds = array<i64: 1, 1, 1>, scalar_prefetch = 0 : i64, scratch_operands = 1 : i64, tpu.core_type = #tpu.core_type<tc>, window_params = [{transform_indices = @transform_0, window_bounds = array<i64: 512, 64>}, {transform_indices = @transform_1, window_bounds = array<i64: 64, 32>}, {transform_indices = @transform_2, window_bounds = array<i64: 1, 32>}, {transform_indices = @transform_3, window_bounds = array<i64: 1, 32>}, {transform_indices = @transform_4, window_bounds = array<i64: 512, 32>}]} {
    %c0_i32 = arith.constant 0 : i32
    %0 = arith.cmpi eq, %arg2, %c0_i32 : i32
    %1 = arith.extui %0 : i1 to i32
    %c0_i32_0 = arith.constant 0 : i32
    %2 = arith.cmpi ne, %1, %c0_i32_0 : i32
    scf.if %2 {
      %cst_10 = arith.constant 0.000000e+00 : f32
      %12 = vector.broadcast %cst_10 : f32 to vector<512x32xf32>
      %c0_11 = arith.constant 0 : index
      %c0_12 = arith.constant 0 : index
      %13 = vector.load %arg8[%c0_11, %c0_12] : memref<512x32xf32, #tpu.memory_space<vmem>>, vector<512x32xf32>
      tpu.vector_store %arg8[%c0_11, %c0_12], %12 {strides = array<i32>} : memref<512x32xf32, #tpu.memory_space<vmem>>, vector<512x32xf32>,
    } else {
    }
    %c0 = arith.constant 0 : index
    %c0_1 = arith.constant 0 : index
    %3 = vector.load %arg8[%c0, %c0_1] : memref<512x32xf32, #tpu.memory_space<vmem>>, vector<512x32xf32>
    %c0_2 = arith.constant 0 : index
    %c0_3 = arith.constant 0 : index
    %4 = vector.load %arg3[%c0_2, %c0_3] : memref<512x64xbf16, #tpu.memory_space<vmem>>, vector<512x64xbf16>
    %c0_4 = arith.constant 0 : index
    %c0_5 = arith.constant 0 : index
    %5 = vector.load %arg4[%c0_4, %c0_5] : memref<64x32xbf16, #tpu.memory_space<vmem>>, vector<64x32xbf16>
    %cst = arith.constant dense<0.000000e+00> : vector<512x32xf32>
    %6 = tpu.matmul %4, %5, %cst {dimension_numbers = #tpu.dot_dimension_numbers<[1], [0], [0], [1], [0, 0, 1, 1], [], []>} : vector<512x64xbf16>, vector<64x32xbf16>, vector<512x32xf32> -> vector<512x32xf32>
    %7 = arith.addf %3, %6 : vector<512x32xf32>
    %c0_6 = arith.constant 0 : index
    %c0_7 = arith.constant 0 : index
    %8 = vector.load %arg8[%c0_6, %c0_7] : memref<512x32xf32, #tpu.memory_space<vmem>>, vector<512x32xf32>
    tpu.vector_store %arg8[%c0_6, %c0_7], %7 {strides = array<i32>} : memref<512x32xf32, #tpu.memory_space<vmem>>, vector<512x32xf32>,
    %c0_i32_8 = arith.constant 0 : i32
    %9 = arith.cmpi eq, %arg2, %c0_i32_8 : i32
    %10 = arith.extui %9 : i1 to i32
    %c0_i32_9 = arith.constant 0 : i32
    %11 = arith.cmpi ne, %10, %c0_i32_9 : i32
    scf.if %11 {
      %c0_10 = arith.constant 0 : index
      %c0_11 = arith.constant 0 : index
      %12 = vector.load %arg8[%c0_10, %c0_11] : memref<512x32xf32, #tpu.memory_space<vmem>>, vector<512x32xf32>
      %c0_12 = arith.constant 0 : index
      %c0_13 = arith.constant 0 : index
      %13 = vector.load %arg5[%c0_12, %c0_13] : memref<1x32xf32, #tpu.memory_space<vmem>>, vector<1x32xf32>
      %14 = vector.broadcast %13 : vector<1x32xf32> to vector<512x32xf32>
      %15 = arith.mulf %12, %14 : vector<512x32xf32>
      %c0_14 = arith.constant 0 : index
      %c0_15 = arith.constant 0 : index
      %16 = vector.load %arg6[%c0_14, %c0_15] : memref<1x32xf32, #tpu.memory_space<vmem>>, vector<1x32xf32>
      %17 = vector.broadcast %16 : vector<1x32xf32> to vector<512x32xf32>
      %18 = arith.addf %15, %17 : vector<512x32xf32>
      %cst_16 = arith.constant 0.000000e+00 : f32
      %19 = vector.broadcast %cst_16 : f32 to vector<512x32xf32>
      %20 = arith.maximumf %18, %19 : vector<512x32xf32>
      %21 = arith.truncf %20 : vector<512x32xf32> to vector<512x32xbf16>
      %c0_17 = arith.constant 0 : index
      %c0_18 = arith.constant 0 : index
      %22 = vector.load %arg7[%c0_17, %c0_18] : memref<512x32xbf16, #tpu.memory_space<vmem>>, vector<512x32xbf16>
      tpu.vector_store %arg7[%c0_17, %c0_18], %21 {strides = array<i32>} : memref<512x32xbf16, #tpu.memory_space<vmem>>, vector<512x32xbf16>,
    } else {
    }
    return
  }
  func.func @transform_0(%arg0: i32, %arg1: i32, %arg2: i32) -> (i32, i32) {
    %c0_i32 = arith.constant 0 : i32
    return %arg0, %arg2 : i32, i32
  }
  func.func @transform_1(%arg0: i32, %arg1: i32, %arg2: i32) -> (i32, i32) {
    %c0_i32 = arith.constant 0 : i32
    return %arg2, %arg1 : i32, i32
  }
  func.func @transform_2(%arg0: i32, %arg1: i32, %arg2: i32) -> (i32, i32) {
    %c0_i32 = arith.constant 0 : i32
    %c0_i32_0 = arith.constant 0 : i32
    return %c0_i32, %arg1 : i32, i32
  }
  func.func @transform_3(%arg0: i32, %arg1: i32, %arg2: i32) -> (i32, i32) {
    %c0_i32 = arith.constant 0 : i32
    %c0_i32_0 = arith.constant 0 : i32
    return %c0_i32, %arg1 : i32, i32
  }
  func.func @transform_4(%arg0: i32, %arg1: i32, %arg2: i32) -> (i32, i32) {
    %c0_i32 = arith.constant 0 : i32
    return %arg0, %arg1 : i32, i32
  }
}

module attributes {stable_mosaic.version = 11 : i64} {
  func.func @_conv3x3_bn_kernel(%arg0: i32, %arg1: i32, %arg2: memref<4x1x9x9x32xbf16, #tpu.memory_space<vmem>>, %arg3: memref<288x32xbf16, #tpu.memory_space<vmem>>, %arg4: memref<1x32xf32, #tpu.memory_space<vmem>>, %arg5: memref<1x32xf32, #tpu.memory_space<vmem>>, %arg6: memref<1x64x32xbf16, #tpu.memory_space<vmem>>, %arg7: memref<64x288xbf16, #tpu.memory_space<vmem>>) attributes {dimension_semantics = [#tpu.dimension_semantics<parallel>, #tpu.dimension_semantics<parallel>], iteration_bounds = array<i64: 2, 1>, scalar_prefetch = 0 : i64, scratch_operands = 1 : i64, tpu.core_type = #tpu.core_type<tc>, window_params = [{transform_indices = @transform_0, window_bounds = array<i64: 4, 1, 9, 9, 32>}, {transform_indices = @transform_1, window_bounds = array<i64: 288, 32>}, {transform_indices = @transform_2, window_bounds = array<i64: 1, 32>}, {transform_indices = @transform_3, window_bounds = array<i64: 1, 32>}, {transform_indices = @transform_4, window_bounds = array<i64: 1, 64, 32>}]} {
    %c0 = arith.constant 0 : index
    %c0_0 = arith.constant 0 : index
    %c0_1 = arith.constant 0 : index
    %c0_2 = arith.constant 0 : index
    %c0_3 = arith.constant 0 : index
    %0 = vector.load %arg2[%c0, %c0_0, %c0_1, %c0_2, %c0_3] : memref<4x1x9x9x32xbf16, #tpu.memory_space<vmem>>, vector<1x1x9x9x32xbf16>
    %1 = vector.shape_cast %0 : vector<1x1x9x9x32xbf16> to vector<9x9x32xbf16>
    %2 = vector.extract_strided_slice %1 {offsets = [0, 0, 0], sizes = [8, 8, 32], strides = [1, 1, 1]} : vector<9x9x32xbf16> to vector<8x8x32xbf16>
    %3 = vector.shape_cast %2 : vector<8x8x32xbf16> to vector<64x32xbf16>
    %c0_4 = arith.constant 0 : index
    %c0_5 = arith.constant 0 : index
    %4 = vector.load %arg7[%c0_4, %c0_5] : memref<64x288xbf16, #tpu.memory_space<vmem>>, vector<64x32xbf16>
    tpu.vector_store %arg7[%c0_4, %c0_5], %3 {strides = array<i32>} : memref<64x288xbf16, #tpu.memory_space<vmem>>, vector<64x32xbf16>,
    %c1 = arith.constant 1 : index
    %c0_6 = arith.constant 0 : index
    %c0_7 = arith.constant 0 : index
    %c0_8 = arith.constant 0 : index
    %c0_9 = arith.constant 0 : index
    %5 = vector.load %arg2[%c1, %c0_6, %c0_7, %c0_8, %c0_9] : memref<4x1x9x9x32xbf16, #tpu.memory_space<vmem>>, vector<1x1x9x9x32xbf16>
    %6 = vector.shape_cast %5 : vector<1x1x9x9x32xbf16> to vector<9x9x32xbf16>
    %7 = vector.extract_strided_slice %6 {offsets = [0, 0, 0], sizes = [8, 8, 32], strides = [1, 1, 1]} : vector<9x9x32xbf16> to vector<8x8x32xbf16>
    %8 = vector.shape_cast %7 : vector<8x8x32xbf16> to vector<64x32xbf16>
    %c0_10 = arith.constant 0 : index
    %c32 = arith.constant 32 : index
    %9 = vector.load %arg7[%c0_10, %c32] : memref<64x288xbf16, #tpu.memory_space<vmem>>, vector<64x32xbf16>
    tpu.vector_store %arg7[%c0_10, %c32], %8 {strides = array<i32>} : memref<64x288xbf16, #tpu.memory_space<vmem>>, vector<64x32xbf16>,
    %c0_11 = arith.constant 0 : index
    %c0_12 = arith.constant 0 : index
    %c0_13 = arith.constant 0 : index
    %c0_14 = arith.constant 0 : index
    %c0_15 = arith.constant 0 : index
    %10 = vector.load %arg2[%c0_11, %c0_12, %c0_13, %c0_14, %c0_15] : memref<4x1x9x9x32xbf16, #tpu.memory_space<vmem>>, vector<1x1x9x9x32xbf16>
    %11 = vector.shape_cast %10 : vector<1x1x9x9x32xbf16> to vector<9x9x32xbf16>
    %12 = vector.extract_strided_slice %11 {offsets = [0, 1, 0], sizes = [8, 8, 32], strides = [1, 1, 1]} : vector<9x9x32xbf16> to vector<8x8x32xbf16>
    %13 = vector.shape_cast %12 : vector<8x8x32xbf16> to vector<64x32xbf16>
    %c0_16 = arith.constant 0 : index
    %c64 = arith.constant 64 : index
    %14 = vector.load %arg7[%c0_16, %c64] : memref<64x288xbf16, #tpu.memory_space<vmem>>, vector<64x32xbf16>
    tpu.vector_store %arg7[%c0_16, %c64], %13 {strides = array<i32>} : memref<64x288xbf16, #tpu.memory_space<vmem>>, vector<64x32xbf16>,
    %c2 = arith.constant 2 : index
    %c0_17 = arith.constant 0 : index
    %c0_18 = arith.constant 0 : index
    %c0_19 = arith.constant 0 : index
    %c0_20 = arith.constant 0 : index
    %15 = vector.load %arg2[%c2, %c0_17, %c0_18, %c0_19, %c0_20] : memref<4x1x9x9x32xbf16, #tpu.memory_space<vmem>>, vector<1x1x9x9x32xbf16>
    %16 = vector.shape_cast %15 : vector<1x1x9x9x32xbf16> to vector<9x9x32xbf16>
    %17 = vector.extract_strided_slice %16 {offsets = [0, 0, 0], sizes = [8, 8, 32], strides = [1, 1, 1]} : vector<9x9x32xbf16> to vector<8x8x32xbf16>
    %18 = vector.shape_cast %17 : vector<8x8x32xbf16> to vector<64x32xbf16>
    %c0_21 = arith.constant 0 : index
    %c96 = arith.constant 96 : index
    %19 = vector.load %arg7[%c0_21, %c96] : memref<64x288xbf16, #tpu.memory_space<vmem>>, vector<64x32xbf16>
    tpu.vector_store %arg7[%c0_21, %c96], %18 {strides = array<i32>} : memref<64x288xbf16, #tpu.memory_space<vmem>>, vector<64x32xbf16>,
    %c3 = arith.constant 3 : index
    %c0_22 = arith.constant 0 : index
    %c0_23 = arith.constant 0 : index
    %c0_24 = arith.constant 0 : index
    %c0_25 = arith.constant 0 : index
    %20 = vector.load %arg2[%c3, %c0_22, %c0_23, %c0_24, %c0_25] : memref<4x1x9x9x32xbf16, #tpu.memory_space<vmem>>, vector<1x1x9x9x32xbf16>
    %21 = vector.shape_cast %20 : vector<1x1x9x9x32xbf16> to vector<9x9x32xbf16>
    %22 = vector.extract_strided_slice %21 {offsets = [0, 0, 0], sizes = [8, 8, 32], strides = [1, 1, 1]} : vector<9x9x32xbf16> to vector<8x8x32xbf16>
    %23 = vector.shape_cast %22 : vector<8x8x32xbf16> to vector<64x32xbf16>
    %c0_26 = arith.constant 0 : index
    %c128 = arith.constant 128 : index
    %24 = vector.load %arg7[%c0_26, %c128] : memref<64x288xbf16, #tpu.memory_space<vmem>>, vector<64x32xbf16>
    tpu.vector_store %arg7[%c0_26, %c128], %23 {strides = array<i32>} : memref<64x288xbf16, #tpu.memory_space<vmem>>, vector<64x32xbf16>,
    %c2_27 = arith.constant 2 : index
    %c0_28 = arith.constant 0 : index
    %c0_29 = arith.constant 0 : index
    %c0_30 = arith.constant 0 : index
    %c0_31 = arith.constant 0 : index
    %25 = vector.load %arg2[%c2_27, %c0_28, %c0_29, %c0_30, %c0_31] : memref<4x1x9x9x32xbf16, #tpu.memory_space<vmem>>, vector<1x1x9x9x32xbf16>
    %26 = vector.shape_cast %25 : vector<1x1x9x9x32xbf16> to vector<9x9x32xbf16>
    %27 = vector.extract_strided_slice %26 {offsets = [0, 1, 0], sizes = [8, 8, 32], strides = [1, 1, 1]} : vector<9x9x32xbf16> to vector<8x8x32xbf16>
    %28 = vector.shape_cast %27 : vector<8x8x32xbf16> to vector<64x32xbf16>
    %c0_32 = arith.constant 0 : index
    %c160 = arith.constant 160 : index
    %29 = vector.load %arg7[%c0_32, %c160] : memref<64x288xbf16, #tpu.memory_space<vmem>>, vector<64x32xbf16>
    tpu.vector_store %arg7[%c0_32, %c160], %28 {strides = array<i32>} : memref<64x288xbf16, #tpu.memory_space<vmem>>, vector<64x32xbf16>,
    %c0_33 = arith.constant 0 : index
    %c0_34 = arith.constant 0 : index
    %c0_35 = arith.constant 0 : index
    %c0_36 = arith.constant 0 : index
    %c0_37 = arith.constant 0 : index
    %30 = vector.load %arg2[%c0_33, %c0_34, %c0_35, %c0_36, %c0_37] : memref<4x1x9x9x32xbf16, #tpu.memory_space<vmem>>, vector<1x1x9x9x32xbf16>
    %31 = vector.shape_cast %30 : vector<1x1x9x9x32xbf16> to vector<9x9x32xbf16>
    %32 = vector.extract_strided_slice %31 {offsets = [1, 0, 0], sizes = [8, 8, 32], strides = [1, 1, 1]} : vector<9x9x32xbf16> to vector<8x8x32xbf16>
    %33 = vector.shape_cast %32 : vector<8x8x32xbf16> to vector<64x32xbf16>
    %c0_38 = arith.constant 0 : index
    %c192 = arith.constant 192 : index
    %34 = vector.load %arg7[%c0_38, %c192] : memref<64x288xbf16, #tpu.memory_space<vmem>>, vector<64x32xbf16>
    tpu.vector_store %arg7[%c0_38, %c192], %33 {strides = array<i32>} : memref<64x288xbf16, #tpu.memory_space<vmem>>, vector<64x32xbf16>,
    %c1_39 = arith.constant 1 : index
    %c0_40 = arith.constant 0 : index
    %c0_41 = arith.constant 0 : index
    %c0_42 = arith.constant 0 : index
    %c0_43 = arith.constant 0 : index
    %35 = vector.load %arg2[%c1_39, %c0_40, %c0_41, %c0_42, %c0_43] : memref<4x1x9x9x32xbf16, #tpu.memory_space<vmem>>, vector<1x1x9x9x32xbf16>
    %36 = vector.shape_cast %35 : vector<1x1x9x9x32xbf16> to vector<9x9x32xbf16>
    %37 = vector.extract_strided_slice %36 {offsets = [1, 0, 0], sizes = [8, 8, 32], strides = [1, 1, 1]} : vector<9x9x32xbf16> to vector<8x8x32xbf16>
    %38 = vector.shape_cast %37 : vector<8x8x32xbf16> to vector<64x32xbf16>
    %c0_44 = arith.constant 0 : index
    %c224 = arith.constant 224 : index
    %39 = vector.load %arg7[%c0_44, %c224] : memref<64x288xbf16, #tpu.memory_space<vmem>>, vector<64x32xbf16>
    tpu.vector_store %arg7[%c0_44, %c224], %38 {strides = array<i32>} : memref<64x288xbf16, #tpu.memory_space<vmem>>, vector<64x32xbf16>,
    %c0_45 = arith.constant 0 : index
    %c0_46 = arith.constant 0 : index
    %c0_47 = arith.constant 0 : index
    %c0_48 = arith.constant 0 : index
    %c0_49 = arith.constant 0 : index
    %40 = vector.load %arg2[%c0_45, %c0_46, %c0_47, %c0_48, %c0_49] : memref<4x1x9x9x32xbf16, #tpu.memory_space<vmem>>, vector<1x1x9x9x32xbf16>
    %41 = vector.shape_cast %40 : vector<1x1x9x9x32xbf16> to vector<9x9x32xbf16>
    %42 = vector.extract_strided_slice %41 {offsets = [1, 1, 0], sizes = [8, 8, 32], strides = [1, 1, 1]} : vector<9x9x32xbf16> to vector<8x8x32xbf16>
    %43 = vector.shape_cast %42 : vector<8x8x32xbf16> to vector<64x32xbf16>
    %c0_50 = arith.constant 0 : index
    %c256 = arith.constant 256 : index
    %44 = vector.load %arg7[%c0_50, %c256] : memref<64x288xbf16, #tpu.memory_space<vmem>>, vector<64x32xbf16>
    tpu.vector_store %arg7[%c0_50, %c256], %43 {strides = array<i32>} : memref<64x288xbf16, #tpu.memory_space<vmem>>, vector<64x32xbf16>,
    %c0_51 = arith.constant 0 : index
    %c0_52 = arith.constant 0 : index
    %45 = vector.load %arg7[%c0_51, %c0_52] : memref<64x288xbf16, #tpu.memory_space<vmem>>, vector<64x288xbf16>
    %c0_53 = arith.constant 0 : index
    %c0_54 = arith.constant 0 : index
    %46 = vector.load %arg3[%c0_53, %c0_54] : memref<288x32xbf16, #tpu.memory_space<vmem>>, vector<288x32xbf16>
    %cst = arith.constant dense<0.000000e+00> : vector<64x32xf32>
    %47 = tpu.matmul %45, %46, %cst {dimension_numbers = #tpu.dot_dimension_numbers<[1], [0], [0], [1], [0, 0, 1, 1], [], []>} : vector<64x288xbf16>, vector<288x32xbf16>, vector<64x32xf32> -> vector<64x32xf32>
    %c0_55 = arith.constant 0 : index
    %c0_56 = arith.constant 0 : index
    %48 = vector.load %arg4[%c0_55, %c0_56] : memref<1x32xf32, #tpu.memory_space<vmem>>, vector<1x32xf32>
    %49 = vector.broadcast %48 : vector<1x32xf32> to vector<64x32xf32>
    %50 = arith.mulf %47, %49 : vector<64x32xf32>
    %c0_57 = arith.constant 0 : index
    %c0_58 = arith.constant 0 : index
    %51 = vector.load %arg5[%c0_57, %c0_58] : memref<1x32xf32, #tpu.memory_space<vmem>>, vector<1x32xf32>
    %52 = vector.broadcast %51 : vector<1x32xf32> to vector<64x32xf32>
    %53 = arith.addf %50, %52 : vector<64x32xf32>
    %cst_59 = arith.constant 0.000000e+00 : f32
    %54 = vector.broadcast %cst_59 : f32 to vector<64x32xf32>
    %55 = arith.maximumf %53, %54 : vector<64x32xf32>
    %56 = vector.shape_cast %55 : vector<64x32xf32> to vector<1x64x32xf32>
    %57 = arith.truncf %56 : vector<1x64x32xf32> to vector<1x64x32xbf16>
    %c0_60 = arith.constant 0 : index
    %c0_61 = arith.constant 0 : index
    %c0_62 = arith.constant 0 : index
    %58 = vector.load %arg6[%c0_60, %c0_61, %c0_62] : memref<1x64x32xbf16, #tpu.memory_space<vmem>>, vector<1x64x32xbf16>
    tpu.vector_store %arg6[%c0_60, %c0_61, %c0_62], %57 {strides = array<i32>} : memref<1x64x32xbf16, #tpu.memory_space<vmem>>, vector<1x64x32xbf16>,
    return
  }
  func.func @transform_0(%arg0: i32, %arg1: i32) -> (i32, i32, i32, i32, i32) {
    %c0_i32 = arith.constant 0 : i32
    %c0_i32_0 = arith.constant 0 : i32
    %c0_i32_1 = arith.constant 0 : i32
    %c0_i32_2 = arith.constant 0 : i32
    %c0_i32_3 = arith.constant 0 : i32
    return %c0_i32, %arg0, %c0_i32_0, %c0_i32_1, %c0_i32_2 : i32, i32, i32, i32, i32
  }
  func.func @transform_1(%arg0: i32, %arg1: i32) -> (i32, i32) {
    %c0_i32 = arith.constant 0 : i32
    %c0_i32_0 = arith.constant 0 : i32
    return %c0_i32, %arg1 : i32, i32
  }
  func.func @transform_2(%arg0: i32, %arg1: i32) -> (i32, i32) {
    %c0_i32 = arith.constant 0 : i32
    %c0_i32_0 = arith.constant 0 : i32
    return %c0_i32, %arg1 : i32, i32
  }
  func.func @transform_3(%arg0: i32, %arg1: i32) -> (i32, i32) {
    %c0_i32 = arith.constant 0 : i32
    %c0_i32_0 = arith.constant 0 : i32
    return %c0_i32, %arg1 : i32, i32
  }
  func.func @transform_4(%arg0: i32, %arg1: i32) -> (i32, i32, i32) {
    %c0_i32 = arith.constant 0 : i32
    %c0_i32_0 = arith.constant 0 : i32
    return %arg0, %c0_i32, %arg1 : i32, i32, i32
  }
}

module attributes {stable_mosaic.version = 11 : i64} {
  func.func @_matmul_bn_strided_kernel(%arg0: i32, %arg1: i32, %arg2: memref<16x1x8x128xbf16, #tpu.memory_space<vmem>>, %arg3: memref<128x128xbf16, #tpu.memory_space<vmem>>, %arg4: memref<1x128xf32, #tpu.memory_space<vmem>>, %arg5: memref<1x128xf32, #tpu.memory_space<vmem>>, %arg6: memref<128x128xbf16, #tpu.memory_space<vmem>>) attributes {dimension_semantics = [#tpu.dimension_semantics<parallel>, #tpu.dimension_semantics<parallel>], iteration_bounds = array<i64: 1, 1>, scalar_prefetch = 0 : i64, scratch_operands = 0 : i64, tpu.core_type = #tpu.core_type<tc>, window_params = [{transform_indices = @transform_0, window_bounds = array<i64: 16, 1, 8, 128>}, {transform_indices = @transform_1, window_bounds = array<i64: 128, 128>}, {transform_indices = @transform_2, window_bounds = array<i64: 1, 128>}, {transform_indices = @transform_3, window_bounds = array<i64: 1, 128>}, {transform_indices = @transform_4, window_bounds = array<i64: 128, 128>}]} {
    %c0 = arith.constant 0 : index
    %c0_0 = arith.constant 0 : index
    %c0_1 = arith.constant 0 : index
    %c0_2 = arith.constant 0 : index
    %0 = vector.load %arg2[%c0, %c0_0, %c0_1, %c0_2] : memref<16x1x8x128xbf16, #tpu.memory_space<vmem>>, vector<16x1x8x128xbf16>
    %1 = vector.shape_cast %0 : vector<16x1x8x128xbf16> to vector<16x8x128xbf16>
    %2 = vector.shape_cast %1 : vector<16x8x128xbf16> to vector<128x128xbf16>
    %c0_3 = arith.constant 0 : index
    %c0_4 = arith.constant 0 : index
    %3 = vector.load %arg3[%c0_3, %c0_4] : memref<128x128xbf16, #tpu.memory_space<vmem>>, vector<128x128xbf16>
    %cst = arith.constant dense<0.000000e+00> : vector<128x128xf32>
    %4 = tpu.matmul %2, %3, %cst {dimension_numbers = #tpu.dot_dimension_numbers<[1], [0], [0], [1], [0, 0, 1, 1], [], []>} : vector<128x128xbf16>, vector<128x128xbf16>, vector<128x128xf32> -> vector<128x128xf32>
    %c0_5 = arith.constant 0 : index
    %c0_6 = arith.constant 0 : index
    %5 = vector.load %arg4[%c0_5, %c0_6] : memref<1x128xf32, #tpu.memory_space<vmem>>, vector<1x128xf32>
    %6 = vector.broadcast %5 : vector<1x128xf32> to vector<128x128xf32>
    %7 = arith.mulf %4, %6 : vector<128x128xf32>
    %c0_7 = arith.constant 0 : index
    %c0_8 = arith.constant 0 : index
    %8 = vector.load %arg5[%c0_7, %c0_8] : memref<1x128xf32, #tpu.memory_space<vmem>>, vector<1x128xf32>
    %9 = vector.broadcast %8 : vector<1x128xf32> to vector<128x128xf32>
    %10 = arith.addf %7, %9 : vector<128x128xf32>
    %11 = arith.truncf %10 : vector<128x128xf32> to vector<128x128xbf16>
    %c0_9 = arith.constant 0 : index
    %c0_10 = arith.constant 0 : index
    %12 = vector.load %arg6[%c0_9, %c0_10] : memref<128x128xbf16, #tpu.memory_space<vmem>>, vector<128x128xbf16>
    tpu.vector_store %arg6[%c0_9, %c0_10], %11 {strides = array<i32>} : memref<128x128xbf16, #tpu.memory_space<vmem>>, vector<128x128xbf16>,
    return
  }
  func.func @transform_0(%arg0: i32, %arg1: i32) -> (i32, i32, i32, i32) {
    %c0_i32 = arith.constant 0 : i32
    %c0_i32_0 = arith.constant 0 : i32
    %c0_i32_1 = arith.constant 0 : i32
    %c0_i32_2 = arith.constant 0 : i32
    return %arg0, %c0_i32, %c0_i32_0, %c0_i32_1 : i32, i32, i32, i32
  }
  func.func @transform_1(%arg0: i32, %arg1: i32) -> (i32, i32) {
    %c0_i32 = arith.constant 0 : i32
    %c0_i32_0 = arith.constant 0 : i32
    return %c0_i32, %arg1 : i32, i32
  }
  func.func @transform_2(%arg0: i32, %arg1: i32) -> (i32, i32) {
    %c0_i32 = arith.constant 0 : i32
    %c0_i32_0 = arith.constant 0 : i32
    return %c0_i32, %arg1 : i32, i32
  }
  func.func @transform_3(%arg0: i32, %arg1: i32) -> (i32, i32) {
    %c0_i32 = arith.constant 0 : i32
    %c0_i32_0 = arith.constant 0 : i32
    return %c0_i32, %arg1 : i32, i32
  }
  func.func @transform_4(%arg0: i32, %arg1: i32) -> (i32, i32) {
    %c0_i32 = arith.constant 0 : i32
    return %arg0, %arg1 : i32, i32
  }
}

module attributes {stable_mosaic.version = 11 : i64} {
  func.func @_matmul_bn_res_relu_kernel(%arg0: i32, %arg1: i32, %arg2: i32, %arg3: memref<128x32xbf16, #tpu.memory_space<vmem>>, %arg4: memref<32x128xbf16, #tpu.memory_space<vmem>>, %arg5: memref<1x128xf32, #tpu.memory_space<vmem>>, %arg6: memref<1x128xf32, #tpu.memory_space<vmem>>, %arg7: memref<128x128xbf16, #tpu.memory_space<vmem>>, %arg8: memref<128x128xbf16, #tpu.memory_space<vmem>>, %arg9: memref<128x128xf32, #tpu.memory_space<vmem>>) attributes {dimension_semantics = [#tpu.dimension_semantics<parallel>, #tpu.dimension_semantics<parallel>, #tpu.dimension_semantics<arbitrary>], iteration_bounds = array<i64: 1, 1, 1>, scalar_prefetch = 0 : i64, scratch_operands = 1 : i64, tpu.core_type = #tpu.core_type<tc>, window_params = [{transform_indices = @transform_0, window_bounds = array<i64: 128, 32>}, {transform_indices = @transform_1, window_bounds = array<i64: 32, 128>}, {transform_indices = @transform_2, window_bounds = array<i64: 1, 128>}, {transform_indices = @transform_3, window_bounds = array<i64: 1, 128>}, {transform_indices = @transform_4, window_bounds = array<i64: 128, 128>}, {transform_indices = @transform_5, window_bounds = array<i64: 128, 128>}]} {
    %c0_i32 = arith.constant 0 : i32
    %0 = arith.cmpi eq, %arg2, %c0_i32 : i32
    %1 = arith.extui %0 : i1 to i32
    %c0_i32_0 = arith.constant 0 : i32
    %2 = arith.cmpi ne, %1, %c0_i32_0 : i32
    scf.if %2 {
      %cst_10 = arith.constant 0.000000e+00 : f32
      %12 = vector.broadcast %cst_10 : f32 to vector<128x128xf32>
      %c0_11 = arith.constant 0 : index
      %c0_12 = arith.constant 0 : index
      %13 = vector.load %arg9[%c0_11, %c0_12] : memref<128x128xf32, #tpu.memory_space<vmem>>, vector<128x128xf32>
      tpu.vector_store %arg9[%c0_11, %c0_12], %12 {strides = array<i32>} : memref<128x128xf32, #tpu.memory_space<vmem>>, vector<128x128xf32>,
    } else {
    }
    %c0 = arith.constant 0 : index
    %c0_1 = arith.constant 0 : index
    %3 = vector.load %arg9[%c0, %c0_1] : memref<128x128xf32, #tpu.memory_space<vmem>>, vector<128x128xf32>
    %c0_2 = arith.constant 0 : index
    %c0_3 = arith.constant 0 : index
    %4 = vector.load %arg3[%c0_2, %c0_3] : memref<128x32xbf16, #tpu.memory_space<vmem>>, vector<128x32xbf16>
    %c0_4 = arith.constant 0 : index
    %c0_5 = arith.constant 0 : index
    %5 = vector.load %arg4[%c0_4, %c0_5] : memref<32x128xbf16, #tpu.memory_space<vmem>>, vector<32x128xbf16>
    %cst = arith.constant dense<0.000000e+00> : vector<128x128xf32>
    %6 = tpu.matmul %4, %5, %cst {dimension_numbers = #tpu.dot_dimension_numbers<[1], [0], [0], [1], [0, 0, 1, 1], [], []>} : vector<128x32xbf16>, vector<32x128xbf16>, vector<128x128xf32> -> vector<128x128xf32>
    %7 = arith.addf %3, %6 : vector<128x128xf32>
    %c0_6 = arith.constant 0 : index
    %c0_7 = arith.constant 0 : index
    %8 = vector.load %arg9[%c0_6, %c0_7] : memref<128x128xf32, #tpu.memory_space<vmem>>, vector<128x128xf32>
    tpu.vector_store %arg9[%c0_6, %c0_7], %7 {strides = array<i32>} : memref<128x128xf32, #tpu.memory_space<vmem>>, vector<128x128xf32>,
    %c0_i32_8 = arith.constant 0 : i32
    %9 = arith.cmpi eq, %arg2, %c0_i32_8 : i32
    %10 = arith.extui %9 : i1 to i32
    %c0_i32_9 = arith.constant 0 : i32
    %11 = arith.cmpi ne, %10, %c0_i32_9 : i32
    scf.if %11 {
      %c0_10 = arith.constant 0 : index
      %c0_11 = arith.constant 0 : index
      %12 = vector.load %arg9[%c0_10, %c0_11] : memref<128x128xf32, #tpu.memory_space<vmem>>, vector<128x128xf32>
      %c0_12 = arith.constant 0 : index
      %c0_13 = arith.constant 0 : index
      %13 = vector.load %arg5[%c0_12, %c0_13] : memref<1x128xf32, #tpu.memory_space<vmem>>, vector<1x128xf32>
      %14 = vector.broadcast %13 : vector<1x128xf32> to vector<128x128xf32>
      %15 = arith.mulf %12, %14 : vector<128x128xf32>
      %c0_14 = arith.constant 0 : index
      %c0_15 = arith.constant 0 : index
      %16 = vector.load %arg6[%c0_14, %c0_15] : memref<1x128xf32, #tpu.memory_space<vmem>>, vector<1x128xf32>
      %17 = vector.broadcast %16 : vector<1x128xf32> to vector<128x128xf32>
      %18 = arith.addf %15, %17 : vector<128x128xf32>
      %c0_16 = arith.constant 0 : index
      %c0_17 = arith.constant 0 : index
      %19 = vector.load %arg7[%c0_16, %c0_17] : memref<128x128xbf16, #tpu.memory_space<vmem>>, vector<128x128xbf16>
      %20 = arith.extf %19 : vector<128x128xbf16> to vector<128x128xf32>
      %21 = arith.addf %18, %20 : vector<128x128xf32>
      %cst_18 = arith.constant 0.000000e+00 : f32
      %22 = vector.broadcast %cst_18 : f32 to vector<128x128xf32>
      %23 = arith.maximumf %21, %22 : vector<128x128xf32>
      %24 = arith.truncf %23 : vector<128x128xf32> to vector<128x128xbf16>
      %c0_19 = arith.constant 0 : index
      %c0_20 = arith.constant 0 : index
      %25 = vector.load %arg8[%c0_19, %c0_20] : memref<128x128xbf16, #tpu.memory_space<vmem>>, vector<128x128xbf16>
      tpu.vector_store %arg8[%c0_19, %c0_20], %24 {strides = array<i32>} : memref<128x128xbf16, #tpu.memory_space<vmem>>, vector<128x128xbf16>,
    } else {
    }
    return
  }
  func.func @transform_0(%arg0: i32, %arg1: i32, %arg2: i32) -> (i32, i32) {
    %c0_i32 = arith.constant 0 : i32
    return %arg0, %arg2 : i32, i32
  }
  func.func @transform_1(%arg0: i32, %arg1: i32, %arg2: i32) -> (i32, i32) {
    %c0_i32 = arith.constant 0 : i32
    return %arg2, %arg1 : i32, i32
  }
  func.func @transform_2(%arg0: i32, %arg1: i32, %arg2: i32) -> (i32, i32) {
    %c0_i32 = arith.constant 0 : i32
    %c0_i32_0 = arith.constant 0 : i32
    return %c0_i32, %arg1 : i32, i32
  }
  func.func @transform_3(%arg0: i32, %arg1: i32, %arg2: i32) -> (i32, i32) {
    %c0_i32 = arith.constant 0 : i32
    %c0_i32_0 = arith.constant 0 : i32
    return %c0_i32, %arg1 : i32, i32
  }
  func.func @transform_4(%arg0: i32, %arg1: i32, %arg2: i32) -> (i32, i32) {
    %c0_i32 = arith.constant 0 : i32
    return %arg0, %arg1 : i32, i32
  }
  func.func @transform_5(%arg0: i32, %arg1: i32, %arg2: i32) -> (i32, i32) {
    %c0_i32 = arith.constant 0 : i32
    return %arg0, %arg1 : i32, i32
  }
}

</mosaic_0001>

<llo_original>
// kernel: _lambda_.4
$region0: #{_lambda_.4}
  #allocation0 [shape = 'u32[]', space=smem, size = 0x4, offset = 0x4, fixed_abs, tag = 'smem constant byte address 0x4 - core index']
  #allocation1 [shape = 'u32[144,128]{1,0:T(1,128)}', space=vmem, size = 0x12000, scoped, tag = 'internal scratch']
  #allocation2 [shape = 'f32[512,32]{1,0:T(8,128)}', space=vmem, size = 0x40000, scoped, tag = 'scratch operand']
  %s0 = inlined_call_operand.vmem [shape: bf16[512,64], index: 0, kind: input, shape index: {}]
  %s1 = inlined_call_operand.vmem [shape: bf16[64,32], index: 1, kind: input, shape index: {}]
  %s2 = inlined_call_operand.vmem [shape: f32[1,32], index: 2, kind: input, shape index: {}]
  %s3 = inlined_call_operand.vmem [shape: f32[1,32], index: 3, kind: input, shape index: {}]
  %s4 = inlined_call_operand.vmem [shape: bf16[512,32], index: 4, kind: output, shape index: {}]
  %s5 = sld [smem:[#allocation0]]
  $region34: #{_lambda_.4} parent=0
    _
  %s7 = ssub.s32 1, %s5
  %s8 = scalar_select 0, %s7, %s5
  // Predicated region
  $region2: #{_lambda_.4} parent=0 // pred_check
    _
  $region3: #{_lambda_.4} parent=0 // pred_check_branch
    %10 = sbr.rel (0) target = $region5
  $region4: #{_lambda_.4} parent=0 // pred_region
    _
  $region5: #{_lambda_.4} parent=0 // pred_fallthru
    _
  // Predicated region
  $region6: #{_lambda_.4} parent=0 // pred_check
    _
  $region7: #{_lambda_.4} parent=0 // pred_check_branch
    %12 = sbr.rel (0) target = $region9
  $region8: #{_lambda_.4} parent=0 // pred_region
    _
  $region9: #{_lambda_.4} parent=0 // pred_fallthru
    _
  // Predicated region
  $region10: #{_lambda_.4} parent=0 // pred_check
    _
  $region11: #{_lambda_.4} parent=0 // pred_check_branch
    %14 = sbr.rel (0) target = $region13
  $region12: #{_lambda_.4} parent=0 // pred_region
    _
  $region13: #{_lambda_.4} parent=0 // pred_fallthru
    _
  // Predicated region
  $region14: #{_lambda_.4} parent=0 // pred_check
    _
  $region15: #{_lambda_.4} parent=0 // pred_check_branch
    %16 = sbr.rel (0) target = $region17
  $region16: #{_lambda_.4} parent=0 // pred_region
    _
  $region17: #{_lambda_.4} parent=0 // pred_fallthru
    _
  %p18 = scmp.eq.s32.totalorder 0, 0
  // Predicated region
  $region18: #{_lambda_.4} parent=0 // pred_check
    %p19 = pneg %p18
  $region19: #{_lambda_.4} parent=0 // pred_check_branch
    %21 = sbr.rel (%p19) target = $region21
  $region20: #{_lambda_.4} parent=0 // pred_region
    %vm22 = vcmask 261120
    %23 = vst.msk [vmem:[#allocation2] sm:$0xff] %vm22, 0.0
    %24 = vst.msk [vmem:[#allocation2 + $0x8] sm:$0xff] %vm22, 0.0
    %25 = vst.msk [vmem:[#allocation2 + $0x10] sm:$0xff] %vm22, 0.0
    %26 = vst.msk [vmem:[#allocation2 + $0x18] sm:$0xff] %vm22, 0.0
    %27 = vst.msk [vmem:[#allocation2 + $0x20] sm:$0xff] %vm22, 0.0
    %28 = vst.msk [vmem:[#allocation2 + $0x28] sm:$0xff] %vm22, 0.0
    %29 = vst.msk [vmem:[#allocation2 + $0x30] sm:$0xff] %vm22, 0.0
    %30 = vst.msk [vmem:[#allocation2 + $0x38] sm:$0xff] %vm22, 0.0
    %31 = vst.msk [vmem:[#allocation2 + $0x40] sm:$0xff] %vm22, 0.0
    %32 = vst.msk [vmem:[#allocation2 + $0x48] sm:$0xff] %vm22, 0.0
    %33 = vst.msk [vmem:[#allocation2 + $0x50] sm:$0xff] %vm22, 0.0
    %34 = vst.msk [vmem:[#allocation2 + $0x58] sm:$0xff] %vm22, 0.0
    %35 = vst.msk [vmem:[#allocation2 + $0x60] sm:$0xff] %vm22, 0.0
    %36 = vst.msk [vmem:[#allocation2 + $0x68] sm:$0xff] %vm22, 0.0
    %37 = vst.msk [vmem:[#allocation2 + $0x70] sm:$0xff] %vm22, 0.0
    %38 = vst.msk [vmem:[#allocation2 + $0x78] sm:$0xff] %vm22, 0.0
    %39 = vst.msk [vmem:[#allocation2 + $0x80] sm:$0xff] %vm22, 0.0
    %40 = vst.msk [vmem:[#allocation2 + $0x88] sm:$0xff] %vm22, 0.0
    %41 = vst.msk [vmem:[#allocation2 + $0x90] sm:$0xff] %vm22, 0.0
    %42 = vst.msk [vmem:[#allocation2 + $0x98] sm:$0xff] %vm22, 0.0
    %43 = vst.msk [vmem:[#allocation2 + $0xa0] sm:$0xff] %vm22, 0.0
    %44 = vst.msk [vmem:[#allocation2 + $0xa8] sm:$0xff] %vm22, 0.0
    %45 = vst.msk [vmem:[#allocation2 + $0xb0] sm:$0xff] %vm22, 0.0
    %46 = vst.msk [vmem:[#allocation2 + $0xb8] sm:$0xff] %vm22, 0.0
    %47 = vst.msk [vmem:[#allocation2 + $0xc0] sm:$0xff] %vm22, 0.0
    %48 = vst.msk [vmem:[#allocation2 + $0xc8] sm:$0xff] %vm22, 0.0
    %49 = vst.msk [vmem:[#allocation2 + $0xd0] sm:$0xff] %vm22, 0.0
    %50 = vst.msk [vmem:[#allocation2 + $0xd8] sm:$0xff] %vm22, 0.0
    %51 = vst.msk [vmem:[#allocation2 + $0xe0] sm:$0xff] %vm22, 0.0
    %52 = vst.msk [vmem:[#allocation2 + $0xe8] sm:$0xff] %vm22, 0.0
    %53 = vst.msk [vmem:[#allocation2 + $0xf0] sm:$0xff] %vm22, 0.0
    %54 = vst.msk [vmem:[#allocation2 + $0xf8] sm:$0xff] %vm22, 0.0
    %55 = vst.msk [vmem:[#allocation2 + $0x100] sm:$0xff] %vm22, 0.0
    %56 = vst.msk [vmem:[#allocation2 + $0x108] sm:$0xff] %vm22, 0.0
    %57 = vst.msk [vmem:[#allocation2 + $0x110] sm:$0xff] %vm22, 0.0
    %58 = vst.msk [vmem:[#allocation2 + $0x118] sm:$0xff] %vm22, 0.0
    %59 = vst.msk [vmem:[#allocation2 + $0x120] sm:$0xff] %vm22, 0.0
    %60 = vst.msk [vmem:[#allocation2 + $0x128] sm:$0xff] %vm22, 0.0
    %61 = vst.msk [vmem:[#allocation2 + $0x130] sm:$0xff] %vm22, 0.0
    %62 = vst.msk [vmem:[#allocation2 + $0x138] sm:$0xff] %vm22, 0.0
    %63 = vst.msk [vmem:[#allocation2 + $0x140] sm:$0xff] %vm22, 0.0
    %64 = vst.msk [vmem:[#allocation2 + $0x148] sm:$0xff] %vm22, 0.0
    %65 = vst.msk [vmem:[#allocation2 + $0x150] sm:$0xff] %vm22, 0.0
    %66 = vst.msk [vmem:[#allocation2 + $0x158] sm:$0xff] %vm22, 0.0
    %67 = vst.msk [vmem:[#allocation2 + $0x160] sm:$0xff] %vm22, 0.0
    %68 = vst.msk [vmem:[#allocation2 + $0x168] sm:$0xff] %vm22, 0.0
    %69 = vst.msk [vmem:[#allocation2 + $0x170] sm:$0xff] %vm22, 0.0
    %70 = vst.msk [vmem:[#allocation2 + $0x178] sm:$0xff] %vm22, 0.0
    %71 = vst.msk [vmem:[#allocation2 + $0x180] sm:$0xff] %vm22, 0.0
    %72 = vst.msk [vmem:[#allocation2 + $0x188] sm:$0xff] %vm22, 0.0
    %73 = vst.msk [vmem:[#allocation2 + $0x190] sm:$0xff] %vm22, 0.0
    %74 = vst.msk [vmem:[#allocation2 + $0x198] sm:$0xff] %vm22, 0.0
    %75 = vst.msk [vmem:[#allocation2 + $0x1a0] sm:$0xff] %vm22, 0.0
    %76 = vst.msk [vmem:[#allocation2 + $0x1a8] sm:$0xff] %vm22, 0.0
    %77 = vst.msk [vmem:[#allocation2 + $0x1b0] sm:$0xff] %vm22, 0.0
    %78 = vst.msk [vmem:[#allocation2 + $0x1b8] sm:$0xff] %vm22, 0.0
    %79 = vst.msk [vmem:[#allocation2 + $0x1c0] sm:$0xff] %vm22, 0.0
    %80 = vst.msk [vmem:[#allocation2 + $0x1c8] sm:$0xff] %vm22, 0.0
    %81 = vst.msk [vmem:[#allocation2 + $0x1d0] sm:$0xff] %vm22, 0.0
    %82 = vst.msk [vmem:[#allocation2 + $0x1d8] sm:$0xff] %vm22, 0.0
    %83 = vst.msk [vmem:[#allocation2 + $0x1e0] sm:$0xff] %vm22, 0.0
    %84 = vst.msk [vmem:[#allocation2 + $0x1e8] sm:$0xff] %vm22, 0.0
    %85 = vst.msk [vmem:[#allocation2 + $0x1f0] sm:$0xff] %vm22, 0.0
    %86 = vst.msk [vmem:[#allocation2 + $0x1f8] sm:$0xff] %vm22, 0.0
  $region21: #{_lambda_.4} parent=0 // pred_fallthru
    _
  %v87 = vld [vmem:[#allocation2] sm:$0xff]
  %v88 = vld [vmem:[#allocation2 + $0x8] sm:$0xff]
  %v89 = vld [vmem:[#allocation2 + $0x10] sm:$0xff]
  %v90 = vld [vmem:[#allocation2 + $0x18] sm:$0xff]
  %v91 = vld [vmem:[#allocation2 + $0x20] sm:$0xff]
  %v92 = vld [vmem:[#allocation2 + $0x28] sm:$0xff]
  %v93 = vld [vmem:[#allocation2 + $0x30] sm:$0xff]
  %v94 = vld [vmem:[#allocation2 + $0x38] sm:$0xff]
  %v95 = vld [vmem:[#allocation2 + $0x40] sm:$0xff]
  %v96 = vld [vmem:[#allocation2 + $0x48] sm:$0xff]
  %v97 = vld [vmem:[#allocation2 + $0x50] sm:$0xff]
  %v98 = vld [vmem:[#allocation2 + $0x58] sm:$0xff]
  %v99 = vld [vmem:[#allocation2 + $0x60] sm:$0xff]
  %v100 = vld [vmem:[#allocation2 + $0x68] sm:$0xff]
  %v101 = vld [vmem:[#allocation2 + $0x70] sm:$0xff]
  %v102 = vld [vmem:[#allocation2 + $0x78] sm:$0xff]
  %v103 = vld [vmem:[#allocation2 + $0x80] sm:$0xff]
  %v104 = vld [vmem:[#allocation2 + $0x88] sm:$0xff]
  %v105 = vld [vmem:[#allocation2 + $0x90] sm:$0xff]
  %v106 = vld [vmem:[#allocation2 + $0x98] sm:$0xff]
  %v107 = vld [vmem:[#allocation2 + $0xa0] sm:$0xff]
  %v108 = vld [vmem:[#allocation2 + $0xa8] sm:$0xff]
  %v109 = vld [vmem:[#allocation2 + $0xb0] sm:$0xff]
  %v110 = vld [vmem:[#allocation2 + $0xb8] sm:$0xff]
  %v111 = vld [vmem:[#allocation2 + $0xc0] sm:$0xff]
  %v112 = vld [vmem:[#allocation2 + $0xc8] sm:$0xff]
  %v113 = vld [vmem:[#allocation2 + $0xd0] sm:$0xff]
  %v114 = vld [vmem:[#allocation2 + $0xd8] sm:$0xff]
  %v115 = vld [vmem:[#allocation2 + $0xe0] sm:$0xff]
  %v116 = vld [vmem:[#allocation2 + $0xe8] sm:$0xff]
  %v117 = vld [vmem:[#allocation2 + $0xf0] sm:$0xff]
  %v118 = vld [vmem:[#allocation2 + $0xf8] sm:$0xff]
  %v119 = vld [vmem:[#allocation2 + $0x100] sm:$0xff]
  %v120 = vld [vmem:[#allocation2 + $0x108] sm:$0xff]
  %v121 = vld [vmem:[#allocation2 + $0x110] sm:$0xff]
  %v122 = vld [vmem:[#allocation2 + $0x118] sm:$0xff]
  %v123 = vld [vmem:[#allocation2 + $0x120] sm:$0xff]
  %v124 = vld [vmem:[#allocation2 + $0x128] sm:$0xff]
  %v125 = vld [vmem:[#allocation2 + $0x130] sm:$0xff]
  %v126 = vld [vmem:[#allocation2 + $0x138] sm:$0xff]
  %v127 = vld [vmem:[#allocation2 + $0x140] sm:$0xff]
  %v128 = vld [vmem:[#allocation2 + $0x148] sm:$0xff]
  %v129 = vld [vmem:[#allocation2 + $0x150] sm:$0xff]
  %v130 = vld [vmem:[#allocation2 + $0x158] sm:$0xff]
  %v131 = vld [vmem:[#allocation2 + $0x160] sm:$0xff]
  %v132 = vld [vmem:[#allocation2 + $0x168] sm:$0xff]
  %v133 = vld [vmem:[#allocation2 + $0x170] sm:$0xff]
  %v134 = vld [vmem:[#allocation2 + $0x178] sm:$0xff]
  %v135 = vld [vmem:[#allocation2 + $0x180] sm:$0xff]
  %v136 = vld [vmem:[#allocation2 + $0x188] sm:$0xff]
  %v137 = vld [vmem:[#allocation2 + $0x190] sm:$0xff]
  %v138 = vld [vmem:[#allocation2 + $0x198] sm:$0xff]
  %v139 = vld [vmem:[#allocation2 + $0x1a0] sm:$0xff]
  %v140 = vld [vmem:[#allocation2 + $0x1a8] sm:$0xff]
  %v141 = vld [vmem:[#allocation2 + $0x1b0] sm:$0xff]
  %v142 = vld [vmem:[#allocation2 + $0x1b8] sm:$0xff]
  %v143 = vld [vmem:[#allocation2 + $0x1c0] sm:$0xff]
  %v144 = vld [vmem:[#allocation2 + $0x1c8] sm:$0xff]
  %v145 = vld [vmem:[#allocation2 + $0x1d0] sm:$0xff]
  %v146 = vld [vmem:[#allocation2 + $0x1d8] sm:$0xff]
  %v147 = vld [vmem:[#allocation2 + $0x1e0] sm:$0xff]
  %v148 = vld [vmem:[#allocation2 + $0x1e8] sm:$0xff]
  %v149 = vld [vmem:[#allocation2 + $0x1f0] sm:$0xff]
  %v150 = vld [vmem:[#allocation2 + $0x1f8] sm:$0xff]
  %v151 = vld [vmem:[%s0] sm:$0xf]
  %v152 = vld [vmem:[%s0 + $0x4] sm:$0xf]
  %v153 = vld [vmem:[%s0 + $0x8] sm:$0xf]
  %v154 = vld [vmem:[%s0 + $0xc] sm:$0xf]
  %v155 = vld [vmem:[%s0 + $0x10] sm:$0xf]
  %v156 = vld [vmem:[%s0 + $0x14] sm:$0xf]
  %v157 = vld [vmem:[%s0 + $0x18] sm:$0xf]
  %v158 = vld [vmem:[%s0 + $0x1c] sm:$0xf]
  %v159 = vld [vmem:[%s0 + $0x20] sm:$0xf]
  %v160 = vld [vmem:[%s0 + $0x24] sm:$0xf]
  %v161 = vld [vmem:[%s0 + $0x28] sm:$0xf]
  %v162 = vld [vmem:[%s0 + $0x2c] sm:$0xf]
  %v163 = vld [vmem:[%s0 + $0x30] sm:$0xf]
  %v164 = vld [vmem:[%s0 + $0x34] sm:$0xf]
  %v165 = vld [vmem:[%s0 + $0x38] sm:$0xf]
  %v166 = vld [vmem:[%s0 + $0x3c] sm:$0xf]
  %v167 = vld [vmem:[%s0 + $0x40] sm:$0xf]
  %v168 = vld [vmem:[%s0 + $0x44] sm:$0xf]
  %v169 = vld [vmem:[%s0 + $0x48] sm:$0xf]
  %v170 = vld [vmem:[%s0 + $0x4c] sm:$0xf]
  %v171 = vld [vmem:[%s0 + $0x50] sm:$0xf]
  %v172 = vld [vmem:[%s0 + $0x54] sm:$0xf]
  %v173 = vld [vmem:[%s0 + $0x58] sm:$0xf]
  %v174 = vld [vmem:[%s0 + $0x5c] sm:$0xf]
  %v175 = vld [vmem:[%s0 + $0x60] sm:$0xf]
  %v176 = vld [vmem:[%s0 + $0x64] sm:$0xf]
  %v177 = vld [vmem:[%s0 + $0x68] sm:$0xf]
  %v178 = vld [vmem:[%s0 + $0x6c] sm:$0xf]
  %v179 = vld [vmem:[%s0 + $0x70] sm:$0xf]
  %v180 = vld [vmem:[%s0 + $0x74] sm:$0xf]
  %v181 = vld [vmem:[%s0 + $0x78] sm:$0xf]
  %v182 = vld [vmem:[%s0 + $0x7c] sm:$0xf]
  %v183 = vld [vmem:[%s0 + $0x80] sm:$0xf]
  %v184 = vld [vmem:[%s0 + $0x84] sm:$0xf]
  %v185 = vld [vmem:[%s0 + $0x88] sm:$0xf]
  %v186 = vld [vmem:[%s0 + $0x8c] sm:$0xf]
  %v187 = vld [vmem:[%s0 + $0x90] sm:$0xf]
  %v188 = vld [vmem:[%s0 + $0x94] sm:$0xf]
  %v189 = vld [vmem:[%s0 + $0x98] sm:$0xf]
  %v190 = vld [vmem:[%s0 + $0x9c] sm:$0xf]
  %v191 = vld [vmem:[%s0 + $0xa0] sm:$0xf]
  %v192 = vld [vmem:[%s0 + $0xa4] sm:$0xf]
  %v193 = vld [vmem:[%s0 + $0xa8] sm:$0xf]
  %v194 = vld [vmem:[%s0 + $0xac] sm:$0xf]
  %v195 = vld [vmem:[%s0 + $0xb0] sm:$0xf]
  %v196 = vld [vmem:[%s0 + $0xb4] sm:$0xf]
  %v197 = vld [vmem:[%s0 + $0xb8] sm:$0xf]
  %v198 = vld [vmem:[%s0 + $0xbc] sm:$0xf]
  %v199 = vld [vmem:[%s0 + $0xc0] sm:$0xf]
  %v200 = vld [vmem:[%s0 + $0xc4] sm:$0xf]
  %v201 = vld [vmem:[%s0 + $0xc8] sm:$0xf]
  %v202 = vld [vmem:[%s0 + $0xcc] sm:$0xf]
  %v203 = vld [vmem:[%s0 + $0xd0] sm:$0xf]
  %v204 = vld [vmem:[%s0 + $0xd4] sm:$0xf]
  %v205 = vld [vmem:[%s0 + $0xd8] sm:$0xf]
  %v206 = vld [vmem:[%s0 + $0xdc] sm:$0xf]
  %v207 = vld [vmem:[%s0 + $0xe0] sm:$0xf]
  %v208 = vld [vmem:[%s0 + $0xe4] sm:$0xf]
  %v209 = vld [vmem:[%s0 + $0xe8] sm:$0xf]
  %v210 = vld [vmem:[%s0 + $0xec] sm:$0xf]
  %v211 = vld [vmem:[%s0 + $0xf0] sm:$0xf]
  %v212 = vld [vmem:[%s0 + $0xf4] sm:$0xf]
  %v213 = vld [vmem:[%s0 + $0xf8] sm:$0xf]
  %v214 = vld [vmem:[%s0 + $0xfc] sm:$0xf]
  %v215 = vld [vmem:[%s1] sm:$0xf]
  %v216 = vld [vmem:[%s1 + $0x4] sm:$0xf]
  %v217 = vld [vmem:[%s1 + $0x8] sm:$0xf]
  %v218 = vld [vmem:[%s1 + $0xc] sm:$0xf]
  %v219 = vld [vmem:[%s1 + $0x10] sm:$0xf]
  %v220 = vld [vmem:[%s1 + $0x14] sm:$0xf]
  %v221 = vld [vmem:[%s1 + $0x18] sm:$0xf]
  %v222 = vld [vmem:[%s1 + $0x1c] sm:$0xf]
  %v287 = vunpack.c.l.b16 %v151
  %v288 = vunpack.c.l.b16 %v152
  %v289 = vunpack.c.l.b16 %v153
  %v290 = vunpack.c.l.b16 %v154
  %v291 = vunpack.c.l.b16 %v155
  %v292 = vunpack.c.l.b16 %v156
  %v293 = vunpack.c.l.b16 %v157
  %v294 = vunpack.c.l.b16 %v158
  %v295 = vunpack.c.l.b16 %v159
  %v296 = vunpack.c.l.b16 %v160
  %v297 = vunpack.c.l.b16 %v161
  %v298 = vunpack.c.l.b16 %v162
  %v299 = vunpack.c.l.b16 %v163
  %v300 = vunpack.c.l.b16 %v164
  %v301 = vunpack.c.l.b16 %v165
  %v302 = vunpack.c.l.b16 %v166
  %v303 = vunpack.c.l.b16 %v167
  %v304 = vunpack.c.l.b16 %v168
  %v305 = vunpack.c.l.b16 %v169
  %v306 = vunpack.c.l.b16 %v170
  %v307 = vunpack.c.l.b16 %v171
  %v308 = vunpack.c.l.b16 %v172
  %v309 = vunpack.c.l.b16 %v173
  %v310 = vunpack.c.l.b16 %v174
  %v311 = vunpack.c.l.b16 %v175
  %v312 = vunpack.c.l.b16 %v176
  %v313 = vunpack.c.l.b16 %v177
  %v314 = vunpack.c.l.b16 %v178
  %v315 = vunpack.c.l.b16 %v179
  %v316 = vunpack.c.l.b16 %v180
  %v317 = vunpack.c.l.b16 %v181
  %v318 = vunpack.c.l.b16 %v182
  %v319 = vunpack.c.l.b16 %v183
  %v320 = vunpack.c.l.b16 %v184
  %v321 = vunpack.c.l.b16 %v185
  %v322 = vunpack.c.l.b16 %v186
  %v323 = vunpack.c.l.b16 %v187
  %v324 = vunpack.c.l.b16 %v188
  %v325 = vunpack.c.l.b16 %v189
  %v326 = vunpack.c.l.b16 %v190
  %v327 = vunpack.c.l.b16 %v191
  %v328 = vunpack.c.l.b16 %v192
  %v329 = vunpack.c.l.b16 %v193
  %v330 = vunpack.c.l.b16 %v194
  %v331 = vunpack.c.l.b16 %v195
  %v332 = vunpack.c.l.b16 %v196
  %v333 = vunpack.c.l.b16 %v197
  %v334 = vunpack.c.l.b16 %v198
  %v335 = vunpack.c.l.b16 %v199
  %v336 = vunpack.c.l.b16 %v200
  %v337 = vunpack.c.l.b16 %v201
  %v338 = vunpack.c.l.b16 %v202
  %v339 = vunpack.c.l.b16 %v203
  %v340 = vunpack.c.l.b16 %v204
  %v341 = vunpack.c.l.b16 %v205
  %v342 = vunpack.c.l.b16 %v206
  %v343 = vunpack.c.l.b16 %v207
  %v344 = vunpack.c.l.b16 %v208
  %v345 = vunpack.c.l.b16 %v209
  %v346 = vunpack.c.l.b16 %v210
  %v347 = vunpack.c.l.b16 %v211
  %v348 = vunpack.c.l.b16 %v212
  %v349 = vunpack.c.l.b16 %v213
  %v350 = vunpack.c.l.b16 %v214
  %v351 = vpack.c.b16 %v288, %v287
  %v352 = vpack.c.b16 %v290, %v289
  %v353 = vpack.c.b16 %v292, %v291
  %v354 = vpack.c.b16 %v294, %v293
  %v355 = vpack.c.b16 %v296, %v295
  %v356 = vpack.c.b16 %v298, %v297
  %v357 = vpack.c.b16 %v300, %v299
  %v358 = vpack.c.b16 %v302, %v301
  %v359 = vpack.c.b16 %v304, %v303
  %v360 = vpack.c.b16 %v306, %v305
  %v361 = vpack.c.b16 %v308, %v307
  %v362 = vpack.c.b16 %v310, %v309
  %v363 = vpack.c.b16 %v312, %v311
  %v364 = vpack.c.b16 %v314, %v313
  %v365 = vpack.c.b16 %v316, %v315
  %v366 = vpack.c.b16 %v318, %v317
  %v367 = vpack.c.b16 %v320, %v319
  %v368 = vpack.c.b16 %v322, %v321
  %v369 = vpack.c.b16 %v324, %v323
  %v370 = vpack.c.b16 %v326, %v325
  %v371 = vpack.c.b16 %v328, %v327
  %v372 = vpack.c.b16 %v330, %v329
  %v373 = vpack.c.b16 %v332, %v331
  %v374 = vpack.c.b16 %v334, %v333
  %v375 = vpack.c.b16 %v336, %v335
  %v376 = vpack.c.b16 %v338, %v337
  %v377 = vpack.c.b16 %v340, %v339
  %v378 = vpack.c.b16 %v342, %v341
  %v379 = vpack.c.b16 %v344, %v343
  %v380 = vpack.c.b16 %v346, %v345
  %v381 = vpack.c.b16 %v348, %v347
  %v382 = vpack.c.b16 %v350, %v349
  %v391 = vunpack.c.l.b16 %v215
  %v392 = vunpack.c.l.b16 %v216
  %v393 = vunpack.c.l.b16 %v217
  %v394 = vunpack.c.l.b16 %v218
  %v395 = vunpack.c.l.b16 %v219
  %v396 = vunpack.c.l.b16 %v220
  %v397 = vunpack.c.l.b16 %v221
  %v398 = vunpack.c.l.b16 %v222
  %v399 = vpack.c.b16 %v392, %v391
  %v400 = vpack.c.b16 %v394, %v393
  %v401 = vpack.c.b16 %v396, %v395
  %v402 = vpack.c.b16 %v398, %v397
  %vm407 = vcmask 523264
  %v409 = vsel %vm407, %v351, 0
  %v412 = vsel %vm407, %v352, 0
  %v415 = vsel %vm407, %v353, 0
  %v418 = vsel %vm407, %v354, 0
  %v421 = vsel %vm407, %v355, 0
  %v424 = vsel %vm407, %v356, 0
  %v427 = vsel %vm407, %v357, 0
  %v430 = vsel %vm407, %v358, 0
  %v433 = vsel %vm407, %v359, 0
  %v436 = vsel %vm407, %v360, 0
  %v439 = vsel %vm407, %v361, 0
  %v442 = vsel %vm407, %v362, 0
  %v445 = vsel %vm407, %v363, 0
  %v448 = vsel %vm407, %v364, 0
  %v451 = vsel %vm407, %v365, 0
  %v454 = vsel %vm407, %v366, 0
  %v457 = vsel %vm407, %v367, 0
  %v460 = vsel %vm407, %v368, 0
  %v463 = vsel %vm407, %v369, 0
  %v466 = vsel %vm407, %v370, 0
  %v469 = vsel %vm407, %v371, 0
  %v472 = vsel %vm407, %v372, 0
  %v475 = vsel %vm407, %v373, 0
  %v478 = vsel %vm407, %v374, 0
  %v481 = vsel %vm407, %v375, 0
  %v484 = vsel %vm407, %v376, 0
  %v487 = vsel %vm407, %v377, 0
  %v490 = vsel %vm407, %v378, 0
  %v493 = vsel %vm407, %v379, 0
  %v496 = vsel %vm407, %v380, 0
  %v499 = vsel %vm407, %v381, 0
  %v502 = vsel %vm407, %v382, 0
  %504 = vmatprep.subr.bf16.mxu0 0
  %505 = vmatpush1.bf16.msra.mxu0 %v399
  %506 = vmatprep.subr.bf16.mxu0 0
  %507 = vmatpush1.bf16.msra.mxu0 %v400
  %508 = vmatprep.subr.bf16.mxu0 0
  %509 = vmatpush1.bf16.msra.mxu0 %v401
  %510 = vmatprep.subr.bf16.mxu0 0
  %511 = vmatpush1.bf16.msra.mxu0 %v402
  %512 = vmatprep.subr.bf16.mxu0 0
  %513 = vmatpush1.bf16.msra.mxu0 0
  %514 = vmatprep.subr.bf16.mxu0 0
  %515 = vmatpush1.bf16.msra.mxu0 0
  %516 = vmatprep.subr.bf16.mxu0 0
  %517 = vmatpush1.bf16.msra.mxu0 0
  %518 = vmatprep.subr.bf16.mxu0 0
  %519 = vmatpush1.bf16.msra.mxu0 0
  %520 = vmatprep.subr.bf16.mxu0 0
  %521 = vmatpush1.bf16.msra.mxu0 0
  %522 = vmatprep.subr.bf16.mxu0 0
  %523 = vmatpush1.bf16.msra.mxu0 0
  %524 = vmatprep.subr.bf16.mxu0 0
  %525 = vmatpush1.bf16.msra.mxu0 0
  %526 = vmatprep.subr.bf16.mxu0 0
  %527 = vmatpush1.bf16.msra.mxu0 0
  %528 = vmatprep.subr.bf16.mxu0 0
  %529 = vmatpush1.bf16.msra.mxu0 0
  %530 = vmatprep.subr.bf16.mxu0 0
  %531 = vmatpush1.bf16.msra.mxu0 0
  %532 = vmatprep.subr.bf16.mxu0 0
  %533 = vmatpush1.bf16.msra.mxu0 0
  %534 = vmatprep.subr.bf16.mxu0 0
  %535 = vmatpush1.bf16.msra.mxu0 0
  %536 = vmatprep.mubr.bf16.mxu0 0
  %537 = vmatmul.mubr.bf16.gmra.mrb[0].mxu0 %v409
  %v538 = vpop.f32.mrb[0].mxu0
  %v539 = vadd.f32 0.0, %v538
  %v540 = vpop.f32.mrb[0].mxu0
  %v541 = vpop.f32.mrb[0].mxu0
  %v542 = vadd.f32 0.0, %v541
  %v543 = vpop.f32.mrb[0].mxu0
  %544 = vmatprep.mubr.bf16.mxu0 0
  %545 = vmatmul.mubr.bf16.gmra.mrb[0].mxu0 %v412
  %v546 = vpop.f32.mrb[0].mxu0
  %v547 = vadd.f32 0.0, %v546
  %v548 = vpop.f32.mrb[0].mxu0
  %v549 = vpop.f32.mrb[0].mxu0
  %v550 = vadd.f32 0.0, %v549
  %v551 = vpop.f32.mrb[0].mxu0
  %552 = vmatprep.mubr.bf16.mxu0 0
  %553 = vmatmul.mubr.bf16.gmra.mrb[0].mxu0 %v415
  %v554 = vpop.f32.mrb[0].mxu0
  %v555 = vadd.f32 0.0, %v554
  %v556 = vpop.f32.mrb[0].mxu0
  %v557 = vpop.f32.mrb[0].mxu0
  %v558 = vadd.f32 0.0, %v557
  %v559 = vpop.f32.mrb[0].mxu0
  %560 = vmatprep.mubr.bf16.mxu0 0
  %561 = vmatmul.mubr.bf16.gmra.mrb[0].mxu0 %v418
  %v562 = vpop.f32.mrb[0].mxu0
  %v563 = vadd.f32 0.0, %v562
  %v564 = vpop.f32.mrb[0].mxu0
  %v565 = vpop.f32.mrb[0].mxu0
  %v566 = vadd.f32 0.0, %v565
  %v567 = vpop.f32.mrb[0].mxu0
  %568 = vmatprep.mubr.bf16.mxu0 0
  %569 = vmatmul.mubr.bf16.gmra.mrb[0].mxu0 %v421
  %v570 = vpop.f32.mrb[0].mxu0
  %v571 = vadd.f32 0.0, %v570
  %v572 = vpop.f32.mrb[0].mxu0
  %v573 = vpop.f32.mrb[0].mxu0
  %v574 = vadd.f32 0.0, %v573
  %v575 = vpop.f32.mrb[0].mxu0
  %576 = vmatprep.mubr.bf16.mxu0 0
  %577 = vmatmul.mubr.bf16.gmra.mrb[0].mxu0 %v424
  %v578 = vpop.f32.mrb[0].mxu0
  %v579 = vadd.f32 0.0, %v578
  %v580 = vpop.f32.mrb[0].mxu0
  %v581 = vpop.f32.mrb[0].mxu0
  %v582 = vadd.f32 0.0, %v581
  %v583 = vpop.f32.mrb[0].mxu0
  %584 = vmatprep.mubr.bf16.mxu0 0
  %585 = vmatmul.mubr.bf16.gmra.mrb[0].mxu0 %v427
  %v586 = vpop.f32.mrb[0].mxu0
  %v587 = vadd.f32 0.0, %v586
  %v588 = vpop.f32.mrb[0].mxu0
  %v589 = vpop.f32.mrb[0].mxu0
  %v590 = vadd.f32 0.0, %v589
  %v591 = vpop.f32.mrb[0].mxu0
  %592 = vmatprep.mubr.bf16.mxu0 0
  %593 = vmatmul.mubr.bf16.gmra.mrb[0].mxu0 %v430
  %v594 = vpop.f32.mrb[0].mxu0
  %v595 = vadd.f32 0.0, %v594
  %v596 = vpop.f32.mrb[0].mxu0
  %v597 = vpop.f32.mrb[0].mxu0
  %v598 = vadd.f32 0.0, %v597
  %v599 = vpop.f32.mrb[0].mxu0
  %600 = vmatprep.mubr.bf16.mxu0 0
  %601 = vmatmul.mubr.bf16.gmra.mrb[0].mxu0 %v433
  %v602 = vpop.f32.mrb[0].mxu0
  %v603 = vadd.f32 0.0, %v602
  %v604 = vpop.f32.mrb[0].mxu0
  %v605 = vpop.f32.mrb[0].mxu0
  %v606 = vadd.f32 0.0, %v605
  %v607 = vpop.f32.mrb[0].mxu0
  %608 = vmatprep.mubr.bf16.mxu0 0
  %609 = vmatmul.mubr.bf16.gmra.mrb[0].mxu0 %v436
  %v610 = vpop.f32.mrb[0].mxu0
  %v611 = vadd.f32 0.0, %v610
  %v612 = vpop.f32.mrb[0].mxu0
  %v613 = vpop.f32.mrb[0].mxu0
  %v614 = vadd.f32 0.0, %v613
  %v615 = vpop.f32.mrb[0].mxu0
  %616 = vmatprep.mubr.bf16.mxu0 0
  %617 = vmatmul.mubr.bf16.gmra.mrb[0].mxu0 %v439
  %v618 = vpop.f32.mrb[0].mxu0
  %v619 = vadd.f32 0.0, %v618
  %v620 = vpop.f32.mrb[0].mxu0
  %v621 = vpop.f32.mrb[0].mxu0
  %v622 = vadd.f32 0.0, %v621
  %v623 = vpop.f32.mrb[0].mxu0
  %624 = vmatprep.mubr.bf16.mxu0 0
  %625 = vmatmul.mubr.bf16.gmra.mrb[0].mxu0 %v442
  %v626 = vpop.f32.mrb[0].mxu0
  %v627 = vadd.f32 0.0, %v626
  %v628 = vpop.f32.mrb[0].mxu0
  %v629 = vpop.f32.mrb[0].mxu0
  %v630 = vadd.f32 0.0, %v629
  %v631 = vpop.f32.mrb[0].mxu0
  %632 = vmatprep.mubr.bf16.mxu0 0
  %633 = vmatmul.mubr.bf16.gmra.mrb[0].mxu0 %v445
  %v634 = vpop.f32.mrb[0].mxu0
  %v635 = vadd.f32 0.0, %v634
  %v636 = vpop.f32.mrb[0].mxu0
  %v637 = vpop.f32.mrb[0].mxu0
  %v638 = vadd.f32 0.0, %v637
  %v639 = vpop.f32.mrb[0].mxu0
  %640 = vmatprep.mubr.bf16.mxu0 0
  %641 = vmatmul.mubr.bf16.gmra.mrb[0].mxu0 %v448
  %v642 = vpop.f32.mrb[0].mxu0
  %v643 = vadd.f32 0.0, %v642
  %v644 = vpop.f32.mrb[0].mxu0
  %v645 = vpop.f32.mrb[0].mxu0
  %v646 = vadd.f32 0.0, %v645
  %v647 = vpop.f32.mrb[0].mxu0
  %648 = vmatprep.mubr.bf16.mxu0 0
  %649 = vmatmul.mubr.bf16.gmra.mrb[0].mxu0 %v451
  %v650 = vpop.f32.mrb[0].mxu0
  %v651 = vadd.f32 0.0, %v650
  %v652 = vpop.f32.mrb[0].mxu0
  %v653 = vpop.f32.mrb[0].mxu0
  %v654 = vadd.f32 0.0, %v653
  %v655 = vpop.f32.mrb[0].mxu0
  %656 = vmatprep.mubr.bf16.mxu0 0
  %657 = vmatmul.mubr.bf16.gmra.mrb[0].mxu0 %v454
  %v658 = vpop.f32.mrb[0].mxu0
  %v659 = vadd.f32 0.0, %v658
  %v660 = vpop.f32.mrb[0].mxu0
  %v661 = vpop.f32.mrb[0].mxu0
  %v662 = vadd.f32 0.0, %v661
  %v663 = vpop.f32.mrb[0].mxu0
  %664 = vmatprep.mubr.bf16.mxu0 0
  %665 = vmatmul.mubr.bf16.gmra.mrb[0].mxu0 %v457
  %v666 = vpop.f32.mrb[0].mxu0
  %v667 = vadd.f32 0.0, %v666
  %v668 = vpop.f32.mrb[0].mxu0
  %v669 = vpop.f32.mrb[0].mxu0
  %v670 = vadd.f32 0.0, %v669
  %v671 = vpop.f32.mrb[0].mxu0
  %672 = vmatprep.mubr.bf16.mxu0 0
  %673 = vmatmul.mubr.bf16.gmra.mrb[0].mxu0 %v460
  %v674 = vpop.f32.mrb[0].mxu0
  %v675 = vadd.f32 0.0, %v674
  %v676 = vpop.f32.mrb[0].mxu0
  %v677 = vpop.f32.mrb[0].mxu0
  %v678 = vadd.f32 0.0, %v677
  %v679 = vpop.f32.mrb[0].mxu0
  %680 = vmatprep.mubr.bf16.mxu0 0
  %681 = vmatmul.mubr.bf16.gmra.mrb[0].mxu0 %v463
  %v682 = vpop.f32.mrb[0].mxu0
  %v683 = vadd.f32 0.0, %v682
  %v684 = vpop.f32.mrb[0].mxu0
  %v685 = vpop.f32.mrb[0].mxu0
  %v686 = vadd.f32 0.0, %v685
  %v687 = vpop.f32.mrb[0].mxu0
  %688 = vmatprep.mubr.bf16.mxu0 0
  %689 = vmatmul.mubr.bf16.gmra.mrb[0].mxu0 %v466
  %v690 = vpop.f32.mrb[0].mxu0
  %v691 = vadd.f32 0.0, %v690
  %v692 = vpop.f32.mrb[0].mxu0
  %v693 = vpop.f32.mrb[0].mxu0
  %v694 = vadd.f32 0.0, %v693
  %v695 = vpop.f32.mrb[0].mxu0
  %696 = vmatprep.mubr.bf16.mxu0 0
  %697 = vmatmul.mubr.bf16.gmra.mrb[0].mxu0 %v469
  %v698 = vpop.f32.mrb[0].mxu0
  %v699 = vadd.f32 0.0, %v698
  %v700 = vpop.f32.mrb[0].mxu0
  %v701 = vpop.f32.mrb[0].mxu0
  %v702 = vadd.f32 0.0, %v701
  %v703 = vpop.f32.mrb[0].mxu0
  %704 = vmatprep.mubr.bf16.mxu0 0
  %705 = vmatmul.mubr.bf16.gmra.mrb[0].mxu0 %v472
  %v706 = vpop.f32.mrb[0].mxu0
  %v707 = vadd.f32 0.0, %v706
  %v708 = vpop.f32.mrb[0].mxu0
  %v709 = vpop.f32.mrb[0].mxu0
  %v710 = vadd.f32 0.0, %v709
  %v711 = vpop.f32.mrb[0].mxu0
  %712 = vmatprep.mubr.bf16.mxu0 0
  %713 = vmatmul.mubr.bf16.gmra.mrb[0].mxu0 %v475
  %v714 = vpop.f32.mrb[0].mxu0
  %v715 = vadd.f32 0.0, %v714
  %v716 = vpop.f32.mrb[0].mxu0
  %v717 = vpop.f32.mrb[0].mxu0
  %v718 = vadd.f32 0.0, %v717
  %v719 = vpop.f32.mrb[0].mxu0
  %720 = vmatprep.mubr.bf16.mxu0 0
  %721 = vmatmul.mubr.bf16.gmra.mrb[0].mxu0 %v478
  %v722 = vpop.f32.mrb[0].mxu0
  %v723 = vadd.f32 0.0, %v722
  %v724 = vpop.f32.mrb[0].mxu0
  %v725 = vpop.f32.mrb[0].mxu0
  %v726 = vadd.f32 0.0, %v725
  %v727 = vpop.f32.mrb[0].mxu0
  %728 = vmatprep.mubr.bf16.mxu0 0
  %729 = vmatmul.mubr.bf16.gmra.mrb[0].mxu0 %v481
  %v730 = vpop.f32.mrb[0].mxu0
  %v731 = vadd.f32 0.0, %v730
  %v732 = vpop.f32.mrb[0].mxu0
  %v733 = vpop.f32.mrb[0].mxu0
  %v734 = vadd.f32 0.0, %v733
  %v735 = vpop.f32.mrb[0].mxu0
  %736 = vmatprep.mubr.bf16.mxu0 0
  %737 = vmatmul.mubr.bf16.gmra.mrb[0].mxu0 %v484
  %v738 = vpop.f32.mrb[0].mxu0
  %v739 = vadd.f32 0.0, %v738
  %v740 = vpop.f32.mrb[0].mxu0
  %v741 = vpop.f32.mrb[0].mxu0
  %v742 = vadd.f32 0.0, %v741
  %v743 = vpop.f32.mrb[0].mxu0
  %744 = vmatprep.mubr.bf16.mxu0 0
  %745 = vmatmul.mubr.bf16.gmra.mrb[0].mxu0 %v487
  %v746 = vpop.f32.mrb[0].mxu0
  %v747 = vadd.f32 0.0, %v746
  %v748 = vpop.f32.mrb[0].mxu0
  %v749 = vpop.f32.mrb[0].mxu0
  %v750 = vadd.f32 0.0, %v749
  %v751 = vpop.f32.mrb[0].mxu0
  %752 = vmatprep.mubr.bf16.mxu0 0
  %753 = vmatmul.mubr.bf16.gmra.mrb[0].mxu0 %v490
  %v754 = vpop.f32.mrb[0].mxu0
  %v755 = vadd.f32 0.0, %v754
  %v756 = vpop.f32.mrb[0].mxu0
  %v757 = vpop.f32.mrb[0].mxu0
  %v758 = vadd.f32 0.0, %v757
  %v759 = vpop.f32.mrb[0].mxu0
  %760 = vmatprep.mubr.bf16.mxu0 0
  %761 = vmatmul.mubr.bf16.gmra.mrb[0].mxu0 %v493
  %v762 = vpop.f32.mrb[0].mxu0
  %v763 = vadd.f32 0.0, %v762
  %v764 = vpop.f32.mrb[0].mxu0
  %v765 = vpop.f32.mrb[0].mxu0
  %v766 = vadd.f32 0.0, %v765
  %v767 = vpop.f32.mrb[0].mxu0
  %768 = vmatprep.mubr.bf16.mxu0 0
  %769 = vmatmul.mubr.bf16.gmra.mrb[0].mxu0 %v496
  %v770 = vpop.f32.mrb[0].mxu0
  %v771 = vadd.f32 0.0, %v770
  %v772 = vpop.f32.mrb[0].mxu0
  %v773 = vpop.f32.mrb[0].mxu0
  %v774 = vadd.f32 0.0, %v773
  %v775 = vpop.f32.mrb[0].mxu0
  %776 = vmatprep.mubr.bf16.mxu0 0
  %777 = vmatmul.mubr.bf16.gmra.mrb[0].mxu0 %v499
  %v778 = vpop.f32.mrb[0].mxu0
  %v779 = vadd.f32 0.0, %v778
  %v780 = vpop.f32.mrb[0].mxu0
  %v781 = vpop.f32.mrb[0].mxu0
  %v782 = vadd.f32 0.0, %v781
  %v783 = vpop.f32.mrb[0].mxu0
  %784 = vmatprep.mubr.bf16.mxu0 0
  %785 = vmatmul.mubr.bf16.gmra.mrb[0].mxu0 %v502
  %v786 = vpop.f32.mrb[0].mxu0
  %v787 = vadd.f32 0.0, %v786
  %v788 = vpop.f32.mrb[0].mxu0
  %v789 = vpop.f32.mrb[0].mxu0
  %v790 = vadd.f32 0.0, %v789
  %v791 = vpop.f32.mrb[0].mxu0
  %792 = vdwg.mxu0
  %v793 = vadd.f32 %v87, %v539
  %v794 = vadd.f32 %v88, %v542
  %v795 = vadd.f32 %v89, %v547
  %v796 = vadd.f32 %v90, %v550
  %v797 = vadd.f32 %v91, %v555
  %v798 = vadd.f32 %v92, %v558
  %v799 = vadd.f32 %v93, %v563
  %v800 = vadd.f32 %v94, %v566
  %v801 = vadd.f32 %v95, %v571
  %v802 = vadd.f32 %v96, %v574
  %v803 = vadd.f32 %v97, %v579
  %v804 = vadd.f32 %v98, %v582
  %v805 = vadd.f32 %v99, %v587
  %v806 = vadd.f32 %v100, %v590
  %v807 = vadd.f32 %v101, %v595
  %v808 = vadd.f32 %v102, %v598
  %v809 = vadd.f32 %v103, %v603
  %v810 = vadd.f32 %v104, %v606
  %v811 = vadd.f32 %v105, %v611
  %v812 = vadd.f32 %v106, %v614
  %v813 = vadd.f32 %v107, %v619
  %v814 = vadd.f32 %v108, %v622
  %v815 = vadd.f32 %v109, %v627
  %v816 = vadd.f32 %v110, %v630
  %v817 = vadd.f32 %v111, %v635
  %v818 = vadd.f32 %v112, %v638
  %v819 = vadd.f32 %v113, %v643
  %v820 = vadd.f32 %v114, %v646
  %v821 = vadd.f32 %v115, %v651
  %v822 = vadd.f32 %v116, %v654
  %v823 = vadd.f32 %v117, %v659
  %v824 = vadd.f32 %v118, %v662
  %v825 = vadd.f32 %v119, %v667
  %v826 = vadd.f32 %v120, %v670
  %v827 = vadd.f32 %v121, %v675
  %v828 = vadd.f32 %v122, %v678
  %v829 = vadd.f32 %v123, %v683
  %v830 = vadd.f32 %v124, %v686
  %v831 = vadd.f32 %v125, %v691
  %v832 = vadd.f32 %v126, %v694
  %v833 = vadd.f32 %v127, %v699
  %v834 = vadd.f32 %v128, %v702
  %v835 = vadd.f32 %v129, %v707
  %v836 = vadd.f32 %v130, %v710
  %v837 = vadd.f32 %v131, %v715
  %v838 = vadd.f32 %v132, %v718
  %v839 = vadd.f32 %v133, %v723
  %v840 = vadd.f32 %v134, %v726
  %v841 = vadd.f32 %v135, %v731
  %v842 = vadd.f32 %v136, %v734
  %v843 = vadd.f32 %v137, %v739
  %v844 = vadd.f32 %v138, %v742
  %v845 = vadd.f32 %v139, %v747
  %v846 = vadd.f32 %v140, %v750
  %v847 = vadd.f32 %v141, %v755
  %v848 = vadd.f32 %v142, %v758
  %v849 = vadd.f32 %v143, %v763
  %v850 = vadd.f32 %v144, %v766
  %v851 = vadd.f32 %v145, %v771
  %v852 = vadd.f32 %v146, %v774
  %v853 = vadd.f32 %v147, %v779
  %v854 = vadd.f32 %v148, %v782
  %v855 = vadd.f32 %v149, %v787
  %v856 = vadd.f32 %v150, %v790
  %vm857 = vcmask 261120
  %858 = vst.msk [vmem:[#allocation2] sm:$0xff] %vm857, %v793
  %859 = vst.msk [vmem:[#allocation2 + $0x8] sm:$0xff] %vm857, %v794
  %860 = vst.msk [vmem:[#allocation2 + $0x10] sm:$0xff] %vm857, %v795
  %861 = vst.msk [vmem:[#allocation2 + $0x18] sm:$0xff] %vm857, %v796
  %862 = vst.msk [vmem:[#allocation2 + $0x20] sm:$0xff] %vm857, %v797
  %863 = vst.msk [vmem:[#allocation2 + $0x28] sm:$0xff] %vm857, %v798
  %864 = vst.msk [vmem:[#allocation2 + $0x30] sm:$0xff] %vm857, %v799
  %865 = vst.msk [vmem:[#allocation2 + $0x38] sm:$0xff] %vm857, %v800
  %866 = vst.msk [vmem:[#allocation2 + $0x40] sm:$0xff] %vm857, %v801
  %867 = vst.msk [vmem:[#allocation2 + $0x48] sm:$0xff] %vm857, %v802
  %868 = vst.msk [vmem:[#allocation2 + $0x50] sm:$0xff] %vm857, %v803
  %869 = vst.msk [vmem:[#allocation2 + $0x58] sm:$0xff] %vm857, %v804
  %870 = vst.msk [vmem:[#allocation2 + $0x60] sm:$0xff] %vm857, %v805
  %871 = vst.msk [vmem:[#allocation2 + $0x68] sm:$0xff] %vm857, %v806
  %872 = vst.msk [vmem:[#allocation2 + $0x70] sm:$0xff] %vm857, %v807
  %873 = vst.msk [vmem:[#allocation2 + $0x78] sm:$0xff] %vm857, %v808
  %874 = vst.msk [vmem:[#allocation2 + $0x80] sm:$0xff] %vm857, %v809
  %875 = vst.msk [vmem:[#allocation2 + $0x88] sm:$0xff] %vm857, %v810
  %876 = vst.msk [vmem:[#allocation2 + $0x90] sm:$0xff] %vm857, %v811
  %877 = vst.msk [vmem:[#allocation2 + $0x98] sm:$0xff] %vm857, %v812
  %878 = vst.msk [vmem:[#allocation2 + $0xa0] sm:$0xff] %vm857, %v813
  %879 = vst.msk [vmem:[#allocation2 + $0xa8] sm:$0xff] %vm857, %v814
  %880 = vst.msk [vmem:[#allocation2 + $0xb0] sm:$0xff] %vm857, %v815
  %881 = vst.msk [vmem:[#allocation2 + $0xb8] sm:$0xff] %vm857, %v816
  %882 = vst.msk [vmem:[#allocation2 + $0xc0] sm:$0xff] %vm857, %v817
  %883 = vst.msk [vmem:[#allocation2 + $0xc8] sm:$0xff] %vm857, %v818
  %884 = vst.msk [vmem:[#allocation2 + $0xd0] sm:$0xff] %vm857, %v819
  %885 = vst.msk [vmem:[#allocation2 + $0xd8] sm:$0xff] %vm857, %v820
  %886 = vst.msk [vmem:[#allocation2 + $0xe0] sm:$0xff] %vm857, %v821
  %887 = vst.msk [vmem:[#allocation2 + $0xe8] sm:$0xff] %vm857, %v822
  %888 = vst.msk [vmem:[#allocation2 + $0xf0] sm:$0xff] %vm857, %v823
  %889 = vst.msk [vmem:[#allocation2 + $0xf8] sm:$0xff] %vm857, %v824
  %890 = vst.msk [vmem:[#allocation2 + $0x100] sm:$0xff] %vm857, %v825
  %891 = vst.msk [vmem:[#allocation2 + $0x108] sm:$0xff] %vm857, %v826
  %892 = vst.msk [vmem:[#allocation2 + $0x110] sm:$0xff] %vm857, %v827
  %893 = vst.msk [vmem:[#allocation2 + $0x118] sm:$0xff] %vm857, %v828
  %894 = vst.msk [vmem:[#allocation2 + $0x120] sm:$0xff] %vm857, %v829
  %895 = vst.msk [vmem:[#allocation2 + $0x128] sm:$0xff] %vm857, %v830
  %896 = vst.msk [vmem:[#allocation2 + $0x130] sm:$0xff] %vm857, %v831
  %897 = vst.msk [vmem:[#allocation2 + $0x138] sm:$0xff] %vm857, %v832
  %898 = vst.msk [vmem:[#allocation2 + $0x140] sm:$0xff] %vm857, %v833
  %899 = vst.msk [vmem:[#allocation2 + $0x148] sm:$0xff] %vm857, %v834
  %900 = vst.msk [vmem:[#allocation2 + $0x150] sm:$0xff] %vm857, %v835
  %901 = vst.msk [vmem:[#allocation2 + $0x158] sm:$0xff] %vm857, %v836
  %902 = vst.msk [vmem:[#allocation2 + $0x160] sm:$0xff] %vm857, %v837
  %903 = vst.msk [vmem:[#allocation2 + $0x168] sm:$0xff] %vm857, %v838
  %904 = vst.msk [vmem:[#allocation2 + $0x170] sm:$0xff] %vm857, %v839
  %905 = vst.msk [vmem:[#allocation2 + $0x178] sm:$0xff] %vm857, %v840
  %906 = vst.msk [vmem:[#allocation2 + $0x180] sm:$0xff] %vm857, %v841
  %907 = vst.msk [vmem:[#allocation2 + $0x188] sm:$0xff] %vm857, %v842
  %908 = vst.msk [vmem:[#allocation2 + $0x190] sm:$0xff] %vm857, %v843
  %909 = vst.msk [vmem:[#allocation2 + $0x198] sm:$0xff] %vm857, %v844
  %910 = vst.msk [vmem:[#allocation2 + $0x1a0] sm:$0xff] %vm857, %v845
  %911 = vst.msk [vmem:[#allocation2 + $0x1a8] sm:$0xff] %vm857, %v846
  %912 = vst.msk [vmem:[#allocation2 + $0x1b0] sm:$0xff] %vm857, %v847
  %913 = vst.msk [vmem:[#allocation2 + $0x1b8] sm:$0xff] %vm857, %v848
  %914 = vst.msk [vmem:[#allocation2 + $0x1c0] sm:$0xff] %vm857, %v849
  %915 = vst.msk [vmem:[#allocation2 + $0x1c8] sm:$0xff] %vm857, %v850
  %916 = vst.msk [vmem:[#allocation2 + $0x1d0] sm:$0xff] %vm857, %v851
  %917 = vst.msk [vmem:[#allocation2 + $0x1d8] sm:$0xff] %vm857, %v852
  %918 = vst.msk [vmem:[#allocation2 + $0x1e0] sm:$0xff] %vm857, %v853
  %919 = vst.msk [vmem:[#allocation2 + $0x1e8] sm:$0xff] %vm857, %v854
  %920 = vst.msk [vmem:[#allocation2 + $0x1f0] sm:$0xff] %vm857, %v855
  %921 = vst.msk [vmem:[#allocation2 + $0x1f8] sm:$0xff] %vm857, %v856
  // Predicated region
  $region22: #{_lambda_.4} parent=0 // pred_check
    %p922 = pneg %p18
  $region23: #{_lambda_.4} parent=0 // pred_check_branch
    %924 = sbr.rel (%p922) target = $region25
  $region24: #{_lambda_.4} parent=0 // pred_region
    %v925 = vld [vmem:[#allocation2] sm:$0xff]
    %v926 = vld [vmem:[#allocation2 + $0x8] sm:$0xff]
    %v927 = vld [vmem:[#allocation2 + $0x10] sm:$0xff]
    %v928 = vld [vmem:[#allocation2 + $0x18] sm:$0xff]
    %v929 = vld [vmem:[#allocation2 + $0x20] sm:$0xff]
    %v930 = vld [vmem:[#allocation2 + $0x28] sm:$0xff]
    %v931 = vld [vmem:[#allocation2 + $0x30] sm:$0xff]
    %v932 = vld [vmem:[#allocation2 + $0x38] sm:$0xff]
    %v933 = vld [vmem:[#allocation2 + $0x40] sm:$0xff]
    %v934 = vld [vmem:[#allocation2 + $0x48] sm:$0xff]
    %v935 = vld [vmem:[#allocation2 + $0x50] sm:$0xff]
    %v936 = vld [vmem:[#allocation2 + $0x58] sm:$0xff]
    %v937 = vld [vmem:[#allocation2 + $0x60] sm:$0xff]
    %v938 = vld [vmem:[#allocation2 + $0x68] sm:$0xff]
    %v939 = vld [vmem:[#allocation2 + $0x70] sm:$0xff]
    %v940 = vld [vmem:[#allocation2 + $0x78] sm:$0xff]
    %v941 = vld [vmem:[#allocation2 + $0x80] sm:$0xff]
    %v942 = vld [vmem:[#allocation2 + $0x88] sm:$0xff]
    %v943 = vld [vmem:[#allocation2 + $0x90] sm:$0xff]
    %v944 = vld [vmem:[#allocation2 + $0x98] sm:$0xff]
    %v945 = vld [vmem:[#allocation2 + $0xa0] sm:$0xff]
    %v946 = vld [vmem:[#allocation2 + $0xa8] sm:$0xff]
    %v947 = vld [vmem:[#allocation2 + $0xb0] sm:$0xff]
    %v948 = vld [vmem:[#allocation2 + $0xb8] sm:$0xff]
    %v949 = vld [vmem:[#allocation2 + $0xc0] sm:$0xff]
    %v950 = vld [vmem:[#allocation2 + $0xc8] sm:$0xff]
    %v951 = vld [vmem:[#allocation2 + $0xd0] sm:$0xff]
    %v952 = vld [vmem:[#allocation2 + $0xd8] sm:$0xff]
    %v953 = vld [vmem:[#allocation2 + $0xe0] sm:$0xff]
    %v954 = vld [vmem:[#allocation2 + $0xe8] sm:$0xff]
    %v955 = vld [vmem:[#allocation2 + $0xf0] sm:$0xff]
    %v956 = vld [vmem:[#allocation2 + $0xf8] sm:$0xff]
    %v957 = vld [vmem:[#allocation2 + $0x100] sm:$0xff]
    %v958 = vld [vmem:[#allocation2 + $0x108] sm:$0xff]
    %v959 = vld [vmem:[#allocation2 + $0x110] sm:$0xff]
    %v960 = vld [vmem:[#allocation2 + $0x118] sm:$0xff]
    %v961 = vld [vmem:[#allocation2 + $0x120] sm:$0xff]
    %v962 = vld [vmem:[#allocation2 + $0x128] sm:$0xff]
    %v963 = vld [vmem:[#allocation2 + $0x130] sm:$0xff]
    %v964 = vld [vmem:[#allocation2 + $0x138] sm:$0xff]
    %v965 = vld [vmem:[#allocation2 + $0x140] sm:$0xff]
    %v966 = vld [vmem:[#allocation2 + $0x148] sm:$0xff]
    %v967 = vld [vmem:[#allocation2 + $0x150] sm:$0xff]
    %v968 = vld [vmem:[#allocation2 + $0x158] sm:$0xff]
    %v969 = vld [vmem:[#allocation2 + $0x160] sm:$0xff]
    %v970 = vld [vmem:[#allocation2 + $0x168] sm:$0xff]
    %v971 = vld [vmem:[#allocation2 + $0x170] sm:$0xff]
    %v972 = vld [vmem:[#allocation2 + $0x178] sm:$0xff]
    %v973 = vld [vmem:[#allocation2 + $0x180] sm:$0xff]
    %v974 = vld [vmem:[#allocation2 + $0x188] sm:$0xff]
    %v975 = vld [vmem:[#allocation2 + $0x190] sm:$0xff]
    %v976 = vld [vmem:[#allocation2 + $0x198] sm:$0xff]
    %v977 = vld [vmem:[#allocation2 + $0x1a0] sm:$0xff]
    %v978 = vld [vmem:[#allocation2 + $0x1a8] sm:$0xff]
    %v979 = vld [vmem:[#allocation2 + $0x1b0] sm:$0xff]
    %v980 = vld [vmem:[#allocation2 + $0x1b8] sm:$0xff]
    %v981 = vld [vmem:[#allocation2 + $0x1c0] sm:$0xff]
    %v982 = vld [vmem:[#allocation2 + $0x1c8] sm:$0xff]
    %v983 = vld [vmem:[#allocation2 + $0x1d0] sm:$0xff]
    %v984 = vld [vmem:[#allocation2 + $0x1d8] sm:$0xff]
    %v985 = vld [vmem:[#allocation2 + $0x1e0] sm:$0xff]
    %v986 = vld [vmem:[#allocation2 + $0x1e8] sm:$0xff]
    %v987 = vld [vmem:[#allocation2 + $0x1f0] sm:$0xff]
    %v988 = vld [vmem:[#allocation2 + $0x1f8] sm:$0xff]
    %v989 = vld [vmem:[%s2] sm:$0x1]
    %v991 = vlaneseq
    %v992 = vshrl.u32 %v991, 7
    %v993 = vsub.s32 0, %v992
    %v994 = vrot.slane %v989, %v993
    %v996 = vmul.f32 %v925, %v994
    %v997 = vmul.f32 %v926, %v994
    %v998 = vmul.f32 %v927, %v994
    %v999 = vmul.f32 %v928, %v994
    %v1000 = vmul.f32 %v929, %v994
    %v1001 = vmul.f32 %v930, %v994
    %v1002 = vmul.f32 %v931, %v994
    %v1003 = vmul.f32 %v932, %v994
    %v1004 = vmul.f32 %v933, %v994
    %v1005 = vmul.f32 %v934, %v994
    %v1006 = vmul.f32 %v935, %v994
    %v1007 = vmul.f32 %v936, %v994
    %v1008 = vmul.f32 %v937, %v994
    %v1009 = vmul.f32 %v938, %v994
    %v1010 = vmul.f32 %v939, %v994
    %v1011 = vmul.f32 %v940, %v994
    %v1012 = vmul.f32 %v941, %v994
    %v1013 = vmul.f32 %v942, %v994
    %v1014 = vmul.f32 %v943, %v994
    %v1015 = vmul.f32 %v944, %v994
    %v1016 = vmul.f32 %v945, %v994
    %v1017 = vmul.f32 %v946, %v994
    %v1018 = vmul.f32 %v947, %v994
    %v1019 = vmul.f32 %v948, %v994
    %v1020 = vmul.f32 %v949, %v994
    %v1021 = vmul.f32 %v950, %v994
    %v1022 = vmul.f32 %v951, %v994
    %v1023 = vmul.f32 %v952, %v994
    %v1024 = vmul.f32 %v953, %v994
    %v1025 = vmul.f32 %v954, %v994
    %v1026 = vmul.f32 %v955, %v994
    %v1027 = vmul.f32 %v956, %v994
    %v1028 = vmul.f32 %v957, %v994
    %v1029 = vmul.f32 %v958, %v994
    %v1030 = vmul.f32 %v959, %v994
    %v1031 = vmul.f32 %v960, %v994
    %v1032 = vmul.f32 %v961, %v994
    %v1033 = vmul.f32 %v962, %v994
    %v1034 = vmul.f32 %v963, %v994
    %v1035 = vmul.f32 %v964, %v994
    %v1036 = vmul.f32 %v965, %v994
    %v1037 = vmul.f32 %v966, %v994
    %v1038 = vmul.f32 %v967, %v994
    %v1039 = vmul.f32 %v968, %v994
    %v1040 = vmul.f32 %v969, %v994
    %v1041 = vmul.f32 %v970, %v994
    %v1042 = vmul.f32 %v971, %v994
    %v1043 = vmul.f32 %v972, %v994
    %v1044 = vmul.f32 %v973, %v994
    %v1045 = vmul.f32 %v974, %v994
    %v1046 = vmul.f32 %v975, %v994
    %v1047 = vmul.f32 %v976, %v994
    %v1048 = vmul.f32 %v977, %v994
    %v1049 = vmul.f32 %v978, %v994
    %v1050 = vmul.f32 %v979, %v994
    %v1051 = vmul.f32 %v980, %v994
    %v1052 = vmul.f32 %v981, %v994
    %v1053 = vmul.f32 %v982, %v994
    %v1054 = vmul.f32 %v983, %v994
    %v1055 = vmul.f32 %v984, %v994
    %v1056 = vmul.f32 %v985, %v994
    %v1057 = vmul.f32 %v986, %v994
    %v1058 = vmul.f32 %v987, %v994
    %v1059 = vmul.f32 %v988, %v994
    %v1060 = vld [vmem:[%s3] sm:$0x1]
    %v1062 = vlaneseq
    %v1063 = vshrl.u32 %v1062, 7
    %v1064 = vsub.s32 0, %v1063
    %v1065 = vrot.slane %v1060, %v1064
    %v1067 = vadd.f32 %v996, %v1065
    %v1068 = vadd.f32 %v997, %v1065
    %v1069 = vadd.f32 %v998, %v1065
    %v1070 = vadd.f32 %v999, %v1065
    %v1071 = vadd.f32 %v1000, %v1065
    %v1072 = vadd.f32 %v1001, %v1065
    %v1073 = vadd.f32 %v1002, %v1065
    %v1074 = vadd.f32 %v1003, %v1065
    %v1075 = vadd.f32 %v1004, %v1065
    %v1076 = vadd.f32 %v1005, %v1065
    %v1077 = vadd.f32 %v1006, %v1065
    %v1078 = vadd.f32 %v1007, %v1065
    %v1079 = vadd.f32 %v1008, %v1065
    %v1080 = vadd.f32 %v1009, %v1065
    %v1081 = vadd.f32 %v1010, %v1065
    %v1082 = vadd.f32 %v1011, %v1065
    %v1083 = vadd.f32 %v1012, %v1065
    %v1084 = vadd.f32 %v1013, %v1065
    %v1085 = vadd.f32 %v1014, %v1065
    %v1086 = vadd.f32 %v1015, %v1065
    %v1087 = vadd.f32 %v1016, %v1065
    %v1088 = vadd.f32 %v1017, %v1065
    %v1089 = vadd.f32 %v1018, %v1065
    %v1090 = vadd.f32 %v1019, %v1065
    %v1091 = vadd.f32 %v1020, %v1065
    %v1092 = vadd.f32 %v1021, %v1065
    %v1093 = vadd.f32 %v1022, %v1065
    %v1094 = vadd.f32 %v1023, %v1065
    %v1095 = vadd.f32 %v1024, %v1065
    %v1096 = vadd.f32 %v1025, %v1065
    %v1097 = vadd.f32 %v1026, %v1065
    %v1098 = vadd.f32 %v1027, %v1065
    %v1099 = vadd.f32 %v1028, %v1065
    %v1100 = vadd.f32 %v1029, %v1065
    %v1101 = vadd.f32 %v1030, %v1065
    %v1102 = vadd.f32 %v1031, %v1065
    %v1103 = vadd.f32 %v1032, %v1065
    %v1104 = vadd.f32 %v1033, %v1065
    %v1105 = vadd.f32 %v1034, %v1065
    %v1106 = vadd.f32 %v1035, %v1065
    %v1107 = vadd.f32 %v1036, %v1065
    %v1108 = vadd.f32 %v1037, %v1065
    %v1109 = vadd.f32 %v1038, %v1065
    %v1110 = vadd.f32 %v1039, %v1065
    %v1111 = vadd.f32 %v1040, %v1065
    %v1112 = vadd.f32 %v1041, %v1065
    %v1113 = vadd.f32 %v1042, %v1065
    %v1114 = vadd.f32 %v1043, %v1065
    %v1115 = vadd.f32 %v1044, %v1065
    %v1116 = vadd.f32 %v1045, %v1065
    %v1117 = vadd.f32 %v1046, %v1065
    %v1118 = vadd.f32 %v1047, %v1065
    %v1119 = vadd.f32 %v1048, %v1065
    %v1120 = vadd.f32 %v1049, %v1065
    %v1121 = vadd.f32 %v1050, %v1065
    %v1122 = vadd.f32 %v1051, %v1065
    %v1123 = vadd.f32 %v1052, %v1065
    %v1124 = vadd.f32 %v1053, %v1065
    %v1125 = vadd.f32 %v1054, %v1065
    %v1126 = vadd.f32 %v1055, %v1065
    %v1127 = vadd.f32 %v1056, %v1065
    %v1128 = vadd.f32 %v1057, %v1065
    %v1129 = vadd.f32 %v1058, %v1065
    %v1130 = vadd.f32 %v1059, %v1065
    %v1131 = vmax.f32 %v1067, 0.0
    %v1132 = vmax.f32 %v1068, 0.0
    %v1133 = vmax.f32 %v1069, 0.0
    %v1134 = vmax.f32 %v1070, 0.0
    %v1135 = vmax.f32 %v1071, 0.0
    %v1136 = vmax.f32 %v1072, 0.0
    %v1137 = vmax.f32 %v1073, 0.0
    %v1138 = vmax.f32 %v1074, 0.0
    %v1139 = vmax.f32 %v1075, 0.0
    %v1140 = vmax.f32 %v1076, 0.0
    %v1141 = vmax.f32 %v1077, 0.0
    %v1142 = vmax.f32 %v1078, 0.0
    %v1143 = vmax.f32 %v1079, 0.0
    %v1144 = vmax.f32 %v1080, 0.0
    %v1145 = vmax.f32 %v1081, 0.0
    %v1146 = vmax.f32 %v1082, 0.0
    %v1147 = vmax.f32 %v1083, 0.0
    %v1148 = vmax.f32 %v1084, 0.0
    %v1149 = vmax.f32 %v1085, 0.0
    %v1150 = vmax.f32 %v1086, 0.0
    %v1151 = vmax.f32 %v1087, 0.0
    %v1152 = vmax.f32 %v1088, 0.0
    %v1153 = vmax.f32 %v1089, 0.0
    %v1154 = vmax.f32 %v1090, 0.0
    %v1155 = vmax.f32 %v1091, 0.0
    %v1156 = vmax.f32 %v1092, 0.0
    %v1157 = vmax.f32 %v1093, 0.0
    %v1158 = vmax.f32 %v1094, 0.0
    %v1159 = vmax.f32 %v1095, 0.0
    %v1160 = vmax.f32 %v1096, 0.0
    %v1161 = vmax.f32 %v1097, 0.0
    %v1162 = vmax.f32 %v1098, 0.0
    %v1163 = vmax.f32 %v1099, 0.0
    %v1164 = vmax.f32 %v1100, 0.0
    %v1165 = vmax.f32 %v1101, 0.0
    %v1166 = vmax.f32 %v1102, 0.0
    %v1167 = vmax.f32 %v1103, 0.0
    %v1168 = vmax.f32 %v1104, 0.0
    %v1169 = vmax.f32 %v1105, 0.0
    %v1170 = vmax.f32 %v1106, 0.0
    %v1171 = vmax.f32 %v1107, 0.0
    %v1172 = vmax.f32 %v1108, 0.0
    %v1173 = vmax.f32 %v1109, 0.0
    %v1174 = vmax.f32 %v1110, 0.0
    %v1175 = vmax.f32 %v1111, 0.0
    %v1176 = vmax.f32 %v1112, 0.0
    %v1177 = vmax.f32 %v1113, 0.0
    %v1178 = vmax.f32 %v1114, 0.0
    %v1179 = vmax.f32 %v1115, 0.0
    %v1180 = vmax.f32 %v1116, 0.0
    %v1181 = vmax.f32 %v1117, 0.0
    %v1182 = vmax.f32 %v1118, 0.0
    %v1183 = vmax.f32 %v1119, 0.0
    %v1184 = vmax.f32 %v1120, 0.0
    %v1185 = vmax.f32 %v1121, 0.0
    %v1186 = vmax.f32 %v1122, 0.0
    %v1187 = vmax.f32 %v1123, 0.0
    %v1188 = vmax.f32 %v1124, 0.0
    %v1189 = vmax.f32 %v1125, 0.0
    %v1190 = vmax.f32 %v1126, 0.0
    %v1191 = vmax.f32 %v1127, 0.0
    %v1192 = vmax.f32 %v1128, 0.0
    %v1193 = vmax.f32 %v1129, 0.0
    %v1194 = vmax.f32 %v1130, 0.0
    %v1195 = vpack.c.bf16 %v1132, %v1131
    %v1196 = vpack.c.bf16 %v1134, %v1133
    %v1197 = vpack.c.bf16 %v1136, %v1135
    %v1198 = vpack.c.bf16 %v1138, %v1137
    %v1199 = vpack.c.bf16 %v1140, %v1139
    %v1200 = vpack.c.bf16 %v1142, %v1141
    %v1201 = vpack.c.bf16 %v1144, %v1143
    %v1202 = vpack.c.bf16 %v1146, %v1145
    %v1203 = vpack.c.bf16 %v1148, %v1147
    %v1204 = vpack.c.bf16 %v1150, %v1149
    %v1205 = vpack.c.bf16 %v1152, %v1151
    %v1206 = vpack.c.bf16 %v1154, %v1153
    %v1207 = vpack.c.bf16 %v1156, %v1155
    %v1208 = vpack.c.bf16 %v1158, %v1157
    %v1209 = vpack.c.bf16 %v1160, %v1159
    %v1210 = vpack.c.bf16 %v1162, %v1161
    %v1211 = vpack.c.bf16 %v1164, %v1163
    %v1212 = vpack.c.bf16 %v1166, %v1165
    %v1213 = vpack.c.bf16 %v1168, %v1167
    %v1214 = vpack.c.bf16 %v1170, %v1169
    %v1215 = vpack.c.bf16 %v1172, %v1171
    %v1216 = vpack.c.bf16 %v1174, %v1173
    %v1217 = vpack.c.bf16 %v1176, %v1175
    %v1218 = vpack.c.bf16 %v1178, %v1177
    %v1219 = vpack.c.bf16 %v1180, %v1179
    %v1220 = vpack.c.bf16 %v1182, %v1181
    %v1221 = vpack.c.bf16 %v1184, %v1183
    %v1222 = vpack.c.bf16 %v1186, %v1185
    %v1223 = vpack.c.bf16 %v1188, %v1187
    %v1224 = vpack.c.bf16 %v1190, %v1189
    %v1225 = vpack.c.bf16 %v1192, %v1191
    %v1226 = vpack.c.bf16 %v1194, %v1193
    %v1259 = vunpack.c.l.b16 %v1195
    %v1260 = vunpack.c.h.b16 %v1195
    %v1261 = vunpack.c.l.b16 %v1196
    %v1262 = vunpack.c.h.b16 %v1196
    %v1263 = vunpack.c.l.b16 %v1197
    %v1264 = vunpack.c.h.b16 %v1197
    %v1265 = vunpack.c.l.b16 %v1198
    %v1266 = vunpack.c.h.b16 %v1198
    %v1267 = vunpack.c.l.b16 %v1199
    %v1268 = vunpack.c.h.b16 %v1199
    %v1269 = vunpack.c.l.b16 %v1200
    %v1270 = vunpack.c.h.b16 %v1200
    %v1271 = vunpack.c.l.b16 %v1201
    %v1272 = vunpack.c.h.b16 %v1201
    %v1273 = vunpack.c.l.b16 %v1202
    %v1274 = vunpack.c.h.b16 %v1202
    %v1275 = vunpack.c.l.b16 %v1203
    %v1276 = vunpack.c.h.b16 %v1203
    %v1277 = vunpack.c.l.b16 %v1204
    %v1278 = vunpack.c.h.b16 %v1204
    %v1279 = vunpack.c.l.b16 %v1205
    %v1280 = vunpack.c.h.b16 %v1205
    %v1281 = vunpack.c.l.b16 %v1206
    %v1282 = vunpack.c.h.b16 %v1206
    %v1283 = vunpack.c.l.b16 %v1207
    %v1284 = vunpack.c.h.b16 %v1207
    %v1285 = vunpack.c.l.b16 %v1208
    %v1286 = vunpack.c.h.b16 %v1208
    %v1287 = vunpack.c.l.b16 %v1209
    %v1288 = vunpack.c.h.b16 %v1209
    %v1289 = vunpack.c.l.b16 %v1210
    %v1290 = vunpack.c.h.b16 %v1210
    %v1291 = vunpack.c.l.b16 %v1211
    %v1292 = vunpack.c.h.b16 %v1211
    %v1293 = vunpack.c.l.b16 %v1212
    %v1294 = vunpack.c.h.b16 %v1212
    %v1295 = vunpack.c.l.b16 %v1213
    %v1296 = vunpack.c.h.b16 %v1213
    %v1297 = vunpack.c.l.b16 %v1214
    %v1298 = vunpack.c.h.b16 %v1214
    %v1299 = vunpack.c.l.b16 %v1215
    %v1300 = vunpack.c.h.b16 %v1215
    %v1301 = vunpack.c.l.b16 %v1216
    %v1302 = vunpack.c.h.b16 %v1216
    %v1303 = vunpack.c.l.b16 %v1217
    %v1304 = vunpack.c.h.b16 %v1217
    %v1305 = vunpack.c.l.b16 %v1218
    %v1306 = vunpack.c.h.b16 %v1218
    %v1307 = vunpack.c.l.b16 %v1219
    %v1308 = vunpack.c.h.b16 %v1219
    %v1309 = vunpack.c.l.b16 %v1220
    %v1310 = vunpack.c.h.b16 %v1220
    %v1311 = vunpack.c.l.b16 %v1221
    %v1312 = vunpack.c.h.b16 %v1221
    %v1313 = vunpack.c.l.b16 %v1222
    %v1314 = vunpack.c.h.b16 %v1222
    %v1315 = vunpack.c.l.b16 %v1223
    %v1316 = vunpack.c.h.b16 %v1223
    %v1317 = vunpack.c.l.b16 %v1224
    %v1318 = vunpack.c.h.b16 %v1224
    %v1319 = vunpack.c.l.b16 %v1225
    %v1320 = vunpack.c.h.b16 %v1225
    %v1321 = vunpack.c.l.b16 %v1226
    %v1322 = vunpack.c.h.b16 %v1226
    %v1323 = vpack.c.b16 %v1259, %v1259
    %v1324 = vpack.c.b16 %v1260, %v1260
    %v1325 = vpack.c.b16 %v1261, %v1261
    %v1326 = vpack.c.b16 %v1262, %v1262
    %v1327 = vpack.c.b16 %v1263, %v1263
    %v1328 = vpack.c.b16 %v1264, %v1264
    %v1329 = vpack.c.b16 %v1265, %v1265
    %v1330 = vpack.c.b16 %v1266, %v1266
    %v1331 = vpack.c.b16 %v1267, %v1267
    %v1332 = vpack.c.b16 %v1268, %v1268
    %v1333 = vpack.c.b16 %v1269, %v1269
    %v1334 = vpack.c.b16 %v1270, %v1270
    %v1335 = vpack.c.b16 %v1271, %v1271
    %v1336 = vpack.c.b16 %v1272, %v1272
    %v1337 = vpack.c.b16 %v1273, %v1273
    %v1338 = vpack.c.b16 %v1274, %v1274
    %v1339 = vpack.c.b16 %v1275, %v1275
    %v1340 = vpack.c.b16 %v1276, %v1276
    %v1341 = vpack.c.b16 %v1277, %v1277
    %v1342 = vpack.c.b16 %v1278, %v1278
    %v1343 = vpack.c.b16 %v1279, %v1279
    %v1344 = vpack.c.b16 %v1280, %v1280
    %v1345 = vpack.c.b16 %v1281, %v1281
    %v1346 = vpack.c.b16 %v1282, %v1282
    %v1347 = vpack.c.b16 %v1283, %v1283
    %v1348 = vpack.c.b16 %v1284, %v1284
    %v1349 = vpack.c.b16 %v1285, %v1285
    %v1350 = vpack.c.b16 %v1286, %v1286
    %v1351 = vpack.c.b16 %v1287, %v1287
    %v1352 = vpack.c.b16 %v1288, %v1288
    %v1353 = vpack.c.b16 %v1289, %v1289
    %v1354 = vpack.c.b16 %v1290, %v1290
    %v1355 = vpack.c.b16 %v1291, %v1291
    %v1356 = vpack.c.b16 %v1292, %v1292
    %v1357 = vpack.c.b16 %v1293, %v1293
    %v1358 = vpack.c.b16 %v1294, %v1294
    %v1359 = vpack.c.b16 %v1295, %v1295
    %v1360 = vpack.c.b16 %v1296, %v1296
    %v1361 = vpack.c.b16 %v1297, %v1297
    %v1362 = vpack.c.b16 %v1298, %v1298
    %v1363 = vpack.c.b16 %v1299, %v1299
    %v1364 = vpack.c.b16 %v1300, %v1300
    %v1365 = vpack.c.b16 %v1301, %v1301
    %v1366 = vpack.c.b16 %v1302, %v1302
    %v1367 = vpack.c.b16 %v1303, %v1303
    %v1368 = vpack.c.b16 %v1304, %v1304
    %v1369 = vpack.c.b16 %v1305, %v1305
    %v1370 = vpack.c.b16 %v1306, %v1306
    %v1371 = vpack.c.b16 %v1307, %v1307
    %v1372 = vpack.c.b16 %v1308, %v1308
    %v1373 = vpack.c.b16 %v1309, %v1309
    %v1374 = vpack.c.b16 %v1310, %v1310
    %v1375 = vpack.c.b16 %v1311, %v1311
    %v1376 = vpack.c.b16 %v1312, %v1312
    %v1377 = vpack.c.b16 %v1313, %v1313
    %v1378 = vpack.c.b16 %v1314, %v1314
    %v1379 = vpack.c.b16 %v1315, %v1315
    %v1380 = vpack.c.b16 %v1316, %v1316
    %v1381 = vpack.c.b16 %v1317, %v1317
    %v1382 = vpack.c.b16 %v1318, %v1318
    %v1383 = vpack.c.b16 %v1319, %v1319
    %v1384 = vpack.c.b16 %v1320, %v1320
    %v1385 = vpack.c.b16 %v1321, %v1321
    %v1386 = vpack.c.b16 %v1322, %v1322
    %vm1451 = vcmask 257024
    %1452 = vst.msk [vmem:[%s4] sm:$0xf] %vm1451, %v1323
    %1453 = vst.msk [vmem:[%s4 + $0x4] sm:$0xf] %vm1451, %v1324
    %1454 = vst.msk [vmem:[%s4 + $0x8] sm:$0xf] %vm1451, %v1325
    %1455 = vst.msk [vmem:[%s4 + $0xc] sm:$0xf] %vm1451, %v1326
    %1456 = vst.msk [vmem:[%s4 + $0x10] sm:$0xf] %vm1451, %v1327
    %1457 = vst.msk [vmem:[%s4 + $0x14] sm:$0xf] %vm1451, %v1328
    %1458 = vst.msk [vmem:[%s4 + $0x18] sm:$0xf] %vm1451, %v1329
    %1459 = vst.msk [vmem:[%s4 + $0x1c] sm:$0xf] %vm1451, %v1330
    %1460 = vst.msk [vmem:[%s4 + $0x20] sm:$0xf] %vm1451, %v1331
    %1461 = vst.msk [vmem:[%s4 + $0x24] sm:$0xf] %vm1451, %v1332
    %1462 = vst.msk [vmem:[%s4 + $0x28] sm:$0xf] %vm1451, %v1333
    %1463 = vst.msk [vmem:[%s4 + $0x2c] sm:$0xf] %vm1451, %v1334
    %1464 = vst.msk [vmem:[%s4 + $0x30] sm:$0xf] %vm1451, %v1335
    %1465 = vst.msk [vmem:[%s4 + $0x34] sm:$0xf] %vm1451, %v1336
    %1466 = vst.msk [vmem:[%s4 + $0x38] sm:$0xf] %vm1451, %v1337
    %1467 = vst.msk [vmem:[%s4 + $0x3c] sm:$0xf] %vm1451, %v1338
    %1468 = vst.msk [vmem:[%s4 + $0x40] sm:$0xf] %vm1451, %v1339
    %1469 = vst.msk [vmem:[%s4 + $0x44] sm:$0xf] %vm1451, %v1340
    %1470 = vst.msk [vmem:[%s4 + $0x48] sm:$0xf] %vm1451, %v1341
    %1471 = vst.msk [vmem:[%s4 + $0x4c] sm:$0xf] %vm1451, %v1342
    %1472 = vst.msk [vmem:[%s4 + $0x50] sm:$0xf] %vm1451, %v1343
    %1473 = vst.msk [vmem:[%s4 + $0x54] sm:$0xf] %vm1451, %v1344
    %1474 = vst.msk [vmem:[%s4 + $0x58] sm:$0xf] %vm1451, %v1345
    %1475 = vst.msk [vmem:[%s4 + $0x5c] sm:$0xf] %vm1451, %v1346
    %1476 = vst.msk [vmem:[%s4 + $0x60] sm:$0xf] %vm1451, %v1347
    %1477 = vst.msk [vmem:[%s4 + $0x64] sm:$0xf] %vm1451, %v1348
    %1478 = vst.msk [vmem:[%s4 + $0x68] sm:$0xf] %vm1451, %v1349
    %1479 = vst.msk [vmem:[%s4 + $0x6c] sm:$0xf] %vm1451, %v1350
    %1480 = vst.msk [vmem:[%s4 + $0x70] sm:$0xf] %vm1451, %v1351
    %1481 = vst.msk [vmem:[%s4 + $0x74] sm:$0xf] %vm1451, %v1352
    %1482 = vst.msk [vmem:[%s4 + $0x78] sm:$0xf] %vm1451, %v1353
    %1483 = vst.msk [vmem:[%s4 + $0x7c] sm:$0xf] %vm1451, %v1354
    %1484 = vst.msk [vmem:[%s4 + $0x80] sm:$0xf] %vm1451, %v1355
    %1485 = vst.msk [vmem:[%s4 + $0x84] sm:$0xf] %vm1451, %v1356
    %1486 = vst.msk [vmem:[%s4 + $0x88] sm:$0xf] %vm1451, %v1357
    %1487 = vst.msk [vmem:[%s4 + $0x8c] sm:$0xf] %vm1451, %v1358
    %1488 = vst.msk [vmem:[%s4 + $0x90] sm:$0xf] %vm1451, %v1359
    %1489 = vst.msk [vmem:[%s4 + $0x94] sm:$0xf] %vm1451, %v1360
    %1490 = vst.msk [vmem:[%s4 + $0x98] sm:$0xf] %vm1451, %v1361
    %1491 = vst.msk [vmem:[%s4 + $0x9c] sm:$0xf] %vm1451, %v1362
    %1492 = vst.msk [vmem:[%s4 + $0xa0] sm:$0xf] %vm1451, %v1363
    %1493 = vst.msk [vmem:[%s4 + $0xa4] sm:$0xf] %vm1451, %v1364
    %1494 = vst.msk [vmem:[%s4 + $0xa8] sm:$0xf] %vm1451, %v1365
    %1495 = vst.msk [vmem:[%s4 + $0xac] sm:$0xf] %vm1451, %v1366
    %1496 = vst.msk [vmem:[%s4 + $0xb0] sm:$0xf] %vm1451, %v1367
    %1497 = vst.msk [vmem:[%s4 + $0xb4] sm:$0xf] %vm1451, %v1368
    %1498 = vst.msk [vmem:[%s4 + $0xb8] sm:$0xf] %vm1451, %v1369
    %1499 = vst.msk [vmem:[%s4 + $0xbc] sm:$0xf] %vm1451, %v1370
    %1500 = vst.msk [vmem:[%s4 + $0xc0] sm:$0xf] %vm1451, %v1371
    %1501 = vst.msk [vmem:[%s4 + $0xc4] sm:$0xf] %vm1451, %v1372
    %1502 = vst.msk [vmem:[%s4 + $0xc8] sm:$0xf] %vm1451, %v1373
    %1503 = vst.msk [vmem:[%s4 + $0xcc] sm:$0xf] %vm1451, %v1374
    %1504 = vst.msk [vmem:[%s4 + $0xd0] sm:$0xf] %vm1451, %v1375
    %1505 = vst.msk [vmem:[%s4 + $0xd4] sm:$0xf] %vm1451, %v1376
    %1506 = vst.msk [vmem:[%s4 + $0xd8] sm:$0xf] %vm1451, %v1377
    %1507 = vst.msk [vmem:[%s4 + $0xdc] sm:$0xf] %vm1451, %v1378
    %1508 = vst.msk [vmem:[%s4 + $0xe0] sm:$0xf] %vm1451, %v1379
    %1509 = vst.msk [vmem:[%s4 + $0xe4] sm:$0xf] %vm1451, %v1380
    %1510 = vst.msk [vmem:[%s4 + $0xe8] sm:$0xf] %vm1451, %v1381
    %1511 = vst.msk [vmem:[%s4 + $0xec] sm:$0xf] %vm1451, %v1382
    %1512 = vst.msk [vmem:[%s4 + $0xf0] sm:$0xf] %vm1451, %v1383
    %1513 = vst.msk [vmem:[%s4 + $0xf4] sm:$0xf] %vm1451, %v1384
    %1514 = vst.msk [vmem:[%s4 + $0xf8] sm:$0xf] %vm1451, %v1385
    %1515 = vst.msk [vmem:[%s4 + $0xfc] sm:$0xf] %vm1451, %v1386
  $region25: #{_lambda_.4} parent=0 // pred_fallthru
    _
  // Predicated region
  $region26: #{_lambda_.4} parent=0 // pred_check
    _
  $region27: #{_lambda_.4} parent=0 // pred_check_branch
    %1517 = sbr.rel (0) target = $region29
  $region28: #{_lambda_.4} parent=0 // pred_region
    _
  $region29: #{_lambda_.4} parent=0 // pred_fallthru
    _
  // Predicated region
  $region30: #{_lambda_.4} parent=0 // pred_check
    _
  $region31: #{_lambda_.4} parent=0 // pred_check_branch
    %1519 = sbr.rel (0) target = $region33
  $region32: #{_lambda_.4} parent=0 // pred_region
    _
  $region33: #{_lambda_.4} parent=0 // pred_fallthru
    _

// kernel: _lambda_.6
$region0: #{_lambda_.6}
  #allocation0 [shape = 'u32[]', space=smem, size = 0x4, offset = 0x4, fixed_abs, tag = 'smem constant byte address 0x4 - core index']
  #allocation1 [shape = 'u32[144,128]{1,0:T(1,128)}', space=vmem, size = 0x12000, scoped, tag = 'internal scratch']
  %s0 = inlined_call_operand.vmem [shape: bf16[16,2,8,128], index: 0, kind: input, shape index: {}]
  %s1 = inlined_call_operand.vmem [shape: bf16[128,128], index: 1, kind: input, shape index: {}]
  %s2 = inlined_call_operand.vmem [shape: f32[1,128], index: 2, kind: input, shape index: {}]
  %s3 = inlined_call_operand.vmem [shape: f32[1,128], index: 3, kind: input, shape index: {}]
  %s4 = inlined_call_operand.vmem [shape: bf16[128,128], index: 4, kind: output, shape index: {}]
  %s5 = sld [smem:[#allocation0]]
  $region67: #{_lambda_.6} parent=0
    _
  %s7 = ssub.s32 1, %s5
  %s8 = scalar_select 0, %s7, %s5
  $region1: #{_lambda_.6} parent=0
    #allocation2 [shape = 'u8[32768]{0}', space=vmem, size = 0x8000, scoped, tag = 'input window, operand 0, single buffered']
    // Predicated region
    $region2: #{_lambda_.6} parent=1 // pred_check
      _
    $region3: #{_lambda_.6} parent=1 // pred_check_branch
      %10 = sbr.rel (0) target = $region5
    $region4: #{_lambda_.6} parent=1 // pred_region
      // Predicated region
      $region6: #{_lambda_.6} parent=4 // pred_check
        _
      $region7: #{_lambda_.6} parent=4 // pred_check_branch
        %12 = sbr.rel (0) target = $region9
      $region8: #{_lambda_.6} parent=4 // pred_region
        // Predicated region
        $region10: #{_lambda_.6} parent=8 // pred_check
          _
        $region11: #{_lambda_.6} parent=8 // pred_check_branch
          %14 = sbr.rel target = $region13
        $region12: #{_lambda_.6} parent=8 // pred_region
          // Predicated region
          $region25: #{_lambda_.6} parent=12 // pred_check
            _
          $region26: #{_lambda_.6} parent=12 // pred_check_branch
            %59 = sbr.rel (0) target = $region28
          $region27: #{_lambda_.6} parent=12 // pred_region
            loop: start=0, step=1, limit=1
            $region29: #{_lambda_.6} parent=27 // loop_pre_header
              _
            $region30: #{_lambda_.6} parent=27 // loop_header
              %s61 = sphi 0, %s65
              %p62 = scmp.ge.s32.totalorder %s61, 1
              %s66 = sphi %s0, %s0
              %s67 = sphi [#allocation2], [#allocation2]
            $region31: #{_lambda_.6} parent=27 // loop_header_branch
              %64 = sbr.rel (%p62) target = $region35
            $region32: #{_lambda_.6} parent=27 // loop_body
              _
            $region33: #{_lambda_.6} parent=27 // loop_footer
              %s65 = sadd.s32 1, %s61
            $region34: #{_lambda_.6} parent=27 // loop_footer_branch
              %60 = sbr.rel target = $region30
            $region35: #{_lambda_.6} parent=27 // loop_exit
              _
            loop: start=0, step=1, limit=1
            $region36: #{_lambda_.6} parent=27 // loop_pre_header
              _
            $region37: #{_lambda_.6} parent=27 // loop_header
              %s70 = sphi 0, %s74
              %p71 = scmp.ge.s32.totalorder %s70, 1
              %s75 = sphi %s0, %s0
              %s76 = sphi [#allocation2], [#allocation2]
            $region38: #{_lambda_.6} parent=27 // loop_header_branch
              %73 = sbr.rel (%p71) target = $region42
            $region39: #{_lambda_.6} parent=27 // loop_body
              %v77 = vld [vmem:[%s75] sm:$0xf]
              %78 = vst [vmem:[%s76] sm:$0xf] %v77
              %v79 = vld [vmem:[%s75 + $0x8] sm:$0xf]
              %80 = vst [vmem:[%s76 + $0x4] sm:$0xf] %v79
              %v81 = vld [vmem:[%s75 + $0x10] sm:$0xf]
              %82 = vst [vmem:[%s76 + $0x8] sm:$0xf] %v81
              %v83 = vld [vmem:[%s75 + $0x18] sm:$0xf]
              %84 = vst [vmem:[%s76 + $0xc] sm:$0xf] %v83
              %v85 = vld [vmem:[%s75 + $0x20] sm:$0xf]
              %86 = vst [vmem:[%s76 + $0x10] sm:$0xf] %v85
              %v87 = vld [vmem:[%s75 + $0x28] sm:$0xf]
              %88 = vst [vmem:[%s76 + $0x14] sm:$0xf] %v87
              %v89 = vld [vmem:[%s75 + $0x30] sm:$0xf]
              %90 = vst [vmem:[%s76 + $0x18] sm:$0xf] %v89
              %v91 = vld [vmem:[%s75 + $0x38] sm:$0xf]
              %92 = vst [vmem:[%s76 + $0x1c] sm:$0xf] %v91
              %v93 = vld [vmem:[%s75 + $0x40] sm:$0xf]
              %94 = vst [vmem:[%s76 + $0x20] sm:$0xf] %v93
              %v95 = vld [vmem:[%s75 + $0x48] sm:$0xf]
              %96 = vst [vmem:[%s76 + $0x24] sm:$0xf] %v95
              %v97 = vld [vmem:[%s75 + $0x50] sm:$0xf]
              %98 = vst [vmem:[%s76 + $0x28] sm:$0xf] %v97
              %v99 = vld [vmem:[%s75 + $0x58] sm:$0xf]
              %100 = vst [vmem:[%s76 + $0x2c] sm:$0xf] %v99
              %v101 = vld [vmem:[%s75 + $0x60] sm:$0xf]
              %102 = vst [vmem:[%s76 + $0x30] sm:$0xf] %v101
              %v103 = vld [vmem:[%s75 + $0x68] sm:$0xf]
              %104 = vst [vmem:[%s76 + $0x34] sm:$0xf] %v103
              %v105 = vld [vmem:[%s75 + $0x70] sm:$0xf]
              %106 = vst [vmem:[%s76 + $0x38] sm:$0xf] %v105
              %v107 = vld [vmem:[%s75 + $0x78] sm:$0xf]
              %108 = vst [vmem:[%s76 + $0x3c] sm:$0xf] %v107
            $region40: #{_lambda_.6} parent=27 // loop_footer
              %s74 = sadd.s32 1, %s70
            $region41: #{_lambda_.6} parent=27 // loop_footer_branch
              %69 = sbr.rel target = $region37
            $region42: #{_lambda_.6} parent=27 // loop_exit
              _
          $region28: #{_lambda_.6} parent=12 // pred_fallthru
            _
        $region13: #{_lambda_.6} parent=8 // pred_fallthru
          _
        // Predicated region
        $region14: #{_lambda_.6} parent=8 // pred_check
          _
        $region15: #{_lambda_.6} parent=8 // pred_check_branch
          %16 = sbr.rel (0) target = $region17
        $region16: #{_lambda_.6} parent=8 // pred_region
          loop: start=0, step=1, limit=1
          $region18: #{_lambda_.6} parent=16 // loop_pre_header
            _
          $region19: #{_lambda_.6} parent=16 // loop_header
            %s19 = sphi 0, %s23
            %p20 = scmp.ge.s32.totalorder %s19, 1
            %s24 = sphi %s0, %s0
            %s25 = sphi [#allocation2], [#allocation2]
          $region20: #{_lambda_.6} parent=16 // loop_header_branch
            %22 = sbr.rel (%p20) target = $region24
          $region21: #{_lambda_.6} parent=16 // loop_body
            %v26 = vld [vmem:[%s24] sm:$0xf]
            %27 = vst [vmem:[%s25] sm:$0xf] %v26
            %v28 = vld [vmem:[%s24 + $0x8] sm:$0xf]
            %29 = vst [vmem:[%s25 + $0x4] sm:$0xf] %v28
            %v30 = vld [vmem:[%s24 + $0x10] sm:$0xf]
            %31 = vst [vmem:[%s25 + $0x8] sm:$0xf] %v30
            %v32 = vld [vmem:[%s24 + $0x18] sm:$0xf]
            %33 = vst [vmem:[%s25 + $0xc] sm:$0xf] %v32
            %v34 = vld [vmem:[%s24 + $0x20] sm:$0xf]
            %35 = vst [vmem:[%s25 + $0x10] sm:$0xf] %v34
            %v36 = vld [vmem:[%s24 + $0x28] sm:$0xf]
            %37 = vst [vmem:[%s25 + $0x14] sm:$0xf] %v36
            %v38 = vld [vmem:[%s24 + $0x30] sm:$0xf]
            %39 = vst [vmem:[%s25 + $0x18] sm:$0xf] %v38
            %v40 = vld [vmem:[%s24 + $0x38] sm:$0xf]
            %41 = vst [vmem:[%s25 + $0x1c] sm:$0xf] %v40
            %v42 = vld [vmem:[%s24 + $0x40] sm:$0xf]
            %43 = vst [vmem:[%s25 + $0x20] sm:$0xf] %v42
            %v44 = vld [vmem:[%s24 + $0x48] sm:$0xf]
            %45 = vst [vmem:[%s25 + $0x24] sm:$0xf] %v44
            %v46 = vld [vmem:[%s24 + $0x50] sm:$0xf]
            %47 = vst [vmem:[%s25 + $0x28] sm:$0xf] %v46
            %v48 = vld [vmem:[%s24 + $0x58] sm:$0xf]
            %49 = vst [vmem:[%s25 + $0x2c] sm:$0xf] %v48
            %v50 = vld [vmem:[%s24 + $0x60] sm:$0xf]
            %51 = vst [vmem:[%s25 + $0x30] sm:$0xf] %v50
            %v52 = vld [vmem:[%s24 + $0x68] sm:$0xf]
            %53 = vst [vmem:[%s25 + $0x34] sm:$0xf] %v52
            %v54 = vld [vmem:[%s24 + $0x70] sm:$0xf]
            %55 = vst [vmem:[%s25 + $0x38] sm:$0xf] %v54
            %v56 = vld [vmem:[%s24 + $0x78] sm:$0xf]
            %57 = vst [vmem:[%s25 + $0x3c] sm:$0xf] %v56
          $region22: #{_lambda_.6} parent=16 // loop_footer
            %s23 = sadd.s32 1, %s19
          $region23: #{_lambda_.6} parent=16 // loop_footer_branch
            %18 = sbr.rel target = $region19
          $region24: #{_lambda_.6} parent=16 // loop_exit
            _
        $region17: #{_lambda_.6} parent=8 // pred_fallthru
          _
      $region9: #{_lambda_.6} parent=4 // pred_fallthru
        _
      %109 = vnop
    $region5: #{_lambda_.6} parent=1 // pred_fallthru
      _
    // Predicated region
    $region43: #{_lambda_.6} parent=1 // pred_check
      _
    $region44: #{_lambda_.6} parent=1 // pred_check_branch
      %111 = sbr.rel (0) target = $region46
    $region45: #{_lambda_.6} parent=1 // pred_region
      _
    $region46: #{_lambda_.6} parent=1 // pred_fallthru
      _
    // Predicated region
    $region47: #{_lambda_.6} parent=1 // pred_check
      _
    $region48: #{_lambda_.6} parent=1 // pred_check_branch
      %113 = sbr.rel (0) target = $region50
    $region49: #{_lambda_.6} parent=1 // pred_region
      _
    $region50: #{_lambda_.6} parent=1 // pred_fallthru
      _
    // Predicated region
    $region51: #{_lambda_.6} parent=1 // pred_check
      _
    $region52: #{_lambda_.6} parent=1 // pred_check_branch
      %115 = sbr.rel (0) target = $region54
    $region53: #{_lambda_.6} parent=1 // pred_region
      _
    $region54: #{_lambda_.6} parent=1 // pred_fallthru
      _
    // Predicated region
    $region55: #{_lambda_.6} parent=1 // pred_check
      _
    $region56: #{_lambda_.6} parent=1 // pred_check_branch
      %117 = sbr.rel (0) target = $region58
    $region57: #{_lambda_.6} parent=1 // pred_region
      _
    $region58: #{_lambda_.6} parent=1 // pred_fallthru
      _
    %v119 = vld [vmem:[#allocation2] sm:$0xf]
    %v120 = vld [vmem:[#allocation2 + $0x4] sm:$0xf]
    %v121 = vld [vmem:[#allocation2 + $0x8] sm:$0xf]
    %v122 = vld [vmem:[#allocation2 + $0xc] sm:$0xf]
    %v123 = vld [vmem:[#allocation2 + $0x10] sm:$0xf]
    %v124 = vld [vmem:[#allocation2 + $0x14] sm:$0xf]
    %v125 = vld [vmem:[#allocation2 + $0x18] sm:$0xf]
    %v126 = vld [vmem:[#allocation2 + $0x1c] sm:$0xf]
    %v127 = vld [vmem:[#allocation2 + $0x20] sm:$0xf]
    %v128 = vld [vmem:[#allocation2 + $0x24] sm:$0xf]
    %v129 = vld [vmem:[#allocation2 + $0x28] sm:$0xf]
    %v130 = vld [vmem:[#allocation2 + $0x2c] sm:$0xf]
    %v131 = vld [vmem:[#allocation2 + $0x30] sm:$0xf]
    %v132 = vld [vmem:[#allocation2 + $0x34] sm:$0xf]
    %v133 = vld [vmem:[#allocation2 + $0x38] sm:$0xf]
    %v134 = vld [vmem:[#allocation2 + $0x3c] sm:$0xf]
    %v135 = vld [vmem:[%s1] sm:$0xf]
    %v136 = vld [vmem:[%s1 + $0x4] sm:$0xf]
    %v137 = vld [vmem:[%s1 + $0x8] sm:$0xf]
    %v138 = vld [vmem:[%s1 + $0xc] sm:$0xf]
    %v139 = vld [vmem:[%s1 + $0x10] sm:$0xf]
    %v140 = vld [vmem:[%s1 + $0x14] sm:$0xf]
    %v141 = vld [vmem:[%s1 + $0x18] sm:$0xf]
    %v142 = vld [vmem:[%s1 + $0x1c] sm:$0xf]
    %v143 = vld [vmem:[%s1 + $0x20] sm:$0xf]
    %v144 = vld [vmem:[%s1 + $0x24] sm:$0xf]
    %v145 = vld [vmem:[%s1 + $0x28] sm:$0xf]
    %v146 = vld [vmem:[%s1 + $0x2c] sm:$0xf]
    %v147 = vld [vmem:[%s1 + $0x30] sm:$0xf]
    %v148 = vld [vmem:[%s1 + $0x34] sm:$0xf]
    %v149 = vld [vmem:[%s1 + $0x38] sm:$0xf]
    %v150 = vld [vmem:[%s1 + $0x3c] sm:$0xf]
    %v167 = vunpack.c.l.b16 %v119
    %v168 = vunpack.c.l.b16 %v120
    %v169 = vunpack.c.l.b16 %v121
    %v170 = vunpack.c.l.b16 %v122
    %v171 = vunpack.c.l.b16 %v123
    %v172 = vunpack.c.l.b16 %v124
    %v173 = vunpack.c.l.b16 %v125
    %v174 = vunpack.c.l.b16 %v126
    %v175 = vunpack.c.l.b16 %v127
    %v176 = vunpack.c.l.b16 %v128
    %v177 = vunpack.c.l.b16 %v129
    %v178 = vunpack.c.l.b16 %v130
    %v179 = vunpack.c.l.b16 %v131
    %v180 = vunpack.c.l.b16 %v132
    %v181 = vunpack.c.l.b16 %v133
    %v182 = vunpack.c.l.b16 %v134
    %v183 = vpack.c.b16 %v168, %v167
    %v184 = vpack.c.b16 %v170, %v169
    %v185 = vpack.c.b16 %v172, %v171
    %v186 = vpack.c.b16 %v174, %v173
    %v187 = vpack.c.b16 %v176, %v175
    %v188 = vpack.c.b16 %v178, %v177
    %v189 = vpack.c.b16 %v180, %v179
    %v190 = vpack.c.b16 %v182, %v181
    %v215 = vunpack.c.l.b16 %v135
    %v216 = vunpack.c.l.b16 %v136
    %v217 = vunpack.c.l.b16 %v137
    %v218 = vunpack.c.l.b16 %v138
    %v219 = vunpack.c.l.b16 %v139
    %v220 = vunpack.c.l.b16 %v140
    %v221 = vunpack.c.l.b16 %v141
    %v222 = vunpack.c.l.b16 %v142
    %v223 = vunpack.c.l.b16 %v143
    %v224 = vunpack.c.l.b16 %v144
    %v225 = vunpack.c.l.b16 %v145
    %v226 = vunpack.c.l.b16 %v146
    %v227 = vunpack.c.l.b16 %v147
    %v228 = vunpack.c.l.b16 %v148
    %v229 = vunpack.c.l.b16 %v149
    %v230 = vunpack.c.l.b16 %v150
    %v231 = vpack.c.b16 %v216, %v215
    %v232 = vpack.c.b16 %v218, %v217
    %v233 = vpack.c.b16 %v220, %v219
    %v234 = vpack.c.b16 %v222, %v221
    %v235 = vpack.c.b16 %v224, %v223
    %v236 = vpack.c.b16 %v226, %v225
    %v237 = vpack.c.b16 %v228, %v227
    %v238 = vpack.c.b16 %v230, %v229
    %247 = vmatprep.subr.bf16.mxu0 0
    %248 = vmatpush1.bf16.msra.mxu0 %v231
    %249 = vmatprep.subr.bf16.mxu0 0
    %250 = vmatpush1.bf16.msra.mxu0 %v232
    %251 = vmatprep.subr.bf16.mxu0 0
    %252 = vmatpush1.bf16.msra.mxu0 %v233
    %253 = vmatprep.subr.bf16.mxu0 0
    %254 = vmatpush1.bf16.msra.mxu0 %v234
    %255 = vmatprep.subr.bf16.mxu0 0
    %256 = vmatpush1.bf16.msra.mxu0 %v235
    %257 = vmatprep.subr.bf16.mxu0 0
    %258 = vmatpush1.bf16.msra.mxu0 %v236
    %259 = vmatprep.subr.bf16.mxu0 0
    %260 = vmatpush1.bf16.msra.mxu0 %v237
    %261 = vmatprep.subr.bf16.mxu0 0
    %262 = vmatpush1.bf16.msra.mxu0 %v238
    %263 = vmatprep.subr.bf16.mxu0 0
    %264 = vmatpush1.bf16.msra.mxu0 0
    %265 = vmatprep.subr.bf16.mxu0 0
    %266 = vmatpush1.bf16.msra.mxu0 0
    %267 = vmatprep.subr.bf16.mxu0 0
    %268 = vmatpush1.bf16.msra.mxu0 0
    %269 = vmatprep.subr.bf16.mxu0 0
    %270 = vmatpush1.bf16.msra.mxu0 0
    %271 = vmatprep.subr.bf16.mxu0 0
    %272 = vmatpush1.bf16.msra.mxu0 0
    %273 = vmatprep.subr.bf16.mxu0 0
    %274 = vmatpush1.bf16.msra.mxu0 0
    %275 = vmatprep.subr.bf16.mxu0 0
    %276 = vmatpush1.bf16.msra.mxu0 0
    %277 = vmatprep.subr.bf16.mxu0 0
    %278 = vmatpush1.bf16.msra.mxu0 0
    %279 = vmatprep.mubr.bf16.mxu0 0
    %280 = vmatmul.mubr.bf16.gmra.mrb[0].mxu0 %v183
    %v281 = vpop.f32.mrb[0].mxu0
    %v282 = vadd.f32 0.0, %v281
    %v283 = vpop.f32.mrb[0].mxu0
    %v284 = vpop.f32.mrb[0].mxu0
    %v285 = vadd.f32 0.0, %v284
    %v286 = vpop.f32.mrb[0].mxu0
    %287 = vmatprep.mubr.bf16.mxu0 0
    %288 = vmatmul.mubr.bf16.gmra.mrb[0].mxu0 %v184
    %v289 = vpop.f32.mrb[0].mxu0
    %v290 = vadd.f32 0.0, %v289
    %v291 = vpop.f32.mrb[0].mxu0
    %v292 = vpop.f32.mrb[0].mxu0
    %v293 = vadd.f32 0.0, %v292
    %v294 = vpop.f32.mrb[0].mxu0
    %295 = vmatprep.mubr.bf16.mxu0 0
    %296 = vmatmul.mubr.bf16.gmra.mrb[0].mxu0 %v185
    %v297 = vpop.f32.mrb[0].mxu0
    %v298 = vadd.f32 0.0, %v297
    %v299 = vpop.f32.mrb[0].mxu0
    %v300 = vpop.f32.mrb[0].mxu0
    %v301 = vadd.f32 0.0, %v300
    %v302 = vpop.f32.mrb[0].mxu0
    %303 = vmatprep.mubr.bf16.mxu0 0
    %304 = vmatmul.mubr.bf16.gmra.mrb[0].mxu0 %v186
    %v305 = vpop.f32.mrb[0].mxu0
    %v306 = vadd.f32 0.0, %v305
    %v307 = vpop.f32.mrb[0].mxu0
    %v308 = vpop.f32.mrb[0].mxu0
    %v309 = vadd.f32 0.0, %v308
    %v310 = vpop.f32.mrb[0].mxu0
    %311 = vmatprep.mubr.bf16.mxu0 0
    %312 = vmatmul.mubr.bf16.gmra.mrb[0].mxu0 %v187
    %v313 = vpop.f32.mrb[0].mxu0
    %v314 = vadd.f32 0.0, %v313
    %v315 = vpop.f32.mrb[0].mxu0
    %v316 = vpop.f32.mrb[0].mxu0
    %v317 = vadd.f32 0.0, %v316
    %v318 = vpop.f32.mrb[0].mxu0
    %319 = vmatprep.mubr.bf16.mxu0 0
    %320 = vmatmul.mubr.bf16.gmra.mrb[0].mxu0 %v188
    %v321 = vpop.f32.mrb[0].mxu0
    %v322 = vadd.f32 0.0, %v321
    %v323 = vpop.f32.mrb[0].mxu0
    %v324 = vpop.f32.mrb[0].mxu0
    %v325 = vadd.f32 0.0, %v324
    %v326 = vpop.f32.mrb[0].mxu0
    %327 = vmatprep.mubr.bf16.mxu0 0
    %328 = vmatmul.mubr.bf16.gmra.mrb[0].mxu0 %v189
    %v329 = vpop.f32.mrb[0].mxu0
    %v330 = vadd.f32 0.0, %v329
    %v331 = vpop.f32.mrb[0].mxu0
    %v332 = vpop.f32.mrb[0].mxu0
    %v333 = vadd.f32 0.0, %v332
    %v334 = vpop.f32.mrb[0].mxu0
    %335 = vmatprep.mubr.bf16.mxu0 0
    %336 = vmatmul.mubr.bf16.gmra.mrb[0].mxu0 %v190
    %v337 = vpop.f32.mrb[0].mxu0
    %v338 = vadd.f32 0.0, %v337
    %v339 = vpop.f32.mrb[0].mxu0
    %v340 = vpop.f32.mrb[0].mxu0
    %v341 = vadd.f32 0.0, %v340
    %v342 = vpop.f32.mrb[0].mxu0
    %343 = vdwg.mxu0
    %v344 = vld [vmem:[%s2] sm:$0x1]
    %v346 = vlaneseq
    %v347 = vshrl.u32 %v346, 7
    %v348 = vsub.s32 0, %v347
    %v349 = vrot.slane %v344, %v348
    %v351 = vmul.f32 %v282, %v349
    %v352 = vmul.f32 %v285, %v349
    %v353 = vmul.f32 %v290, %v349
    %v354 = vmul.f32 %v293, %v349
    %v355 = vmul.f32 %v298, %v349
    %v356 = vmul.f32 %v301, %v349
    %v357 = vmul.f32 %v306, %v349
    %v358 = vmul.f32 %v309, %v349
    %v359 = vmul.f32 %v314, %v349
    %v360 = vmul.f32 %v317, %v349
    %v361 = vmul.f32 %v322, %v349
    %v362 = vmul.f32 %v325, %v349
    %v363 = vmul.f32 %v330, %v349
    %v364 = vmul.f32 %v333, %v349
    %v365 = vmul.f32 %v338, %v349
    %v366 = vmul.f32 %v341, %v349
    %v367 = vld [vmem:[%s3] sm:$0x1]
    %v369 = vlaneseq
    %v370 = vshrl.u32 %v369, 7
    %v371 = vsub.s32 0, %v370
    %v372 = vrot.slane %v367, %v371
    %v374 = vadd.f32 %v351, %v372
    %v375 = vadd.f32 %v352, %v372
    %v376 = vadd.f32 %v353, %v372
    %v377 = vadd.f32 %v354, %v372
    %v378 = vadd.f32 %v355, %v372
    %v379 = vadd.f32 %v356, %v372
    %v380 = vadd.f32 %v357, %v372
    %v381 = vadd.f32 %v358, %v372
    %v382 = vadd.f32 %v359, %v372
    %v383 = vadd.f32 %v360, %v372
    %v384 = vadd.f32 %v361, %v372
    %v385 = vadd.f32 %v362, %v372
    %v386 = vadd.f32 %v363, %v372
    %v387 = vadd.f32 %v364, %v372
    %v388 = vadd.f32 %v365, %v372
    %v389 = vadd.f32 %v366, %v372
    %v390 = vpack.c.bf16 %v375, %v374
    %v391 = vpack.c.bf16 %v377, %v376
    %v392 = vpack.c.bf16 %v379, %v378
    %v393 = vpack.c.bf16 %v381, %v380
    %v394 = vpack.c.bf16 %v383, %v382
    %v395 = vpack.c.bf16 %v385, %v384
    %v396 = vpack.c.bf16 %v387, %v386
    %v397 = vpack.c.bf16 %v389, %v388
    %v406 = vunpack.c.l.b16 %v390
    %v407 = vunpack.c.h.b16 %v390
    %v408 = vunpack.c.l.b16 %v391
    %v409 = vunpack.c.h.b16 %v391
    %v410 = vunpack.c.l.b16 %v392
    %v411 = vunpack.c.h.b16 %v392
    %v412 = vunpack.c.l.b16 %v393
    %v413 = vunpack.c.h.b16 %v393
    %v414 = vunpack.c.l.b16 %v394
    %v415 = vunpack.c.h.b16 %v394
    %v416 = vunpack.c.l.b16 %v395
    %v417 = vunpack.c.h.b16 %v395
    %v418 = vunpack.c.l.b16 %v396
    %v419 = vunpack.c.h.b16 %v396
    %v420 = vunpack.c.l.b16 %v397
    %v421 = vunpack.c.h.b16 %v397
    %v422 = vpack.c.b16 %v406, %v406
    %v423 = vpack.c.b16 %v407, %v407
    %v424 = vpack.c.b16 %v408, %v408
    %v425 = vpack.c.b16 %v409, %v409
    %v426 = vpack.c.b16 %v410, %v410
    %v427 = vpack.c.b16 %v411, %v411
    %v428 = vpack.c.b16 %v412, %v412
    %v429 = vpack.c.b16 %v413, %v413
    %v430 = vpack.c.b16 %v414, %v414
    %v431 = vpack.c.b16 %v415, %v415
    %v432 = vpack.c.b16 %v416, %v416
    %v433 = vpack.c.b16 %v417, %v417
    %v434 = vpack.c.b16 %v418, %v418
    %v435 = vpack.c.b16 %v419, %v419
    %v436 = vpack.c.b16 %v420, %v420
    %v437 = vpack.c.b16 %v421, %v421
    %454 = vst [vmem:[%s4] sm:$0xf] %v422
    %455 = vst [vmem:[%s4 + $0x4] sm:$0xf] %v423
    %456 = vst [vmem:[%s4 + $0x8] sm:$0xf] %v424
    %457 = vst [vmem:[%s4 + $0xc] sm:$0xf] %v425
    %458 = vst [vmem:[%s4 + $0x10] sm:$0xf] %v426
    %459 = vst [vmem:[%s4 + $0x14] sm:$0xf] %v427
    %460 = vst [vmem:[%s4 + $0x18] sm:$0xf] %v428
    %461 = vst [vmem:[%s4 + $0x1c] sm:$0xf] %v429
    %462 = vst [vmem:[%s4 + $0x20] sm:$0xf] %v430
    %463 = vst [vmem:[%s4 + $0x24] sm:$0xf] %v431
    %464 = vst [vmem:[%s4 + $0x28] sm:$0xf] %v432
    %465 = vst [vmem:[%s4 + $0x2c] sm:$0xf] %v433
    %466 = vst [vmem:[%s4 + $0x30] sm:$0xf] %v434
    %467 = vst [vmem:[%s4 + $0x34] sm:$0xf] %v435
    %468 = vst [vmem:[%s4 + $0x38] sm:$0xf] %v436
    %469 = vst [vmem:[%s4 + $0x3c] sm:$0xf] %v437
    // Predicated region
    $region59: #{_lambda_.6} parent=1 // pred_check
      _
    $region60: #{_lambda_.6} parent=1 // pred_check_branch
      %471 = sbr.rel (0) target = $region62
    $region61: #{_lambda_.6} parent=1 // pred_region
      _
    $region62: #{_lambda_.6} parent=1 // pred_fallthru
      _
    // Predicated region
    $region63: #{_lambda_.6} parent=1 // pred_check
      _
    $region64: #{_lambda_.6} parent=1 // pred_check_branch
      %473 = sbr.rel (0) target = $region66
    $region65: #{_lambda_.6} parent=1 // pred_region
      _
    $region66: #{_lambda_.6} parent=1 // pred_fallthru
      _

// kernel: _lambda_.5
$region0: #{_lambda_.5}
  #allocation0 [shape = 'u32[]', space=smem, size = 0x4, offset = 0x4, fixed_abs, tag = 'smem constant byte address 0x4 - core index']
  #allocation1 [shape = 'u32[144,128]{1,0:T(1,128)}', space=vmem, size = 0x12000, scoped, tag = 'internal scratch']
  #allocation2 [shape = 'bf16[64,288]{1,0:T(16,128)(2,1)}', space=vmem, size = 0xc000, scoped, tag = 'scratch operand']
  %s0 = inlined_call_operand.vmem [shape: bf16[4,2,9,9,32], index: 0, kind: input, shape index: {}]
  %s1 = inlined_call_operand.vmem [shape: bf16[288,32], index: 1, kind: input, shape index: {}]
  %s2 = inlined_call_operand.vmem [shape: f32[1,32], index: 2, kind: input, shape index: {}]
  %s3 = inlined_call_operand.vmem [shape: f32[1,32], index: 3, kind: input, shape index: {}]
  %s4 = inlined_call_operand.vmem [shape: bf16[2,64,32], index: 4, kind: output, shape index: {}]
  %s5 = sld [smem:[#allocation0]]
  $region90: #{_lambda_.5} parent=0
    _
  %s7 = ssub.s32 1, %s5
  %s8 = scalar_select 0, %s7, %s5
  $region1: #{_lambda_.5} parent=0
    #allocation3 [shape = 'u8[294912]{0}', space=vmem, size = 0x48000, scoped, tag = 'input window, operand 0']
    loop: start=0, step=1, limit=4
    $region2: #{_lambda_.5} parent=1 // loop_pre_header
      _
    $region3: #{_lambda_.5} parent=1 // loop_header
      %s10 = sphi 0, %s14
      %p11 = scmp.ge.s32.totalorder %s10, 4
      %s17 = sphi 0, %s29
      %s18 = sphi 0, %s25
      %s19 = sphi 0, %s17
      %s20 = sphi 0, %s18
      %s21 = sphi 0, %s19
      %s22 = sphi 0, %s20
      %s32 = sphi 0, %s34
      %s35 = sphi 0, %s32
      %s36 = sphi 0, %s35
      %s52 = sphi 0, %s36
      %s58 = sphi 0, %s60
      %s61 = sphi 0, %s58
      %s62 = sphi 0, %s61
      %s78 = sphi 0, %s62
      %s84 = sphi 0, %s86
      %s87 = sphi 0, %s84
      %s88 = sphi 0, %s87
      %s104 = sphi 0, %s88
      %s110 = sphi 0, %s112
      %s113 = sphi 0, %s110
      %s114 = sphi 0, %s113
      %s130 = sphi 0, %s114
      %s138 = sphi 0, %s140
      %s141 = sphi 0, %s138
      %s142 = sphi 0, %s141
      %s158 = sphi 0, %s142
    $region4: #{_lambda_.5} parent=1 // loop_header_branch
      %13 = sbr.rel (%p11) target = $region8
    $region5: #{_lambda_.5} parent=1 // loop_body
      %s15 = ssub.s32 %s10, 1
      %s16 = ssub.s32 %s10, 2
      %s23 = sadd.s32 1, %s18
      %p24 = scmp.ge.s32.totalorder %s23, 1
      %s25 = scalar_select %p24, 0, %s23
      %s26 = sadd.s32 1, %s17
      %s27 = scalar_select %p24, %s26, %s17
      %p28 = scmp.ge.s32.totalorder %s27, 2
      %s29 = scalar_select %p28, 0, %s27
      %s30 = ssub.s32 %s17, %s29
      %p31 = scmp.eq.s32.totalorder %s30, 0
      %s33 = sadd.s32 %s32, 1
      %s34 = scalar_select %p31, %s32, %s33
      %p37 = pneg %p31
      %p38 = scmp.eq.s32.totalorder %s10, 1
      %p39 = por %p37, %p38
      %p40 = scmp.ne.s32.totalorder %s32, %s35
      %p41 = scmp.eq.s32.totalorder %s10, 0
      %p42 = por %p40, %p41
      %p43 = scmp.ne.s32.totalorder %s32, %s35
      %p44 = scmp.eq.s32.totalorder %s15, 1
      %p45 = por %p43, %p44
      %p46 = scmp.ne.s32.totalorder %s35, %s36
      %p47 = scmp.eq.s32.totalorder %s15, 0
      %p48 = por %p46, %p47
      %p49 = scmp.ne.s32.totalorder %s35, %s36
      %p50 = scmp.eq.s32.totalorder %s16, 1
      %p51 = por %p49, %p50
      %p53 = scmp.ne.s32.totalorder %s36, %s52
      %p54 = scmp.eq.s32.totalorder %s16, 0
      %p55 = por %p53, %p54
      %s56 = ssub.s32 %s18, %s25
      %p57 = scmp.eq.s32.totalorder %s56, 0
      %s59 = sadd.s32 %s58, 1
      %s60 = scalar_select %p57, %s58, %s59
      %p63 = pneg %p57
      %p64 = scmp.eq.s32.totalorder %s10, 1
      %p65 = por %p63, %p64
      %p66 = scmp.ne.s32.totalorder %s58, %s61
      %p67 = scmp.eq.s32.totalorder %s10, 0
      %p68 = por %p66, %p67
      %p69 = scmp.ne.s32.totalorder %s58, %s61
      %p70 = scmp.eq.s32.totalorder %s15, 1
      %p71 = por %p69, %p70
      %p72 = scmp.ne.s32.totalorder %s61, %s62
      %p73 = scmp.eq.s32.totalorder %s15, 0
      %p74 = por %p72, %p73
      %p75 = scmp.ne.s32.totalorder %s61, %s62
      %p76 = scmp.eq.s32.totalorder %s16, 1
      %p77 = por %p75, %p76
      %p79 = scmp.ne.s32.totalorder %s62, %s78
      %p80 = scmp.eq.s32.totalorder %s16, 0
      %p81 = por %p79, %p80
      %s82 = ssub.s32 %s18, %s25
      %p83 = scmp.eq.s32.totalorder %s82, 0
      %s85 = sadd.s32 %s84, 1
      %s86 = scalar_select %p83, %s84, %s85
      %p89 = pneg %p83
      %p90 = scmp.eq.s32.totalorder %s10, 1
      %p91 = por %p89, %p90
      %p92 = scmp.ne.s32.totalorder %s84, %s87
      %p93 = scmp.eq.s32.totalorder %s10, 0
      %p94 = por %p92, %p93
      %p95 = scmp.ne.s32.totalorder %s84, %s87
      %p96 = scmp.eq.s32.totalorder %s15, 1
      %p97 = por %p95, %p96
      %p98 = scmp.ne.s32.totalorder %s87, %s88
      %p99 = scmp.eq.s32.totalorder %s15, 0
      %p100 = por %p98, %p99
      %p101 = scmp.ne.s32.totalorder %s87, %s88
      %p102 = scmp.eq.s32.totalorder %s16, 1
      %p103 = por %p101, %p102
      %p105 = scmp.ne.s32.totalorder %s88, %s104
      %p106 = scmp.eq.s32.totalorder %s16, 0
      %p107 = por %p105, %p106
      %s108 = ssub.s32 %s18, %s25
      %p109 = scmp.eq.s32.totalorder %s108, 0
      %s111 = sadd.s32 %s110, 1
      %s112 = scalar_select %p109, %s110, %s111
      %p115 = pneg %p109
      %p116 = scmp.eq.s32.totalorder %s10, 1
      %p117 = por %p115, %p116
      %p118 = scmp.ne.s32.totalorder %s110, %s113
      %p119 = scmp.eq.s32.totalorder %s10, 0
      %p120 = por %p118, %p119
      %p121 = scmp.ne.s32.totalorder %s110, %s113
      %p122 = scmp.eq.s32.totalorder %s15, 1
      %p123 = por %p121, %p122
      %p124 = scmp.ne.s32.totalorder %s113, %s114
      %p125 = scmp.eq.s32.totalorder %s15, 0
      %p126 = por %p124, %p125
      %p127 = scmp.ne.s32.totalorder %s113, %s114
      %p128 = scmp.eq.s32.totalorder %s16, 1
      %p129 = por %p127, %p128
      %p131 = scmp.ne.s32.totalorder %s114, %s130
      %p132 = scmp.eq.s32.totalorder %s16, 0
      %p133 = por %p131, %p132
      %s134 = ssub.s32 %s17, %s29
      %s135 = ssub.s32 %s18, %s25
      %s136 = sor.u32 %s134, %s135
      %p137 = scmp.eq.s32.totalorder %s136, 0
      %s139 = sadd.s32 %s138, 1
      %s140 = scalar_select %p137, %s138, %s139
      %p143 = pneg %p137
      %p144 = scmp.eq.s32.totalorder %s10, 1
      %p145 = por %p143, %p144
      %p146 = scmp.ne.s32.totalorder %s138, %s141
      %p147 = scmp.eq.s32.totalorder %s10, 0
      %p148 = por %p146, %p147
      %p149 = scmp.ne.s32.totalorder %s138, %s141
      %p150 = scmp.eq.s32.totalorder %s15, 1
      %p151 = por %p149, %p150
      %p152 = scmp.ne.s32.totalorder %s141, %s142
      %p153 = scmp.eq.s32.totalorder %s15, 0
      %p154 = por %p152, %p153
      %p155 = scmp.ne.s32.totalorder %s141, %s142
      %p156 = scmp.eq.s32.totalorder %s16, 1
      %p157 = por %p155, %p156
      %p159 = scmp.ne.s32.totalorder %s142, %s158
      %p160 = scmp.eq.s32.totalorder %s16, 0
      %p161 = por %p159, %p160
      %p162 = scmp.le.s32.totalorder 1, %s10
      %p163 = scmp.lt.s32.totalorder %s10, 3
      %p164 = pnand %p162, %p163
      %p165 = pneg %p164
      // Predicated region
      $region9: #{_lambda_.5} parent=5 // pred_check
        _
      $region10: #{_lambda_.5} parent=5 // pred_check_branch
        %167 = sbr.rel (%p164) target = $region12
      $region11: #{_lambda_.5} parent=5 // pred_region
        %s168 = ssub.s32 %s10, 1
        // Predicated region
        $region13: #{_lambda_.5} parent=11 // pred_check
          %p169 = pneg %p74
        $region14: #{_lambda_.5} parent=11 // pred_check_branch
          %171 = sbr.rel (%p169) target = $region16
        $region15: #{_lambda_.5} parent=11 // pred_region
          %p172 = scmp.lt.s32.totalorder %s20, 0
          %s173 = scalar_select %p172, %s20, 0
          %s174 = smul.addr %s173, 4
          %s175 = scalar_lea.vmem %s1, %s174
        $region16: #{_lambda_.5} parent=11 // pred_fallthru
          _
        // Predicated region
        $region17: #{_lambda_.5} parent=11 // pred_check
          %p176 = pneg %p100
        $region18: #{_lambda_.5} parent=11 // pred_check_branch
          %178 = sbr.rel (%p176) target = $region20
        $region19: #{_lambda_.5} parent=11 // pred_region
          %p179 = scmp.lt.s32.totalorder %s20, 0
          %s180 = scalar_select %p179, %s20, 0
          %s181 = scalar_lea.vmem %s2, %s180
        $region20: #{_lambda_.5} parent=11 // pred_fallthru
          _
        // Predicated region
        $region21: #{_lambda_.5} parent=11 // pred_check
          %p182 = pneg %p126
        $region22: #{_lambda_.5} parent=11 // pred_check_branch
          %184 = sbr.rel (%p182) target = $region24
        $region23: #{_lambda_.5} parent=11 // pred_region
          %p185 = scmp.lt.s32.totalorder %s20, 0
          %s186 = scalar_select %p185, %s20, 0
          %s187 = scalar_lea.vmem %s3, %s186
        $region24: #{_lambda_.5} parent=11 // pred_fallthru
          _
      $region12: #{_lambda_.5} parent=5 // pred_fallthru
        _
      %p188 = scmp.lt.s32.totalorder %s10, 2
      // Predicated region
      $region25: #{_lambda_.5} parent=5 // pred_check
        %p189 = pneg %p188
      $region26: #{_lambda_.5} parent=5 // pred_check_branch
        %191 = sbr.rel (%p189) target = $region28
      $region27: #{_lambda_.5} parent=5 // pred_region
        // Predicated region
        $region29: #{_lambda_.5} parent=27 // pred_check
          %p192 = pneg %p42
        $region30: #{_lambda_.5} parent=27 // pred_check_branch
          %194 = sbr.rel (%p192) target = $region32
        $region31: #{_lambda_.5} parent=27 // pred_region
          %s195 = sand.u32 %s32, 1
          %s196 = sand.u32 %s32, 1
          %s197 = smul.addr %s196, 288
          %s198 = scalar_lea.vmem [#allocation3], %s197
          %s199 = smul.addr %s17, 18
          %s200 = smul.addr %s199, 4
          %s201 = scalar_lea.vmem %s0, %s200
          // Predicated region
          $region33: #{_lambda_.5} parent=31 // pred_check
            _
          $region34: #{_lambda_.5} parent=31 // pred_check_branch
            %203 = sbr.rel (0) target = $region36
          $region35: #{_lambda_.5} parent=31 // pred_region
            // Predicated region
            $region37: #{_lambda_.5} parent=35 // pred_check
              _
            $region38: #{_lambda_.5} parent=35 // pred_check_branch
              %205 = sbr.rel target = $region40
            $region39: #{_lambda_.5} parent=35 // pred_region
              // Predicated region
              $region52: #{_lambda_.5} parent=39 // pred_check
                _
              $region53: #{_lambda_.5} parent=39 // pred_check_branch
                %362 = sbr.rel (0) target = $region55
              $region54: #{_lambda_.5} parent=39 // pred_region
                loop: start=0, step=1, limit=1
                $region56: #{_lambda_.5} parent=54 // loop_pre_header
                  _
                $region57: #{_lambda_.5} parent=54 // loop_header
                  %s364 = sphi 0, %s368
                  %p365 = scmp.ge.s32.totalorder %s364, 1
                  %s369 = sphi %s201, %s201
                  %s370 = sphi %s198, %s198
                $region58: #{_lambda_.5} parent=54 // loop_header_branch
                  %367 = sbr.rel (%p365) target = $region62
                $region59: #{_lambda_.5} parent=54 // loop_body
                  _
                $region60: #{_lambda_.5} parent=54 // loop_footer
                  %s368 = sadd.s32 1, %s364
                $region61: #{_lambda_.5} parent=54 // loop_footer_branch
                  %363 = sbr.rel target = $region57
                $region62: #{_lambda_.5} parent=54 // loop_exit
                  _
                loop: start=0, step=1, limit=1
                $region63: #{_lambda_.5} parent=54 // loop_pre_header
                  _
                $region64: #{_lambda_.5} parent=54 // loop_header
                  %s373 = sphi 0, %s377
                  %p374 = scmp.ge.s32.totalorder %s373, 1
                  %s378 = sphi %s201, %s201
                  %s379 = sphi %s198, %s198
                $region65: #{_lambda_.5} parent=54 // loop_header_branch
                  %376 = sbr.rel (%p374) target = $region69
                $region66: #{_lambda_.5} parent=54 // loop_body
                  %v380 = vld [vmem:[%s378] sm:$0xf]
                  %381 = vst [vmem:[%s379] sm:$0xf] %v380
                  %v382 = vld [vmem:[%s378 + $0x4] sm:$0xf]
                  %383 = vst [vmem:[%s379 + $0x4] sm:$0xf] %v382
                  %v384 = vld [vmem:[%s378 + $0x8] sm:$0xf]
                  %385 = vst [vmem:[%s379 + $0x8] sm:$0xf] %v384
                  %v386 = vld [vmem:[%s378 + $0xc] sm:$0xf]
                  %387 = vst [vmem:[%s379 + $0xc] sm:$0xf] %v386
                  %v388 = vld [vmem:[%s378 + $0x10] sm:$0xf]
                  %389 = vst [vmem:[%s379 + $0x10] sm:$0xf] %v388
                  %v390 = vld [vmem:[%s378 + $0x14] sm:$0xf]
                  %391 = vst [vmem:[%s379 + $0x14] sm:$0xf] %v390
                  %v392 = vld [vmem:[%s378 + $0x18] sm:$0xf]
                  %393 = vst [vmem:[%s379 + $0x18] sm:$0xf] %v392
                  %v394 = vld [vmem:[%s378 + $0x1c] sm:$0xf]
                  %395 = vst [vmem:[%s379 + $0x1c] sm:$0xf] %v394
                  %v396 = vld [vmem:[%s378 + $0x20] sm:$0xf]
                  %397 = vst [vmem:[%s379 + $0x20] sm:$0xf] %v396
                  %v398 = vld [vmem:[%s378 + $0x24] sm:$0xf]
                  %399 = vst [vmem:[%s379 + $0x24] sm:$0xf] %v398
                  %v400 = vld [vmem:[%s378 + $0x28] sm:$0xf]
                  %401 = vst [vmem:[%s379 + $0x28] sm:$0xf] %v400
                  %v402 = vld [vmem:[%s378 + $0x2c] sm:$0xf]
                  %403 = vst [vmem:[%s379 + $0x2c] sm:$0xf] %v402
                  %v404 = vld [vmem:[%s378 + $0x30] sm:$0xf]
                  %405 = vst [vmem:[%s379 + $0x30] sm:$0xf] %v404
                  %v406 = vld [vmem:[%s378 + $0x34] sm:$0xf]
                  %407 = vst [vmem:[%s379 + $0x34] sm:$0xf] %v406
                  %v408 = vld [vmem:[%s378 + $0x38] sm:$0xf]
                  %409 = vst [vmem:[%s379 + $0x38] sm:$0xf] %v408
                  %v410 = vld [vmem:[%s378 + $0x3c] sm:$0xf]
                  %411 = vst [vmem:[%s379 + $0x3c] sm:$0xf] %v410
                  %v412 = vld [vmem:[%s378 + $0x40] sm:$0xf]
                  %413 = vst [vmem:[%s379 + $0x40] sm:$0xf] %v412
                  %v414 = vld [vmem:[%s378 + $0x44] sm:$0xf]
                  %415 = vst [vmem:[%s379 + $0x44] sm:$0xf] %v414
                  %v416 = vld [vmem:[%s378 + $0x90] sm:$0xf]
                  %417 = vst [vmem:[%s379 + $0x48] sm:$0xf] %v416
                  %v418 = vld [vmem:[%s378 + $0x94] sm:$0xf]
                  %419 = vst [vmem:[%s379 + $0x4c] sm:$0xf] %v418
                  %v420 = vld [vmem:[%s378 + $0x98] sm:$0xf]
                  %421 = vst [vmem:[%s379 + $0x50] sm:$0xf] %v420
                  %v422 = vld [vmem:[%s378 + $0x9c] sm:$0xf]
                  %423 = vst [vmem:[%s379 + $0x54] sm:$0xf] %v422
                  %v424 = vld [vmem:[%s378 + $0xa0] sm:$0xf]
                  %425 = vst [vmem:[%s379 + $0x58] sm:$0xf] %v424
                  %v426 = vld [vmem:[%s378 + $0xa4] sm:$0xf]
                  %427 = vst [vmem:[%s379 + $0x5c] sm:$0xf] %v426
                  %v428 = vld [vmem:[%s378 + $0xa8] sm:$0xf]
                  %429 = vst [vmem:[%s379 + $0x60] sm:$0xf] %v428
                  %v430 = vld [vmem:[%s378 + $0xac] sm:$0xf]
                  %431 = vst [vmem:[%s379 + $0x64] sm:$0xf] %v430
                  %v432 = vld [vmem:[%s378 + $0xb0] sm:$0xf]
                  %433 = vst [vmem:[%s379 + $0x68] sm:$0xf] %v432
                  %v434 = vld [vmem:[%s378 + $0xb4] sm:$0xf]
                  %435 = vst [vmem:[%s379 + $0x6c] sm:$0xf] %v434
                  %v436 = vld [vmem:[%s378 + $0xb8] sm:$0xf]
                  %437 = vst [vmem:[%s379 + $0x70] sm:$0xf] %v436
                  %v438 = vld [vmem:[%s378 + $0xbc] sm:$0xf]
                  %439 = vst [vmem:[%s379 + $0x74] sm:$0xf] %v438
                  %v440 = vld [vmem:[%s378 + $0xc0] sm:$0xf]
                  %441 = vst [vmem:[%s379 + $0x78] sm:$0xf] %v440
                  %v442 = vld [vmem:[%s378 + $0xc4] sm:$0xf]
                  %443 = vst [vmem:[%s379 + $0x7c] sm:$0xf] %v442
                  %v444 = vld [vmem:[%s378 + $0xc8] sm:$0xf]
                  %445 = vst [vmem:[%s379 + $0x80] sm:$0xf] %v444
                  %v446 = vld [vmem:[%s378 + $0xcc] sm:$0xf]
                  %447 = vst [vmem:[%s379 + $0x84] sm:$0xf] %v446
                  %v448 = vld [vmem:[%s378 + $0xd0] sm:$0xf]
                  %449 = vst [vmem:[%s379 + $0x88] sm:$0xf] %v448
                  %v450 = vld [vmem:[%s378 + $0xd4] sm:$0xf]
                  %451 = vst [vmem:[%s379 + $0x8c] sm:$0xf] %v450
                  %v452 = vld [vmem:[%s378 + $0x120] sm:$0xf]
                  %453 = vst [vmem:[%s379 + $0x90] sm:$0xf] %v452
                  %v454 = vld [vmem:[%s378 + $0x124] sm:$0xf]
                  %455 = vst [vmem:[%s379 + $0x94] sm:$0xf] %v454
                  %v456 = vld [vmem:[%s378 + $0x128] sm:$0xf]
                  %457 = vst [vmem:[%s379 + $0x98] sm:$0xf] %v456
                  %v458 = vld [vmem:[%s378 + $0x12c] sm:$0xf]
                  %459 = vst [vmem:[%s379 + $0x9c] sm:$0xf] %v458
                  %v460 = vld [vmem:[%s378 + $0x130] sm:$0xf]
                  %461 = vst [vmem:[%s379 + $0xa0] sm:$0xf] %v460
                  %v462 = vld [vmem:[%s378 + $0x134] sm:$0xf]
                  %463 = vst [vmem:[%s379 + $0xa4] sm:$0xf] %v462
                  %v464 = vld [vmem:[%s378 + $0x138] sm:$0xf]
                  %465 = vst [vmem:[%s379 + $0xa8] sm:$0xf] %v464
                  %v466 = vld [vmem:[%s378 + $0x13c] sm:$0xf]
                  %467 = vst [vmem:[%s379 + $0xac] sm:$0xf] %v466
                  %v468 = vld [vmem:[%s378 + $0x140] sm:$0xf]
                  %469 = vst [vmem:[%s379 + $0xb0] sm:$0xf] %v468
                  %v470 = vld [vmem:[%s378 + $0x144] sm:$0xf]
                  %471 = vst [vmem:[%s379 + $0xb4] sm:$0xf] %v470
                  %v472 = vld [vmem:[%s378 + $0x148] sm:$0xf]
                  %473 = vst [vmem:[%s379 + $0xb8] sm:$0xf] %v472
                  %v474 = vld [vmem:[%s378 + $0x14c] sm:$0xf]
                  %475 = vst [vmem:[%s379 + $0xbc] sm:$0xf] %v474
                  %v476 = vld [vmem:[%s378 + $0x150] sm:$0xf]
                  %477 = vst [vmem:[%s379 + $0xc0] sm:$0xf] %v476
                  %v478 = vld [vmem:[%s378 + $0x154] sm:$0xf]
                  %479 = vst [vmem:[%s379 + $0xc4] sm:$0xf] %v478
                  %v480 = vld [vmem:[%s378 + $0x158] sm:$0xf]
                  %481 = vst [vmem:[%s379 + $0xc8] sm:$0xf] %v480
                  %v482 = vld [vmem:[%s378 + $0x15c] sm:$0xf]
                  %483 = vst [vmem:[%s379 + $0xcc] sm:$0xf] %v482
                  %v484 = vld [vmem:[%s378 + $0x160] sm:$0xf]
                  %485 = vst [vmem:[%s379 + $0xd0] sm:$0xf] %v484
                  %v486 = vld [vmem:[%s378 + $0x164] sm:$0xf]
                  %487 = vst [vmem:[%s379 + $0xd4] sm:$0xf] %v486
                  %v488 = vld [vmem:[%s378 + $0x1b0] sm:$0xf]
                  %489 = vst [vmem:[%s379 + $0xd8] sm:$0xf] %v488
                  %v490 = vld [vmem:[%s378 + $0x1b4] sm:$0xf]
                  %491 = vst [vmem:[%s379 + $0xdc] sm:$0xf] %v490
                  %v492 = vld [vmem:[%s378 + $0x1b8] sm:$0xf]
                  %493 = vst [vmem:[%s379 + $0xe0] sm:$0xf] %v492
                  %v494 = vld [vmem:[%s378 + $0x1bc] sm:$0xf]
                  %495 = vst [vmem:[%s379 + $0xe4] sm:$0xf] %v494
                  %v496 = vld [vmem:[%s378 + $0x1c0] sm:$0xf]
                  %497 = vst [vmem:[%s379 + $0xe8] sm:$0xf] %v496
                  %v498 = vld [vmem:[%s378 + $0x1c4] sm:$0xf]
                  %499 = vst [vmem:[%s379 + $0xec] sm:$0xf] %v498
                  %v500 = vld [vmem:[%s378 + $0x1c8] sm:$0xf]
                  %501 = vst [vmem:[%s379 + $0xf0] sm:$0xf] %v500
                  %v502 = vld [vmem:[%s378 + $0x1cc] sm:$0xf]
                  %503 = vst [vmem:[%s379 + $0xf4] sm:$0xf] %v502
                  %v504 = vld [vmem:[%s378 + $0x1d0] sm:$0xf]
                  %505 = vst [vmem:[%s379 + $0xf8] sm:$0xf] %v504
                  %v506 = vld [vmem:[%s378 + $0x1d4] sm:$0xf]
                  %507 = vst [vmem:[%s379 + $0xfc] sm:$0xf] %v506
                  %v508 = vld [vmem:[%s378 + $0x1d8] sm:$0xf]
                  %509 = vst [vmem:[%s379 + $0x100] sm:$0xf] %v508
                  %v510 = vld [vmem:[%s378 + $0x1dc] sm:$0xf]
                  %511 = vst [vmem:[%s379 + $0x104] sm:$0xf] %v510
                  %v512 = vld [vmem:[%s378 + $0x1e0] sm:$0xf]
                  %513 = vst [vmem:[%s379 + $0x108] sm:$0xf] %v512
                  %v514 = vld [vmem:[%s378 + $0x1e4] sm:$0xf]
                  %515 = vst [vmem:[%s379 + $0x10c] sm:$0xf] %v514
                  %v516 = vld [vmem:[%s378 + $0x1e8] sm:$0xf]
                  %517 = vst [vmem:[%s379 + $0x110] sm:$0xf] %v516
                  %v518 = vld [vmem:[%s378 + $0x1ec] sm:$0xf]
                  %519 = vst [vmem:[%s379 + $0x114] sm:$0xf] %v518
                  %v520 = vld [vmem:[%s378 + $0x1f0] sm:$0xf]
                  %521 = vst [vmem:[%s379 + $0x118] sm:$0xf] %v520
                  %v522 = vld [vmem:[%s378 + $0x1f4] sm:$0xf]
                  %523 = vst [vmem:[%s379 + $0x11c] sm:$0xf] %v522
                $region67: #{_lambda_.5} parent=54 // loop_footer
                  %s377 = sadd.s32 1, %s373
                $region68: #{_lambda_.5} parent=54 // loop_footer_branch
                  %372 = sbr.rel target = $region64
                $region69: #{_lambda_.5} parent=54 // loop_exit
                  _
              $region55: #{_lambda_.5} parent=39 // pred_fallthru
                _
            $region40: #{_lambda_.5} parent=35 // pred_fallthru
              _
            // Predicated region
            $region41: #{_lambda_.5} parent=35 // pred_check
              _
            $region42: #{_lambda_.5} parent=35 // pred_check_branch
              %207 = sbr.rel (0) target = $region44
            $region43: #{_lambda_.5} parent=35 // pred_region
              loop: start=0, step=1, limit=1
              $region45: #{_lambda_.5} parent=43 // loop_pre_header
                _
              $region46: #{_lambda_.5} parent=43 // loop_header
                %s210 = sphi 0, %s214
                %p211 = scmp.ge.s32.totalorder %s210, 1
                %s215 = sphi %s201, %s201
                %s216 = sphi %s198, %s198
              $region47: #{_lambda_.5} parent=43 // loop_header_branch
                %213 = sbr.rel (%p211) target = $region51
              $region48: #{_lambda_.5} parent=43 // loop_body
                %v217 = vld [vmem:[%s215] sm:$0xf]
                %218 = vst [vmem:[%s216] sm:$0xf] %v217
                %v219 = vld [vmem:[%s215 + $0x4] sm:$0xf]
                %220 = vst [vmem:[%s216 + $0x4] sm:$0xf] %v219
                %v221 = vld [vmem:[%s215 + $0x8] sm:$0xf]
                %222 = vst [vmem:[%s216 + $0x8] sm:$0xf] %v221
                %v223 = vld [vmem:[%s215 + $0xc] sm:$0xf]
                %224 = vst [vmem:[%s216 + $0xc] sm:$0xf] %v223
                %v225 = vld [vmem:[%s215 + $0x10] sm:$0xf]
                %226 = vst [vmem:[%s216 + $0x10] sm:$0xf] %v225
                %v227 = vld [vmem:[%s215 + $0x14] sm:$0xf]
                %228 = vst [vmem:[%s216 + $0x14] sm:$0xf] %v227
                %v229 = vld [vmem:[%s215 + $0x18] sm:$0xf]
                %230 = vst [vmem:[%s216 + $0x18] sm:$0xf] %v229
                %v231 = vld [vmem:[%s215 + $0x1c] sm:$0xf]
                %232 = vst [vmem:[%s216 + $0x1c] sm:$0xf] %v231
                %v233 = vld [vmem:[%s215 + $0x20] sm:$0xf]
                %234 = vst [vmem:[%s216 + $0x20] sm:$0xf] %v233
                %v235 = vld [vmem:[%s215 + $0x24] sm:$0xf]
                %236 = vst [vmem:[%s216 + $0x24] sm:$0xf] %v235
                %v237 = vld [vmem:[%s215 + $0x28] sm:$0xf]
                %238 = vst [vmem:[%s216 + $0x28] sm:$0xf] %v237
                %v239 = vld [vmem:[%s215 + $0x2c] sm:$0xf]
                %240 = vst [vmem:[%s216 + $0x2c] sm:$0xf] %v239
                %v241 = vld [vmem:[%s215 + $0x30] sm:$0xf]
                %242 = vst [vmem:[%s216 + $0x30] sm:$0xf] %v241
                %v243 = vld [vmem:[%s215 + $0x34] sm:$0xf]
                %244 = vst [vmem:[%s216 + $0x34] sm:$0xf] %v243
                %v245 = vld [vmem:[%s215 + $0x38] sm:$0xf]
                %246 = vst [vmem:[%s216 + $0x38] sm:$0xf] %v245
                %v247 = vld [vmem:[%s215 + $0x3c] sm:$0xf]
                %248 = vst [vmem:[%s216 + $0x3c] sm:$0xf] %v247
                %v249 = vld [vmem:[%s215 + $0x40] sm:$0xf]
                %250 = vst [vmem:[%s216 + $0x40] sm:$0xf] %v249
                %v251 = vld [vmem:[%s215 + $0x44] sm:$0xf]
                %252 = vst [vmem:[%s216 + $0x44] sm:$0xf] %v251
                %v253 = vld [vmem:[%s215 + $0x90] sm:$0xf]
                %254 = vst [vmem:[%s216 + $0x48] sm:$0xf] %v253
                %v255 = vld [vmem:[%s215 + $0x94] sm:$0xf]
                %256 = vst [vmem:[%s216 + $0x4c] sm:$0xf] %v255
                %v257 = vld [vmem:[%s215 + $0x98] sm:$0xf]
                %258 = vst [vmem:[%s216 + $0x50] sm:$0xf] %v257
                %v259 = vld [vmem:[%s215 + $0x9c] sm:$0xf]
                %260 = vst [vmem:[%s216 + $0x54] sm:$0xf] %v259
                %v261 = vld [vmem:[%s215 + $0xa0] sm:$0xf]
                %262 = vst [vmem:[%s216 + $0x58] sm:$0xf] %v261
                %v263 = vld [vmem:[%s215 + $0xa4] sm:$0xf]
                %264 = vst [vmem:[%s216 + $0x5c] sm:$0xf] %v263
                %v265 = vld [vmem:[%s215 + $0xa8] sm:$0xf]
                %266 = vst [vmem:[%s216 + $0x60] sm:$0xf] %v265
                %v267 = vld [vmem:[%s215 + $0xac] sm:$0xf]
                %268 = vst [vmem:[%s216 + $0x64] sm:$0xf] %v267
                %v269 = vld [vmem:[%s215 + $0xb0] sm:$0xf]
                %270 = vst [vmem:[%s216 + $0x68] sm:$0xf] %v269
                %v271 = vld [vmem:[%s215 + $0xb4] sm:$0xf]
                %272 = vst [vmem:[%s216 + $0x6c] sm:$0xf] %v271
                %v273 = vld [vmem:[%s215 + $0xb8] sm:$0xf]
                %274 = vst [vmem:[%s216 + $0x70] sm:$0xf] %v273
                %v275 = vld [vmem:[%s215 + $0xbc] sm:$0xf]
                %276 = vst [vmem:[%s216 + $0x74] sm:$0xf] %v275
                %v277 = vld [vmem:[%s215 + $0xc0] sm:$0xf]
                %278 = vst [vmem:[%s216 + $0x78] sm:$0xf] %v277
                %v279 = vld [vmem:[%s215 + $0xc4] sm:$0xf]
                %280 = vst [vmem:[%s216 + $0x7c] sm:$0xf] %v279
                %v281 = vld [vmem:[%s215 + $0xc8] sm:$0xf]
                %282 = vst [vmem:[%s216 + $0x80] sm:$0xf] %v281
                %v283 = vld [vmem:[%s215 + $0xcc] sm:$0xf]
                %284 = vst [vmem:[%s216 + $0x84] sm:$0xf] %v283
                %v285 = vld [vmem:[%s215 + $0xd0] sm:$0xf]
                %286 = vst [vmem:[%s216 + $0x88] sm:$0xf] %v285
                %v287 = vld [vmem:[%s215 + $0xd4] sm:$0xf]
                %288 = vst [vmem:[%s216 + $0x8c] sm:$0xf] %v287
                %v289 = vld [vmem:[%s215 + $0x120] sm:$0xf]
                %290 = vst [vmem:[%s216 + $0x90] sm:$0xf] %v289
                %v291 = vld [vmem:[%s215 + $0x124] sm:$0xf]
                %292 = vst [vmem:[%s216 + $0x94] sm:$0xf] %v291
                %v293 = vld [vmem:[%s215 + $0x128] sm:$0xf]
                %294 = vst [vmem:[%s216 + $0x98] sm:$0xf] %v293
                %v295 = vld [vmem:[%s215 + $0x12c] sm:$0xf]
                %296 = vst [vmem:[%s216 + $0x9c] sm:$0xf] %v295
                %v297 = vld [vmem:[%s215 + $0x130] sm:$0xf]
                %298 = vst [vmem:[%s216 + $0xa0] sm:$0xf] %v297
                %v299 = vld [vmem:[%s215 + $0x134] sm:$0xf]
                %300 = vst [vmem:[%s216 + $0xa4] sm:$0xf] %v299
                %v301 = vld [vmem:[%s215 + $0x138] sm:$0xf]
                %302 = vst [vmem:[%s216 + $0xa8] sm:$0xf] %v301
                %v303 = vld [vmem:[%s215 + $0x13c] sm:$0xf]
                %304 = vst [vmem:[%s216 + $0xac] sm:$0xf] %v303
                %v305 = vld [vmem:[%s215 + $0x140] sm:$0xf]
                %306 = vst [vmem:[%s216 + $0xb0] sm:$0xf] %v305
                %v307 = vld [vmem:[%s215 + $0x144] sm:$0xf]
                %308 = vst [vmem:[%s216 + $0xb4] sm:$0xf] %v307
                %v309 = vld [vmem:[%s215 + $0x148] sm:$0xf]
                %310 = vst [vmem:[%s216 + $0xb8] sm:$0xf] %v309
                %v311 = vld [vmem:[%s215 + $0x14c] sm:$0xf]
                %312 = vst [vmem:[%s216 + $0xbc] sm:$0xf] %v311
                %v313 = vld [vmem:[%s215 + $0x150] sm:$0xf]
                %314 = vst [vmem:[%s216 + $0xc0] sm:$0xf] %v313
                %v315 = vld [vmem:[%s215 + $0x154] sm:$0xf]
                %316 = vst [vmem:[%s216 + $0xc4] sm:$0xf] %v315
                %v317 = vld [vmem:[%s215 + $0x158] sm:$0xf]
                %318 = vst [vmem:[%s216 + $0xc8] sm:$0xf] %v317
                %v319 = vld [vmem:[%s215 + $0x15c] sm:$0xf]
                %320 = vst [vmem:[%s216 + $0xcc] sm:$0xf] %v319
                %v321 = vld [vmem:[%s215 + $0x160] sm:$0xf]
                %322 = vst [vmem:[%s216 + $0xd0] sm:$0xf] %v321
                %v323 = vld [vmem:[%s215 + $0x164] sm:$0xf]
                %324 = vst [vmem:[%s216 + $0xd4] sm:$0xf] %v323
                %v325 = vld [vmem:[%s215 + $0x1b0] sm:$0xf]
                %326 = vst [vmem:[%s216 + $0xd8] sm:$0xf] %v325
                %v327 = vld [vmem:[%s215 + $0x1b4] sm:$0xf]
                %328 = vst [vmem:[%s216 + $0xdc] sm:$0xf] %v327
                %v329 = vld [vmem:[%s215 + $0x1b8] sm:$0xf]
                %330 = vst [vmem:[%s216 + $0xe0] sm:$0xf] %v329
                %v331 = vld [vmem:[%s215 + $0x1bc] sm:$0xf]
                %332 = vst [vmem:[%s216 + $0xe4] sm:$0xf] %v331
                %v333 = vld [vmem:[%s215 + $0x1c0] sm:$0xf]
                %334 = vst [vmem:[%s216 + $0xe8] sm:$0xf] %v333
                %v335 = vld [vmem:[%s215 + $0x1c4] sm:$0xf]
                %336 = vst [vmem:[%s216 + $0xec] sm:$0xf] %v335
                %v337 = vld [vmem:[%s215 + $0x1c8] sm:$0xf]
                %338 = vst [vmem:[%s216 + $0xf0] sm:$0xf] %v337
                %v339 = vld [vmem:[%s215 + $0x1cc] sm:$0xf]
                %340 = vst [vmem:[%s216 + $0xf4] sm:$0xf] %v339
                %v341 = vld [vmem:[%s215 + $0x1d0] sm:$0xf]
                %342 = vst [vmem:[%s216 + $0xf8] sm:$0xf] %v341
                %v343 = vld [vmem:[%s215 + $0x1d4] sm:$0xf]
                %344 = vst [vmem:[%s216 + $0xfc] sm:$0xf] %v343
                %v345 = vld [vmem:[%s215 + $0x1d8] sm:$0xf]
                %346 = vst [vmem:[%s216 + $0x100] sm:$0xf] %v345
                %v347 = vld [vmem:[%s215 + $0x1dc] sm:$0xf]
                %348 = vst [vmem:[%s216 + $0x104] sm:$0xf] %v347
                %v349 = vld [vmem:[%s215 + $0x1e0] sm:$0xf]
                %350 = vst [vmem:[%s216 + $0x108] sm:$0xf] %v349
                %v351 = vld [vmem:[%s215 + $0x1e4] sm:$0xf]
                %352 = vst [vmem:[%s216 + $0x10c] sm:$0xf] %v351
                %v353 = vld [vmem:[%s215 + $0x1e8] sm:$0xf]
                %354 = vst [vmem:[%s216 + $0x110] sm:$0xf] %v353
                %v355 = vld [vmem:[%s215 + $0x1ec] sm:$0xf]
                %356 = vst [vmem:[%s216 + $0x114] sm:$0xf] %v355
                %v357 = vld [vmem:[%s215 + $0x1f0] sm:$0xf]
                %358 = vst [vmem:[%s216 + $0x118] sm:$0xf] %v357
                %v359 = vld [vmem:[%s215 + $0x1f4] sm:$0xf]
                %360 = vst [vmem:[%s216 + $0x11c] sm:$0xf] %v359
              $region49: #{_lambda_.5} parent=43 // loop_footer
                %s214 = sadd.s32 1, %s210
              $region50: #{_lambda_.5} parent=43 // loop_footer_branch
                %209 = sbr.rel target = $region46
              $region51: #{_lambda_.5} parent=43 // loop_exit
                _
            $region44: #{_lambda_.5} parent=35 // pred_fallthru
              _
          $region36: #{_lambda_.5} parent=31 // pred_fallthru
            _
          %524 = vnop
        $region32: #{_lambda_.5} parent=27 // pred_fallthru
          _
      $region28: #{_lambda_.5} parent=5 // pred_fallthru
        _
      %p525 = scmp.le.s32.totalorder 1, %s10
      %p526 = scmp.lt.s32.totalorder %s10, 3
      %p527 = pnand %p525, %p526
      %p528 = pneg %p527
      // Predicated region
      $region70: #{_lambda_.5} parent=5 // pred_check
        _
      $region71: #{_lambda_.5} parent=5 // pred_check_branch
        %530 = sbr.rel (%p527) target = $region73
      $region72: #{_lambda_.5} parent=5 // pred_region
        %s531 = ssub.s32 %s10, 1
        %s532 = sand.u32 %s35, 1
        %s533 = sand.u32 %s35, 1
        %s534 = smul.addr %s533, 288
        %s535 = scalar_lea.vmem [#allocation3], %s534
        // Predicated region
        $region74: #{_lambda_.5} parent=72 // pred_check
          %p536 = pneg %p48
        $region75: #{_lambda_.5} parent=72 // pred_check_branch
          %538 = sbr.rel (%p536) target = $region77
        $region76: #{_lambda_.5} parent=72 // pred_region
          _
        $region77: #{_lambda_.5} parent=72 // pred_fallthru
          _
        %s539 = sand.u32 %s35, 1
        %s540 = sand.u32 %s35, 1
        %s541 = smul.addr %s540, 288
        %s542 = scalar_lea.vmem [#allocation3], %s541
        %p543 = pneg %p48
        %p544 = pneg %p45
        %p545 = scmp.lt.s32.totalorder %s20, 0
        %s546 = scalar_select %p545, %s20, 0
        %s547 = smul.addr %s546, 4
        %s548 = scalar_lea.vmem %s1, %s547
        %p549 = pneg %p74
        %p550 = pneg %p71
        %p551 = scmp.lt.s32.totalorder %s20, 0
        %s552 = scalar_select %p551, %s20, 0
        %s553 = scalar_lea.vmem %s2, %s552
        %p554 = pneg %p100
        %p555 = pneg %p97
        %p556 = scmp.lt.s32.totalorder %s20, 0
        %s557 = scalar_select %p556, %s20, 0
        %s558 = scalar_lea.vmem %s3, %s557
        %p559 = pneg %p126
        %p560 = pneg %p123
        %p561 = pneg %p154
        %p562 = pneg %p151
        %p563 = scmp.lt.s32.totalorder %s19, 1
        %s564 = scalar_select %p563, %s19, 1
        %p565 = scmp.lt.s32.totalorder %s20, 0
        %s566 = scalar_select %p565, %s20, 0
        %s567 = smul.addr %s564, 8
        %s568 = sadd.s32 %s566, %s567
        %s569 = smul.addr %s568, 4
        %s570 = scalar_lea.vmem %s4, %s569
        %p571 = scmp.lt.s32.totalorder %s20, 0
        %s572 = scalar_select %p571, %s20, 0
        %s573 = smul.addr %s572, 4
        %s574 = scalar_lea.vmem %s1, %s573
        %p575 = scmp.lt.s32.totalorder %s20, 0
        %s576 = scalar_select %p575, %s20, 0
        %s577 = scalar_lea.vmem %s2, %s576
        %p578 = scmp.lt.s32.totalorder %s20, 0
        %s579 = scalar_select %p578, %s20, 0
        %s580 = scalar_lea.vmem %s3, %s579
        %p581 = scmp.lt.s32.totalorder %s19, 1
        %s582 = scalar_select %p581, %s19, 1
        %p583 = scmp.lt.s32.totalorder %s20, 0
        %s584 = scalar_select %p583, %s20, 0
        %s585 = smul.addr %s582, 8
        %s586 = sadd.s32 %s584, %s585
        %s587 = smul.addr %s586, 4
        %s588 = scalar_lea.vmem %s4, %s587
        %v590 = vld [vmem:[%s535] sm:$0xf]
        %v591 = vld [vmem:[%s535 + $0x8] sm:$0xf]
        %v592 = vld [vmem:[%s535 + $0x10] sm:$0xf]
        %v593 = vld [vmem:[%s535 + $0x18] sm:$0xf]
        %v594 = vld [vmem:[%s535 + $0x20] sm:$0xf]
        %v595 = vld [vmem:[%s535 + $0x28] sm:$0xf]
        %v596 = vld [vmem:[%s535 + $0x30] sm:$0xf]
        %v597 = vld [vmem:[%s535 + $0x38] sm:$0xf]
        %v606 = vunpack.c.l.b16 %v590
        %v607 = vunpack.c.l.b16 %v591
        %v608 = vunpack.c.l.b16 %v592
        %v609 = vunpack.c.l.b16 %v593
        %v610 = vunpack.c.l.b16 %v594
        %v611 = vunpack.c.l.b16 %v595
        %v612 = vunpack.c.l.b16 %v596
        %v613 = vunpack.c.l.b16 %v597
        %v614 = vpack.c.b16 %v607, %v606
        %v615 = vpack.c.b16 %v609, %v608
        %v616 = vpack.c.b16 %v611, %v610
        %v617 = vpack.c.b16 %v613, %v612
        %vm622 = vcmask 261120
        %623 = vst.msk [vmem:[#allocation2] sm:$0xff] %vm622, %v614
        %624 = vst.msk [vmem:[#allocation2 + $0x18] sm:$0xff] %vm622, %v615
        %625 = vst.msk [vmem:[#allocation2 + $0x30] sm:$0xff] %vm622, %v616
        %626 = vst.msk [vmem:[#allocation2 + $0x48] sm:$0xff] %vm622, %v617
        %s627 = scalar_lea.vmem %s535, 72 [#allocation3]
        %v628 = vld [vmem:[%s627] sm:$0xf]
        %v629 = vld [vmem:[%s627 + $0x8] sm:$0xf]
        %v630 = vld [vmem:[%s627 + $0x10] sm:$0xf]
        %v631 = vld [vmem:[%s627 + $0x18] sm:$0xf]
        %v632 = vld [vmem:[%s627 + $0x20] sm:$0xf]
        %v633 = vld [vmem:[%s627 + $0x28] sm:$0xf]
        %v634 = vld [vmem:[%s627 + $0x30] sm:$0xf]
        %v635 = vld [vmem:[%s627 + $0x38] sm:$0xf]
        %v644 = vunpack.c.l.b16 %v628
        %v645 = vunpack.c.l.b16 %v629
        %v646 = vunpack.c.l.b16 %v630
        %v647 = vunpack.c.l.b16 %v631
        %v648 = vunpack.c.l.b16 %v632
        %v649 = vunpack.c.l.b16 %v633
        %v650 = vunpack.c.l.b16 %v634
        %v651 = vunpack.c.l.b16 %v635
        %v652 = vpack.c.b16 %v645, %v644
        %v653 = vpack.c.b16 %v647, %v646
        %v654 = vpack.c.b16 %v649, %v648
        %v655 = vpack.c.b16 %v651, %v650
        %656 = vrot.lane.b32.xlu0 %v652, 32
        %v657 = vpop.permute.xlu0 %656
        %658 = vrot.lane.b32.xlu0 %v653, 32
        %v659 = vpop.permute.xlu0 %658
        %660 = vrot.lane.b32.xlu0 %v654, 32
        %v661 = vpop.permute.xlu0 %660
        %662 = vrot.lane.b32.xlu0 %v655, 32
        %v663 = vpop.permute.xlu0 %662
        %vm668 = vcmask 523520
        %669 = vst.msk [vmem:[#allocation2] sm:$0xff] %vm668, %v657
        %670 = vst.msk [vmem:[#allocation2 + $0x18] sm:$0xff] %vm668, %v659
        %671 = vst.msk [vmem:[#allocation2 + $0x30] sm:$0xff] %vm668, %v661
        %672 = vst.msk [vmem:[#allocation2 + $0x48] sm:$0xff] %vm668, %v663
        %v673 = vld [vmem:[%s535] sm:$0xf]
        %v674 = vld [vmem:[%s535 + $0x4] sm:$0x1]
        %v675 = vld [vmem:[%s535 + $0x8] sm:$0xf]
        %v676 = vld [vmem:[%s535 + $0xc] sm:$0x1]
        %v677 = vld [vmem:[%s535 + $0x10] sm:$0xf]
        %v678 = vld [vmem:[%s535 + $0x14] sm:$0x1]
        %v679 = vld [vmem:[%s535 + $0x18] sm:$0xf]
        %v680 = vld [vmem:[%s535 + $0x1c] sm:$0x1]
        %v681 = vld [vmem:[%s535 + $0x20] sm:$0xf]
        %v682 = vld [vmem:[%s535 + $0x24] sm:$0x1]
        %v683 = vld [vmem:[%s535 + $0x28] sm:$0xf]
        %v684 = vld [vmem:[%s535 + $0x2c] sm:$0x1]
        %v685 = vld [vmem:[%s535 + $0x30] sm:$0xf]
        %v686 = vld [vmem:[%s535 + $0x34] sm:$0x1]
        %v687 = vld [vmem:[%s535 + $0x38] sm:$0xf]
        %v688 = vld [vmem:[%s535 + $0x3c] sm:$0x1]
        %vm689 = vsmask.f32 3328
        %vm690 = vsmask.f32 7440
        %vm691 = vmor %vm689, %vm690
        %v693 = vshrl.u32 %v673, 16
        %v695 = vrot.slane %v693, 4
        %v696 = vshll.u32 %v673, 16
        %v698 = vrot.slane %v696, 5
        %v699 = vor.u32 %v695, %v698
        %v700 = vrot.slane %v699, 4
        %v702 = vshll.u32 %v674, 16
        %v704 = vrot.slane %v702, 5
        %v705 = vsel %vm691, %v700, %v704
        %v707 = vshrl.u32 %v675, 16
        %v709 = vrot.slane %v707, 4
        %v710 = vshll.u32 %v675, 16
        %v712 = vrot.slane %v710, 5
        %v713 = vor.u32 %v709, %v712
        %v714 = vrot.slane %v713, 4
        %v716 = vshll.u32 %v676, 16
        %v718 = vrot.slane %v716, 5
        %v719 = vsel %vm691, %v714, %v718
        %v721 = vshrl.u32 %v677, 16
        %v723 = vrot.slane %v721, 4
        %v724 = vshll.u32 %v677, 16
        %v726 = vrot.slane %v724, 5
        %v727 = vor.u32 %v723, %v726
        %v728 = vrot.slane %v727, 4
        %v730 = vshll.u32 %v678, 16
        %v732 = vrot.slane %v730, 5
        %v733 = vsel %vm691, %v728, %v732
        %v735 = vshrl.u32 %v679, 16
        %v737 = vrot.slane %v735, 4
        %v738 = vshll.u32 %v679, 16
        %v740 = vrot.slane %v738, 5
        %v741 = vor.u32 %v737, %v740
        %v742 = vrot.slane %v741, 4
        %v744 = vshll.u32 %v680, 16
        %v746 = vrot.slane %v744, 5
        %v747 = vsel %vm691, %v742, %v746
        %v749 = vshrl.u32 %v681, 16
        %v751 = vrot.slane %v749, 4
        %v752 = vshll.u32 %v681, 16
        %v754 = vrot.slane %v752, 5
        %v755 = vor.u32 %v751, %v754
        %v756 = vrot.slane %v755, 4
        %v758 = vshll.u32 %v682, 16
        %v760 = vrot.slane %v758, 5
        %v761 = vsel %vm691, %v756, %v760
        %v763 = vshrl.u32 %v683, 16
        %v765 = vrot.slane %v763, 4
        %v766 = vshll.u32 %v683, 16
        %v768 = vrot.slane %v766, 5
        %v769 = vor.u32 %v765, %v768
        %v770 = vrot.slane %v769, 4
        %v772 = vshll.u32 %v684, 16
        %v774 = vrot.slane %v772, 5
        %v775 = vsel %vm691, %v770, %v774
        %v777 = vshrl.u32 %v685, 16
        %v779 = vrot.slane %v777, 4
        %v780 = vshll.u32 %v685, 16
        %v782 = vrot.slane %v780, 5
        %v783 = vor.u32 %v779, %v782
        %v784 = vrot.slane %v783, 4
        %v786 = vshll.u32 %v686, 16
        %v788 = vrot.slane %v786, 5
        %v789 = vsel %vm691, %v784, %v788
        %v791 = vshrl.u32 %v687, 16
        %v793 = vrot.slane %v791, 4
        %v794 = vshll.u32 %v687, 16
        %v796 = vrot.slane %v794, 5
        %v797 = vor.u32 %v793, %v796
        %v798 = vrot.slane %v797, 4
        %v800 = vshll.u32 %v688, 16
        %v802 = vrot.slane %v800, 5
        %v803 = vsel %vm691, %v798, %v802
        %v804 = vunpack.c.l.b16 %v705
        %v805 = vunpack.c.l.b16 %v719
        %v806 = vunpack.c.l.b16 %v733
        %v807 = vunpack.c.l.b16 %v747
        %v808 = vunpack.c.l.b16 %v761
        %v809 = vunpack.c.l.b16 %v775
        %v810 = vunpack.c.l.b16 %v789
        %v811 = vunpack.c.l.b16 %v803
        %v812 = vpack.c.b16 %v805, %v804
        %v813 = vpack.c.b16 %v807, %v806
        %v814 = vpack.c.b16 %v809, %v808
        %v815 = vpack.c.b16 %v811, %v810
        %816 = vrot.lane.b32.xlu0 %v812, 64
        %v817 = vpop.permute.xlu0 %816
        %818 = vrot.lane.b32.xlu0 %v813, 64
        %v819 = vpop.permute.xlu0 %818
        %820 = vrot.lane.b32.xlu0 %v814, 64
        %v821 = vpop.permute.xlu0 %820
        %822 = vrot.lane.b32.xlu0 %v815, 64
        %v823 = vpop.permute.xlu0 %822
        %vm828 = vcmask 785920
        %829 = vst.msk [vmem:[#allocation2] sm:$0xff] %vm828, %v817
        %830 = vst.msk [vmem:[#allocation2 + $0x18] sm:$0xff] %vm828, %v819
        %831 = vst.msk [vmem:[#allocation2 + $0x30] sm:$0xff] %vm828, %v821
        %832 = vst.msk [vmem:[#allocation2 + $0x48] sm:$0xff] %vm828, %v823
        %s833 = scalar_lea.vmem %s535, 144 [#allocation3]
        %v834 = vld [vmem:[%s833] sm:$0xf]
        %v835 = vld [vmem:[%s833 + $0x8] sm:$0xf]
        %v836 = vld [vmem:[%s833 + $0x10] sm:$0xf]
        %v837 = vld [vmem:[%s833 + $0x18] sm:$0xf]
        %v838 = vld [vmem:[%s833 + $0x20] sm:$0xf]
        %v839 = vld [vmem:[%s833 + $0x28] sm:$0xf]
        %v840 = vld [vmem:[%s833 + $0x30] sm:$0xf]
        %v841 = vld [vmem:[%s833 + $0x38] sm:$0xf]
        %v850 = vunpack.c.l.b16 %v834
        %v851 = vunpack.c.l.b16 %v835
        %v852 = vunpack.c.l.b16 %v836
        %v853 = vunpack.c.l.b16 %v837
        %v854 = vunpack.c.l.b16 %v838
        %v855 = vunpack.c.l.b16 %v839
        %v856 = vunpack.c.l.b16 %v840
        %v857 = vunpack.c.l.b16 %v841
        %v858 = vpack.c.b16 %v851, %v850
        %v859 = vpack.c.b16 %v853, %v852
        %v860 = vpack.c.b16 %v855, %v854
        %v861 = vpack.c.b16 %v857, %v856
        %862 = vrot.lane.b32.xlu0 %v858, 96
        %v863 = vpop.permute.xlu0 %862
        %864 = vrot.lane.b32.xlu0 %v859, 96
        %v865 = vpop.permute.xlu0 %864
        %866 = vrot.lane.b32.xlu0 %v860, 96
        %v867 = vpop.permute.xlu0 %866
        %868 = vrot.lane.b32.xlu0 %v861, 96
        %v869 = vpop.permute.xlu0 %868
        %vm874 = vcmask 1048320
        %875 = vst.msk [vmem:[#allocation2] sm:$0xff] %vm874, %v863
        %876 = vst.msk [vmem:[#allocation2 + $0x18] sm:$0xff] %vm874, %v865
        %877 = vst.msk [vmem:[#allocation2 + $0x30] sm:$0xff] %vm874, %v867
        %878 = vst.msk [vmem:[#allocation2 + $0x48] sm:$0xff] %vm874, %v869
        %s879 = scalar_lea.vmem %s535, 216 [#allocation3]
        %v880 = vld [vmem:[%s879] sm:$0xf]
        %v881 = vld [vmem:[%s879 + $0x8] sm:$0xf]
        %v882 = vld [vmem:[%s879 + $0x10] sm:$0xf]
        %v883 = vld [vmem:[%s879 + $0x18] sm:$0xf]
        %v884 = vld [vmem:[%s879 + $0x20] sm:$0xf]
        %v885 = vld [vmem:[%s879 + $0x28] sm:$0xf]
        %v886 = vld [vmem:[%s879 + $0x30] sm:$0xf]
        %v887 = vld [vmem:[%s879 + $0x38] sm:$0xf]
        %v896 = vunpack.c.l.b16 %v880
        %v897 = vunpack.c.l.b16 %v881
        %v898 = vunpack.c.l.b16 %v882
        %v899 = vunpack.c.l.b16 %v883
        %v900 = vunpack.c.l.b16 %v884
        %v901 = vunpack.c.l.b16 %v885
        %v902 = vunpack.c.l.b16 %v886
        %v903 = vunpack.c.l.b16 %v887
        %v904 = vpack.c.b16 %v897, %v896
        %v905 = vpack.c.b16 %v899, %v898
        %v906 = vpack.c.b16 %v901, %v900
        %v907 = vpack.c.b16 %v903, %v902
        %912 = vst.msk [vmem:[#allocation2 + $0x8] sm:$0xff] %vm622, %v904
        %913 = vst.msk [vmem:[#allocation2 + $0x20] sm:$0xff] %vm622, %v905
        %914 = vst.msk [vmem:[#allocation2 + $0x38] sm:$0xff] %vm622, %v906
        %915 = vst.msk [vmem:[#allocation2 + $0x50] sm:$0xff] %vm622, %v907
        %v916 = vld [vmem:[%s833] sm:$0xf]
        %v917 = vld [vmem:[%s833 + $0x4] sm:$0x1]
        %v918 = vld [vmem:[%s833 + $0x8] sm:$0xf]
        %v919 = vld [vmem:[%s833 + $0xc] sm:$0x1]
        %v920 = vld [vmem:[%s833 + $0x10] sm:$0xf]
        %v921 = vld [vmem:[%s833 + $0x14] sm:$0x1]
        %v922 = vld [vmem:[%s833 + $0x18] sm:$0xf]
        %v923 = vld [vmem:[%s833 + $0x1c] sm:$0x1]
        %v924 = vld [vmem:[%s833 + $0x20] sm:$0xf]
        %v925 = vld [vmem:[%s833 + $0x24] sm:$0x1]
        %v926 = vld [vmem:[%s833 + $0x28] sm:$0xf]
        %v927 = vld [vmem:[%s833 + $0x2c] sm:$0x1]
        %v928 = vld [vmem:[%s833 + $0x30] sm:$0xf]
        %v929 = vld [vmem:[%s833 + $0x34] sm:$0x1]
        %v930 = vld [vmem:[%s833 + $0x38] sm:$0xf]
        %v931 = vld [vmem:[%s833 + $0x3c] sm:$0x1]
        %v933 = vshrl.u32 %v916, 16
        %v935 = vrot.slane %v933, 4
        %v936 = vshll.u32 %v916, 16
        %v938 = vrot.slane %v936, 5
        %v939 = vor.u32 %v935, %v938
        %v940 = vrot.slane %v939, 4
        %v942 = vshll.u32 %v917, 16
        %v944 = vrot.slane %v942, 5
        %v945 = vsel %vm691, %v940, %v944
        %v947 = vshrl.u32 %v918, 16
        %v949 = vrot.slane %v947, 4
        %v950 = vshll.u32 %v918, 16
        %v952 = vrot.slane %v950, 5
        %v953 = vor.u32 %v949, %v952
        %v954 = vrot.slane %v953, 4
        %v956 = vshll.u32 %v919, 16
        %v958 = vrot.slane %v956, 5
        %v959 = vsel %vm691, %v954, %v958
        %v961 = vshrl.u32 %v920, 16
        %v963 = vrot.slane %v961, 4
        %v964 = vshll.u32 %v920, 16
        %v966 = vrot.slane %v964, 5
        %v967 = vor.u32 %v963, %v966
        %v968 = vrot.slane %v967, 4
        %v970 = vshll.u32 %v921, 16
        %v972 = vrot.slane %v970, 5
        %v973 = vsel %vm691, %v968, %v972
        %v975 = vshrl.u32 %v922, 16
        %v977 = vrot.slane %v975, 4
        %v978 = vshll.u32 %v922, 16
        %v980 = vrot.slane %v978, 5
        %v981 = vor.u32 %v977, %v980
        %v982 = vrot.slane %v981, 4
        %v984 = vshll.u32 %v923, 16
        %v986 = vrot.slane %v984, 5
        %v987 = vsel %vm691, %v982, %v986
        %v989 = vshrl.u32 %v924, 16
        %v991 = vrot.slane %v989, 4
        %v992 = vshll.u32 %v924, 16
        %v994 = vrot.slane %v992, 5
        %v995 = vor.u32 %v991, %v994
        %v996 = vrot.slane %v995, 4
        %v998 = vshll.u32 %v925, 16
        %v1000 = vrot.slane %v998, 5
        %v1001 = vsel %vm691, %v996, %v1000
        %v1003 = vshrl.u32 %v926, 16
        %v1005 = vrot.slane %v1003, 4
        %v1006 = vshll.u32 %v926, 16
        %v1008 = vrot.slane %v1006, 5
        %v1009 = vor.u32 %v1005, %v1008
        %v1010 = vrot.slane %v1009, 4
        %v1012 = vshll.u32 %v927, 16
        %v1014 = vrot.slane %v1012, 5
        %v1015 = vsel %vm691, %v1010, %v1014
        %v1017 = vshrl.u32 %v928, 16
        %v1019 = vrot.slane %v1017, 4
        %v1020 = vshll.u32 %v928, 16
        %v1022 = vrot.slane %v1020, 5
        %v1023 = vor.u32 %v1019, %v1022
        %v1024 = vrot.slane %v1023, 4
        %v1026 = vshll.u32 %v929, 16
        %v1028 = vrot.slane %v1026, 5
        %v1029 = vsel %vm691, %v1024, %v1028
        %v1031 = vshrl.u32 %v930, 16
        %v1033 = vrot.slane %v1031, 4
        %v1034 = vshll.u32 %v930, 16
        %v1036 = vrot.slane %v1034, 5
        %v1037 = vor.u32 %v1033, %v1036
        %v1038 = vrot.slane %v1037, 4
        %v1040 = vshll.u32 %v931, 16
        %v1042 = vrot.slane %v1040, 5
        %v1043 = vsel %vm691, %v1038, %v1042
        %v1044 = vunpack.c.l.b16 %v945
        %v1045 = vunpack.c.l.b16 %v959
        %v1046 = vunpack.c.l.b16 %v973
        %v1047 = vunpack.c.l.b16 %v987
        %v1048 = vunpack.c.l.b16 %v1001
        %v1049 = vunpack.c.l.b16 %v1015
        %v1050 = vunpack.c.l.b16 %v1029
        %v1051 = vunpack.c.l.b16 %v1043
        %v1052 = vpack.c.b16 %v1045, %v1044
        %v1053 = vpack.c.b16 %v1047, %v1046
        %v1054 = vpack.c.b16 %v1049, %v1048
        %v1055 = vpack.c.b16 %v1051, %v1050
        %1056 = vrot.lane.b32.xlu0 %v1052, 32
        %v1057 = vpop.permute.xlu0 %1056
        %1058 = vrot.lane.b32.xlu0 %v1053, 32
        %v1059 = vpop.permute.xlu0 %1058
        %1060 = vrot.lane.b32.xlu0 %v1054, 32
        %v1061 = vpop.permute.xlu0 %1060
        %1062 = vrot.lane.b32.xlu0 %v1055, 32
        %v1063 = vpop.permute.xlu0 %1062
        %1068 = vst.msk [vmem:[#allocation2 + $0x8] sm:$0xff] %vm668, %v1057
        %1069 = vst.msk [vmem:[#allocation2 + $0x20] sm:$0xff] %vm668, %v1059
        %1070 = vst.msk [vmem:[#allocation2 + $0x38] sm:$0xff] %vm668, %v1061
        %1071 = vst.msk [vmem:[#allocation2 + $0x50] sm:$0xff] %vm668, %v1063
        %v1072 = vld [vmem:[%s535 + $0x8] sm:$0xf]
        %v1073 = vld [vmem:[%s535 + $0x10] sm:$0xf]
        %v1074 = vld [vmem:[%s535 + $0x18] sm:$0xf]
        %v1075 = vld [vmem:[%s535 + $0x20] sm:$0xf]
        %v1076 = vld [vmem:[%s535 + $0x28] sm:$0xf]
        %v1077 = vld [vmem:[%s535 + $0x30] sm:$0xf]
        %v1078 = vld [vmem:[%s535 + $0x38] sm:$0xf]
        %v1079 = vld [vmem:[%s535 + $0x40] sm:$0xf]
        %v1088 = vunpack.c.l.b16 %v1072
        %v1089 = vunpack.c.l.b16 %v1073
        %v1090 = vunpack.c.l.b16 %v1074
        %v1091 = vunpack.c.l.b16 %v1075
        %v1092 = vunpack.c.l.b16 %v1076
        %v1093 = vunpack.c.l.b16 %v1077
        %v1094 = vunpack.c.l.b16 %v1078
        %v1095 = vunpack.c.l.b16 %v1079
        %v1096 = vpack.c.b16 %v1089, %v1088
        %v1097 = vpack.c.b16 %v1091, %v1090
        %v1098 = vpack.c.b16 %v1093, %v1092
        %v1099 = vpack.c.b16 %v1095, %v1094
        %1100 = vrot.lane.b32.xlu0 %v1096, 64
        %v1101 = vpop.permute.xlu0 %1100
        %1102 = vrot.lane.b32.xlu0 %v1097, 64
        %v1103 = vpop.permute.xlu0 %1102
        %1104 = vrot.lane.b32.xlu0 %v1098, 64
        %v1105 = vpop.permute.xlu0 %1104
        %1106 = vrot.lane.b32.xlu0 %v1099, 64
        %v1107 = vpop.permute.xlu0 %1106
        %1112 = vst.msk [vmem:[#allocation2 + $0x8] sm:$0xff] %vm828, %v1101
        %1113 = vst.msk [vmem:[#allocation2 + $0x20] sm:$0xff] %vm828, %v1103
        %1114 = vst.msk [vmem:[#allocation2 + $0x38] sm:$0xff] %vm828, %v1105
        %1115 = vst.msk [vmem:[#allocation2 + $0x50] sm:$0xff] %vm828, %v1107
        %v1116 = vld [vmem:[%s627 + $0x8] sm:$0xf]
        %v1117 = vld [vmem:[%s627 + $0x10] sm:$0xf]
        %v1118 = vld [vmem:[%s627 + $0x18] sm:$0xf]
        %v1119 = vld [vmem:[%s627 + $0x20] sm:$0xf]
        %v1120 = vld [vmem:[%s627 + $0x28] sm:$0xf]
        %v1121 = vld [vmem:[%s627 + $0x30] sm:$0xf]
        %v1122 = vld [vmem:[%s627 + $0x38] sm:$0xf]
        %v1123 = vld [vmem:[%s627 + $0x40] sm:$0xf]
        %v1132 = vunpack.c.l.b16 %v1116
        %v1133 = vunpack.c.l.b16 %v1117
        %v1134 = vunpack.c.l.b16 %v1118
        %v1135 = vunpack.c.l.b16 %v1119
        %v1136 = vunpack.c.l.b16 %v1120
        %v1137 = vunpack.c.l.b16 %v1121
        %v1138 = vunpack.c.l.b16 %v1122
        %v1139 = vunpack.c.l.b16 %v1123
        %v1140 = vpack.c.b16 %v1133, %v1132
        %v1141 = vpack.c.b16 %v1135, %v1134
        %v1142 = vpack.c.b16 %v1137, %v1136
        %v1143 = vpack.c.b16 %v1139, %v1138
        %1144 = vrot.lane.b32.xlu0 %v1140, 96
        %v1145 = vpop.permute.xlu0 %1144
        %1146 = vrot.lane.b32.xlu0 %v1141, 96
        %v1147 = vpop.permute.xlu0 %1146
        %1148 = vrot.lane.b32.xlu0 %v1142, 96
        %v1149 = vpop.permute.xlu0 %1148
        %1150 = vrot.lane.b32.xlu0 %v1143, 96
        %v1151 = vpop.permute.xlu0 %1150
        %1156 = vst.msk [vmem:[#allocation2 + $0x8] sm:$0xff] %vm874, %v1145
        %1157 = vst.msk [vmem:[#allocation2 + $0x20] sm:$0xff] %vm874, %v1147
        %1158 = vst.msk [vmem:[#allocation2 + $0x38] sm:$0xff] %vm874, %v1149
        %1159 = vst.msk [vmem:[#allocation2 + $0x50] sm:$0xff] %vm874, %v1151
        %v1160 = vld [vmem:[%s535 + $0x8] sm:$0xf]
        %v1161 = vld [vmem:[%s535 + $0xc] sm:$0x1]
        %v1162 = vld [vmem:[%s535 + $0x10] sm:$0xf]
        %v1163 = vld [vmem:[%s535 + $0x14] sm:$0x1]
        %v1164 = vld [vmem:[%s535 + $0x18] sm:$0xf]
        %v1165 = vld [vmem:[%s535 + $0x1c] sm:$0x1]
        %v1166 = vld [vmem:[%s535 + $0x20] sm:$0xf]
        %v1167 = vld [vmem:[%s535 + $0x24] sm:$0x1]
        %v1168 = vld [vmem:[%s535 + $0x28] sm:$0xf]
        %v1169 = vld [vmem:[%s535 + $0x2c] sm:$0x1]
        %v1170 = vld [vmem:[%s535 + $0x30] sm:$0xf]
        %v1171 = vld [vmem:[%s535 + $0x34] sm:$0x1]
        %v1172 = vld [vmem:[%s535 + $0x38] sm:$0xf]
        %v1173 = vld [vmem:[%s535 + $0x3c] sm:$0x1]
        %v1174 = vld [vmem:[%s535 + $0x40] sm:$0xf]
        %v1175 = vld [vmem:[%s535 + $0x44] sm:$0x1]
        %v1177 = vshrl.u32 %v1160, 16
        %v1179 = vrot.slane %v1177, 4
        %v1180 = vshll.u32 %v1160, 16
        %v1182 = vrot.slane %v1180, 5
        %v1183 = vor.u32 %v1179, %v1182
        %v1184 = vrot.slane %v1183, 4
        %v1186 = vshll.u32 %v1161, 16
        %v1188 = vrot.slane %v1186, 5
        %v1189 = vsel %vm691, %v1184, %v1188
        %v1191 = vshrl.u32 %v1162, 16
        %v1193 = vrot.slane %v1191, 4
        %v1194 = vshll.u32 %v1162, 16
        %v1196 = vrot.slane %v1194, 5
        %v1197 = vor.u32 %v1193, %v1196
        %v1198 = vrot.slane %v1197, 4
        %v1200 = vshll.u32 %v1163, 16
        %v1202 = vrot.slane %v1200, 5
        %v1203 = vsel %vm691, %v1198, %v1202
        %v1205 = vshrl.u32 %v1164, 16
        %v1207 = vrot.slane %v1205, 4
        %v1208 = vshll.u32 %v1164, 16
        %v1210 = vrot.slane %v1208, 5
        %v1211 = vor.u32 %v1207, %v1210
        %v1212 = vrot.slane %v1211, 4
        %v1214 = vshll.u32 %v1165, 16
        %v1216 = vrot.slane %v1214, 5
        %v1217 = vsel %vm691, %v1212, %v1216
        %v1219 = vshrl.u32 %v1166, 16
        %v1221 = vrot.slane %v1219, 4
        %v1222 = vshll.u32 %v1166, 16
        %v1224 = vrot.slane %v1222, 5
        %v1225 = vor.u32 %v1221, %v1224
        %v1226 = vrot.slane %v1225, 4
        %v1228 = vshll.u32 %v1167, 16
        %v1230 = vrot.slane %v1228, 5
        %v1231 = vsel %vm691, %v1226, %v1230
        %v1233 = vshrl.u32 %v1168, 16
        %v1235 = vrot.slane %v1233, 4
        %v1236 = vshll.u32 %v1168, 16
        %v1238 = vrot.slane %v1236, 5
        %v1239 = vor.u32 %v1235, %v1238
        %v1240 = vrot.slane %v1239, 4
        %v1242 = vshll.u32 %v1169, 16
        %v1244 = vrot.slane %v1242, 5
        %v1245 = vsel %vm691, %v1240, %v1244
        %v1247 = vshrl.u32 %v1170, 16
        %v1249 = vrot.slane %v1247, 4
        %v1250 = vshll.u32 %v1170, 16
        %v1252 = vrot.slane %v1250, 5
        %v1253 = vor.u32 %v1249, %v1252
        %v1254 = vrot.slane %v1253, 4
        %v1256 = vshll.u32 %v1171, 16
        %v1258 = vrot.slane %v1256, 5
        %v1259 = vsel %vm691, %v1254, %v1258
        %v1261 = vshrl.u32 %v1172, 16
        %v1263 = vrot.slane %v1261, 4
        %v1264 = vshll.u32 %v1172, 16
        %v1266 = vrot.slane %v1264, 5
        %v1267 = vor.u32 %v1263, %v1266
        %v1268 = vrot.slane %v1267, 4
        %v1270 = vshll.u32 %v1173, 16
        %v1272 = vrot.slane %v1270, 5
        %v1273 = vsel %vm691, %v1268, %v1272
        %v1275 = vshrl.u32 %v1174, 16
        %v1277 = vrot.slane %v1275, 4
        %v1278 = vshll.u32 %v1174, 16
        %v1280 = vrot.slane %v1278, 5
        %v1281 = vor.u32 %v1277, %v1280
        %v1282 = vrot.slane %v1281, 4
        %v1284 = vshll.u32 %v1175, 16
        %v1286 = vrot.slane %v1284, 5
        %v1287 = vsel %vm691, %v1282, %v1286
        %v1288 = vunpack.c.l.b16 %v1189
        %v1289 = vunpack.c.l.b16 %v1203
        %v1290 = vunpack.c.l.b16 %v1217
        %v1291 = vunpack.c.l.b16 %v1231
        %v1292 = vunpack.c.l.b16 %v1245
        %v1293 = vunpack.c.l.b16 %v1259
        %v1294 = vunpack.c.l.b16 %v1273
        %v1295 = vunpack.c.l.b16 %v1287
        %v1296 = vpack.c.b16 %v1289, %v1288
        %v1297 = vpack.c.b16 %v1291, %v1290
        %v1298 = vpack.c.b16 %v1293, %v1292
        %v1299 = vpack.c.b16 %v1295, %v1294
        %1304 = vst.msk [vmem:[#allocation2 + $0x10] sm:$0xff] %vm622, %v1296
        %1305 = vst.msk [vmem:[#allocation2 + $0x28] sm:$0xff] %vm622, %v1297
        %1306 = vst.msk [vmem:[#allocation2 + $0x40] sm:$0xff] %vm622, %v1298
        %1307 = vst.msk [vmem:[#allocation2 + $0x58] sm:$0xff] %vm622, %v1299
        %v1308 = vld [vmem:[#allocation2] sm:$0xff]
        %v1309 = vld [vmem:[#allocation2 + $0x8] sm:$0xff]
        %v1310 = vld [vmem:[#allocation2 + $0x10] sm:$0xff]
        %v1311 = vld [vmem:[#allocation2 + $0x18] sm:$0xff]
        %v1312 = vld [vmem:[#allocation2 + $0x20] sm:$0xff]
        %v1313 = vld [vmem:[#allocation2 + $0x28] sm:$0xff]
        %v1314 = vld [vmem:[#allocation2 + $0x30] sm:$0xff]
        %v1315 = vld [vmem:[#allocation2 + $0x38] sm:$0xff]
        %v1316 = vld [vmem:[#allocation2 + $0x40] sm:$0xff]
        %v1317 = vld [vmem:[#allocation2 + $0x48] sm:$0xff]
        %v1318 = vld [vmem:[#allocation2 + $0x50] sm:$0xff]
        %v1319 = vld [vmem:[#allocation2 + $0x58] sm:$0xff]
        %v1320 = vld [vmem:[%s574] sm:$0xf]
        %v1321 = vld [vmem:[%s574 + $0x4] sm:$0xf]
        %v1322 = vld [vmem:[%s574 + $0x8] sm:$0xf]
        %v1323 = vld [vmem:[%s574 + $0xc] sm:$0xf]
        %v1324 = vld [vmem:[%s574 + $0x10] sm:$0xf]
        %v1325 = vld [vmem:[%s574 + $0x14] sm:$0xf]
        %v1326 = vld [vmem:[%s574 + $0x18] sm:$0xf]
        %v1327 = vld [vmem:[%s574 + $0x1c] sm:$0xf]
        %v1328 = vld [vmem:[%s574 + $0x20] sm:$0xf]
        %v1329 = vld [vmem:[%s574 + $0x24] sm:$0xf]
        %v1330 = vld [vmem:[%s574 + $0x28] sm:$0xf]
        %v1331 = vld [vmem:[%s574 + $0x2c] sm:$0xf]
        %v1332 = vld [vmem:[%s574 + $0x30] sm:$0xf]
        %v1333 = vld [vmem:[%s574 + $0x34] sm:$0xf]
        %v1334 = vld [vmem:[%s574 + $0x38] sm:$0xf]
        %v1335 = vld [vmem:[%s574 + $0x3c] sm:$0xf]
        %v1336 = vld [vmem:[%s574 + $0x40] sm:$0xf]
        %v1337 = vld [vmem:[%s574 + $0x44] sm:$0xf]
        %v1338 = vld [vmem:[%s574 + $0x48] sm:$0xf]
        %v1339 = vld [vmem:[%s574 + $0x4c] sm:$0xf]
        %v1340 = vld [vmem:[%s574 + $0x50] sm:$0xf]
        %v1341 = vld [vmem:[%s574 + $0x54] sm:$0xf]
        %v1342 = vld [vmem:[%s574 + $0x58] sm:$0xf]
        %v1343 = vld [vmem:[%s574 + $0x5c] sm:$0xf]
        %v1344 = vld [vmem:[%s574 + $0x60] sm:$0xf]
        %v1345 = vld [vmem:[%s574 + $0x64] sm:$0xf]
        %v1346 = vld [vmem:[%s574 + $0x68] sm:$0xf]
        %v1347 = vld [vmem:[%s574 + $0x6c] sm:$0xf]
        %v1348 = vld [vmem:[%s574 + $0x70] sm:$0xf]
        %v1349 = vld [vmem:[%s574 + $0x74] sm:$0xf]
        %v1350 = vld [vmem:[%s574 + $0x78] sm:$0xf]
        %v1351 = vld [vmem:[%s574 + $0x7c] sm:$0xf]
        %v1352 = vld [vmem:[%s574 + $0x80] sm:$0xf]
        %v1353 = vld [vmem:[%s574 + $0x84] sm:$0xf]
        %v1354 = vld [vmem:[%s574 + $0x88] sm:$0xf]
        %v1355 = vld [vmem:[%s574 + $0x8c] sm:$0xf]
        %v1392 = vunpack.c.l.b16 %v1320
        %v1393 = vunpack.c.l.b16 %v1321
        %v1394 = vunpack.c.l.b16 %v1322
        %v1395 = vunpack.c.l.b16 %v1323
        %v1396 = vunpack.c.l.b16 %v1324
        %v1397 = vunpack.c.l.b16 %v1325
        %v1398 = vunpack.c.l.b16 %v1326
        %v1399 = vunpack.c.l.b16 %v1327
        %v1400 = vunpack.c.l.b16 %v1328
        %v1401 = vunpack.c.l.b16 %v1329
        %v1402 = vunpack.c.l.b16 %v1330
        %v1403 = vunpack.c.l.b16 %v1331
        %v1404 = vunpack.c.l.b16 %v1332
        %v1405 = vunpack.c.l.b16 %v1333
        %v1406 = vunpack.c.l.b16 %v1334
        %v1407 = vunpack.c.l.b16 %v1335
        %v1408 = vunpack.c.l.b16 %v1336
        %v1409 = vunpack.c.l.b16 %v1337
        %v1410 = vunpack.c.l.b16 %v1338
        %v1411 = vunpack.c.l.b16 %v1339
        %v1412 = vunpack.c.l.b16 %v1340
        %v1413 = vunpack.c.l.b16 %v1341
        %v1414 = vunpack.c.l.b16 %v1342
        %v1415 = vunpack.c.l.b16 %v1343
        %v1416 = vunpack.c.l.b16 %v1344
        %v1417 = vunpack.c.l.b16 %v1345
        %v1418 = vunpack.c.l.b16 %v1346
        %v1419 = vunpack.c.l.b16 %v1347
        %v1420 = vunpack.c.l.b16 %v1348
        %v1421 = vunpack.c.l.b16 %v1349
        %v1422 = vunpack.c.l.b16 %v1350
        %v1423 = vunpack.c.l.b16 %v1351
        %v1424 = vunpack.c.l.b16 %v1352
        %v1425 = vunpack.c.l.b16 %v1353
        %v1426 = vunpack.c.l.b16 %v1354
        %v1427 = vunpack.c.l.b16 %v1355
        %v1428 = vpack.c.b16 %v1393, %v1392
        %v1429 = vpack.c.b16 %v1395, %v1394
        %v1430 = vpack.c.b16 %v1397, %v1396
        %v1431 = vpack.c.b16 %v1399, %v1398
        %v1432 = vpack.c.b16 %v1401, %v1400
        %v1433 = vpack.c.b16 %v1403, %v1402
        %v1434 = vpack.c.b16 %v1405, %v1404
        %v1435 = vpack.c.b16 %v1407, %v1406
        %v1436 = vpack.c.b16 %v1409, %v1408
        %v1437 = vpack.c.b16 %v1411, %v1410
        %v1438 = vpack.c.b16 %v1413, %v1412
        %v1439 = vpack.c.b16 %v1415, %v1414
        %v1440 = vpack.c.b16 %v1417, %v1416
        %v1441 = vpack.c.b16 %v1419, %v1418
        %v1442 = vpack.c.b16 %v1421, %v1420
        %v1443 = vpack.c.b16 %v1423, %v1422
        %v1444 = vpack.c.b16 %v1425, %v1424
        %v1445 = vpack.c.b16 %v1427, %v1426
        %v1465 = vsel %vm622, %v1310, 0
        %v1468 = vsel %vm622, %v1313, 0
        %v1471 = vsel %vm622, %v1316, 0
        %v1474 = vsel %vm622, %v1319, 0
        %1476 = vmatprep.subr.bf16.mxu0 0
        %1477 = vmatpush1.bf16.msra.mxu0 %v1428
        %1478 = vmatprep.subr.bf16.mxu0 0
        %1479 = vmatpush1.bf16.msra.mxu0 %v1429
        %1480 = vmatprep.subr.bf16.mxu0 0
        %1481 = vmatpush1.bf16.msra.mxu0 %v1430
        %1482 = vmatprep.subr.bf16.mxu0 0
        %1483 = vmatpush1.bf16.msra.mxu0 %v1431
        %1484 = vmatprep.subr.bf16.mxu0 0
        %1485 = vmatpush1.bf16.msra.mxu0 %v1432
        %1486 = vmatprep.subr.bf16.mxu0 0
        %1487 = vmatpush1.bf16.msra.mxu0 %v1433
        %1488 = vmatprep.subr.bf16.mxu0 0
        %1489 = vmatpush1.bf16.msra.mxu0 %v1434
        %1490 = vmatprep.subr.bf16.mxu0 0
        %1491 = vmatpush1.bf16.msra.mxu0 %v1435
        %1492 = vmatprep.subr.bf16.mxu0 0
        %1493 = vmatpush1.bf16.msra.mxu0 %v1436
        %1494 = vmatprep.subr.bf16.mxu0 0
        %1495 = vmatpush1.bf16.msra.mxu0 %v1437
        %1496 = vmatprep.subr.bf16.mxu0 0
        %1497 = vmatpush1.bf16.msra.mxu0 %v1438
        %1498 = vmatprep.subr.bf16.mxu0 0
        %1499 = vmatpush1.bf16.msra.mxu0 %v1439
        %1500 = vmatprep.subr.bf16.mxu0 0
        %1501 = vmatpush1.bf16.msra.mxu0 %v1440
        %1502 = vmatprep.subr.bf16.mxu0 0
        %1503 = vmatpush1.bf16.msra.mxu0 %v1441
        %1504 = vmatprep.subr.bf16.mxu0 0
        %1505 = vmatpush1.bf16.msra.mxu0 %v1442
        %1506 = vmatprep.subr.bf16.mxu0 0
        %1507 = vmatpush1.bf16.msra.mxu0 %v1443
        %1508 = vmatprep.mubr.bf16.mxu0 %v1309
        %1509 = vmatmul.mubr.bf16.gmra.mrb[0].mxu0 %v1308
        %v1510 = vpop.f32.mrb[0].mxu0
        %v1511 = vadd.f32 0.0, %v1510
        %v1512 = vpop.f32.mrb[0].mxu0
        %v1513 = vpop.f32.mrb[0].mxu0
        %v1514 = vadd.f32 0.0, %v1513
        %v1515 = vpop.f32.mrb[0].mxu0
        %1516 = vmatprep.mubr.bf16.mxu0 %v1312
        %1517 = vmatmul.mubr.bf16.gmra.mrb[0].mxu0 %v1311
        %v1518 = vpop.f32.mrb[0].mxu0
        %v1519 = vadd.f32 0.0, %v1518
        %v1520 = vpop.f32.mrb[0].mxu0
        %v1521 = vpop.f32.mrb[0].mxu0
        %v1522 = vadd.f32 0.0, %v1521
        %v1523 = vpop.f32.mrb[0].mxu0
        %1524 = vmatprep.mubr.bf16.mxu0 %v1315
        %1525 = vmatmul.mubr.bf16.gmra.mrb[0].mxu0 %v1314
        %v1526 = vpop.f32.mrb[0].mxu0
        %v1527 = vadd.f32 0.0, %v1526
        %v1528 = vpop.f32.mrb[0].mxu0
        %v1529 = vpop.f32.mrb[0].mxu0
        %v1530 = vadd.f32 0.0, %v1529
        %v1531 = vpop.f32.mrb[0].mxu0
        %1532 = vmatprep.mubr.bf16.mxu0 %v1318
        %1533 = vmatmul.mubr.bf16.gmra.mrb[0].mxu0 %v1317
        %v1534 = vpop.f32.mrb[0].mxu0
        %v1535 = vadd.f32 0.0, %v1534
        %v1536 = vpop.f32.mrb[0].mxu0
        %v1537 = vpop.f32.mrb[0].mxu0
        %v1538 = vadd.f32 0.0, %v1537
        %v1539 = vpop.f32.mrb[0].mxu0
        %1540 = vdwg.mxu0
        %1541 = vmatprep.subr.bf16.mxu0 0
        %1542 = vmatpush1.bf16.msra.mxu0 %v1444
        %1543 = vmatprep.subr.bf16.mxu0 0
        %1544 = vmatpush1.bf16.msra.mxu0 %v1445
        %1545 = vmatprep.subr.bf16.mxu0 0
        %1546 = vmatpush1.bf16.msra.mxu0 0
        %1547 = vmatprep.subr.bf16.mxu0 0
        %1548 = vmatpush1.bf16.msra.mxu0 0
        %1549 = vmatprep.subr.bf16.mxu0 0
        %1550 = vmatpush1.bf16.msra.mxu0 0
        %1551 = vmatprep.subr.bf16.mxu0 0
        %1552 = vmatpush1.bf16.msra.mxu0 0
        %1553 = vmatprep.subr.bf16.mxu0 0
        %1554 = vmatpush1.bf16.msra.mxu0 0
        %1555 = vmatprep.subr.bf16.mxu0 0
        %1556 = vmatpush1.bf16.msra.mxu0 0
        %1557 = vmatprep.subr.bf16.mxu0 0
        %1558 = vmatpush1.bf16.msra.mxu0 0
        %1559 = vmatprep.subr.bf16.mxu0 0
        %1560 = vmatpush1.bf16.msra.mxu0 0
        %1561 = vmatprep.subr.bf16.mxu0 0
        %1562 = vmatpush1.bf16.msra.mxu0 0
        %1563 = vmatprep.subr.bf16.mxu0 0
        %1564 = vmatpush1.bf16.msra.mxu0 0
        %1565 = vmatprep.subr.bf16.mxu0 0
        %1566 = vmatpush1.bf16.msra.mxu0 0
        %1567 = vmatprep.subr.bf16.mxu0 0
        %1568 = vmatpush1.bf16.msra.mxu0 0
        %1569 = vmatprep.subr.bf16.mxu0 0
        %1570 = vmatpush1.bf16.msra.mxu0 0
        %1571 = vmatprep.subr.bf16.mxu0 0
        %1572 = vmatpush1.bf16.msra.mxu0 0
        %1573 = vmatprep.mubr.bf16.mxu0 0
        %1574 = vmatmul.mubr.bf16.gmra.mrb[0].mxu0 %v1465
        %v1575 = vpop.f32.mrb[0].mxu0
        %v1576 = vadd.f32 %v1511, %v1575
        %v1577 = vpop.f32.mrb[0].mxu0
        %v1578 = vpop.f32.mrb[0].mxu0
        %v1579 = vadd.f32 %v1514, %v1578
        %v1580 = vpop.f32.mrb[0].mxu0
        %1581 = vmatprep.mubr.bf16.mxu0 0
        %1582 = vmatmul.mubr.bf16.gmra.mrb[0].mxu0 %v1468
        %v1583 = vpop.f32.mrb[0].mxu0
        %v1584 = vadd.f32 %v1519, %v1583
        %v1585 = vpop.f32.mrb[0].mxu0
        %v1586 = vpop.f32.mrb[0].mxu0
        %v1587 = vadd.f32 %v1522, %v1586
        %v1588 = vpop.f32.mrb[0].mxu0
        %1589 = vmatprep.mubr.bf16.mxu0 0
        %1590 = vmatmul.mubr.bf16.gmra.mrb[0].mxu0 %v1471
        %v1591 = vpop.f32.mrb[0].mxu0
        %v1592 = vadd.f32 %v1527, %v1591
        %v1593 = vpop.f32.mrb[0].mxu0
        %v1594 = vpop.f32.mrb[0].mxu0
        %v1595 = vadd.f32 %v1530, %v1594
        %v1596 = vpop.f32.mrb[0].mxu0
        %1597 = vmatprep.mubr.bf16.mxu0 0
        %1598 = vmatmul.mubr.bf16.gmra.mrb[0].mxu0 %v1474
        %v1599 = vpop.f32.mrb[0].mxu0
        %v1600 = vadd.f32 %v1535, %v1599
        %v1601 = vpop.f32.mrb[0].mxu0
        %v1602 = vpop.f32.mrb[0].mxu0
        %v1603 = vadd.f32 %v1538, %v1602
        %v1604 = vpop.f32.mrb[0].mxu0
        %1605 = vdwg.mxu0
        %v1606 = vld [vmem:[%s577] sm:$0x1]
        %v1608 = vlaneseq
        %v1609 = vshrl.u32 %v1608, 7
        %v1610 = vsub.s32 0, %v1609
        %v1611 = vrot.slane %v1606, %v1610
        %v1613 = vmul.f32 %v1576, %v1611
        %v1614 = vmul.f32 %v1579, %v1611
        %v1615 = vmul.f32 %v1584, %v1611
        %v1616 = vmul.f32 %v1587, %v1611
        %v1617 = vmul.f32 %v1592, %v1611
        %v1618 = vmul.f32 %v1595, %v1611
        %v1619 = vmul.f32 %v1600, %v1611
        %v1620 = vmul.f32 %v1603, %v1611
        %v1621 = vld [vmem:[%s580] sm:$0x1]
        %v1623 = vlaneseq
        %v1624 = vshrl.u32 %v1623, 7
        %v1625 = vsub.s32 0, %v1624
        %v1626 = vrot.slane %v1621, %v1625
        %v1628 = vadd.f32 %v1613, %v1626
        %v1629 = vadd.f32 %v1614, %v1626
        %v1630 = vadd.f32 %v1615, %v1626
        %v1631 = vadd.f32 %v1616, %v1626
        %v1632 = vadd.f32 %v1617, %v1626
        %v1633 = vadd.f32 %v1618, %v1626
        %v1634 = vadd.f32 %v1619, %v1626
        %v1635 = vadd.f32 %v1620, %v1626
        %v1636 = vmax.f32 %v1628, 0.0
        %v1637 = vmax.f32 %v1629, 0.0
        %v1638 = vmax.f32 %v1630, 0.0
        %v1639 = vmax.f32 %v1631, 0.0
        %v1640 = vmax.f32 %v1632, 0.0
        %v1641 = vmax.f32 %v1633, 0.0
        %v1642 = vmax.f32 %v1634, 0.0
        %v1643 = vmax.f32 %v1635, 0.0
        %v1644 = vpack.c.bf16 %v1637, %v1636
        %v1645 = vpack.c.bf16 %v1639, %v1638
        %v1646 = vpack.c.bf16 %v1641, %v1640
        %v1647 = vpack.c.bf16 %v1643, %v1642
        %v1652 = vunpack.c.l.b16 %v1644
        %v1653 = vunpack.c.h.b16 %v1644
        %v1654 = vunpack.c.l.b16 %v1645
        %v1655 = vunpack.c.h.b16 %v1645
        %v1656 = vunpack.c.l.b16 %v1646
        %v1657 = vunpack.c.h.b16 %v1646
        %v1658 = vunpack.c.l.b16 %v1647
        %v1659 = vunpack.c.h.b16 %v1647
        %v1660 = vpack.c.b16 %v1652, %v1652
        %v1661 = vpack.c.b16 %v1653, %v1653
        %v1662 = vpack.c.b16 %v1654, %v1654
        %v1663 = vpack.c.b16 %v1655, %v1655
        %v1664 = vpack.c.b16 %v1656, %v1656
        %v1665 = vpack.c.b16 %v1657, %v1657
        %v1666 = vpack.c.b16 %v1658, %v1658
        %v1667 = vpack.c.b16 %v1659, %v1659
        %vm1676 = vcmask 257024
        %1677 = vst.msk [vmem:[%s588] sm:$0xf] %vm1676, %v1660
        %1678 = vst.msk [vmem:[%s588 + $0x4] sm:$0xf] %vm1676, %v1661
        %1679 = vst.msk [vmem:[%s588 + $0x8] sm:$0xf] %vm1676, %v1662
        %1680 = vst.msk [vmem:[%s588 + $0xc] sm:$0xf] %vm1676, %v1663
        %1681 = vst.msk [vmem:[%s588 + $0x10] sm:$0xf] %vm1676, %v1664
        %1682 = vst.msk [vmem:[%s588 + $0x14] sm:$0xf] %vm1676, %v1665
        %1683 = vst.msk [vmem:[%s588 + $0x18] sm:$0xf] %vm1676, %v1666
        %1684 = vst.msk [vmem:[%s588 + $0x1c] sm:$0xf] %vm1676, %v1667
        %p1685 = scmp.lt.s32.totalorder %s19, 1
        %s1686 = scalar_select %p1685, %s19, 1
        %p1687 = scmp.lt.s32.totalorder %s20, 0
        %s1688 = scalar_select %p1687, %s20, 0
        %s1689 = smul.addr %s1686, 8
        %s1690 = sadd.s32 %s1688, %s1689
        %s1691 = smul.addr %s1690, 4
        %s1692 = scalar_lea.vmem %s4, %s1691
        // Predicated region
        $region78: #{_lambda_.5} parent=72 // pred_check
          %p1693 = pneg %p151
        $region79: #{_lambda_.5} parent=72 // pred_check_branch
          %1695 = sbr.rel (%p1693) target = $region81
        $region80: #{_lambda_.5} parent=72 // pred_region
          _
        $region81: #{_lambda_.5} parent=72 // pred_fallthru
          _
      $region73: #{_lambda_.5} parent=5 // pred_fallthru
        _
      %p1696 = scmp.le.s32.totalorder 2, %s10
      // Predicated region
      $region82: #{_lambda_.5} parent=5 // pred_check
        %p1697 = pneg %p1696
      $region83: #{_lambda_.5} parent=5 // pred_check_branch
        %1699 = sbr.rel (%p1697) target = $region85
      $region84: #{_lambda_.5} parent=5 // pred_region
        %s1700 = ssub.s32 %s10, 2
        // Predicated region
        $region86: #{_lambda_.5} parent=84 // pred_check
          %p1701 = pneg %p157
        $region87: #{_lambda_.5} parent=84 // pred_check_branch
          %1703 = sbr.rel (%p1701) target = $region89
        $region88: #{_lambda_.5} parent=84 // pred_region
          %p1704 = scmp.lt.s32.totalorder %s21, 1
          %s1705 = scalar_select %p1704, %s21, 1
          %p1706 = scmp.lt.s32.totalorder %s22, 0
          %s1707 = scalar_select %p1706, %s22, 0
          %s1708 = smul.addr %s1705, 8
          %s1709 = sadd.s32 %s1707, %s1708
          %s1710 = smul.addr %s1709, 4
          %s1711 = scalar_lea.vmem %s4, %s1710
        $region89: #{_lambda_.5} parent=84 // pred_fallthru
          _
      $region85: #{_lambda_.5} parent=5 // pred_fallthru
        _
    $region6: #{_lambda_.5} parent=1 // loop_footer
      %s14 = sadd.s32 1, %s10
    $region7: #{_lambda_.5} parent=1 // loop_footer_branch
      %9 = sbr.rel target = $region3
    $region8: #{_lambda_.5} parent=1 // loop_exit
      _

// kernel: _lambda_.7
$region0: #{_lambda_.7}
  #allocation0 [shape = 'u32[]', space=smem, size = 0x4, offset = 0x4, fixed_abs, tag = 'smem constant byte address 0x4 - core index']
  #allocation1 [shape = 'u32[144,128]{1,0:T(1,128)}', space=vmem, size = 0x12000, scoped, tag = 'internal scratch']
  #allocation2 [shape = 'f32[128,128]{1,0:T(8,128)}', space=vmem, size = 0x10000, scoped, tag = 'scratch operand']
  %s0 = inlined_call_operand.vmem [shape: bf16[128,32], index: 0, kind: input, shape index: {}]
  %s1 = inlined_call_operand.vmem [shape: bf16[32,128], index: 1, kind: input, shape index: {}]
  %s2 = inlined_call_operand.vmem [shape: f32[1,128], index: 2, kind: input, shape index: {}]
  %s3 = inlined_call_operand.vmem [shape: f32[1,128], index: 3, kind: input, shape index: {}]
  %s4 = inlined_call_operand.vmem [shape: bf16[128,128], index: 4, kind: input, shape index: {}]
  %s5 = inlined_call_operand.hbm [shape: bf16[128,128], index: 5, kind: output, shape index: {}]
  %s6 = sld [smem:[#allocation0]]
  $region38: #{_lambda_.7} parent=0
    _
  %s8 = ssub.s32 1, %s6
  %s9 = scalar_select 0, %s8, %s6
  $region1: #{_lambda_.7} parent=0
    #allocation3 [shape = 'u8[32768]{0}', space=vmem, size = 0x8000, scoped, tag = 'output window, operand 0, single buffered']
    #allocation4 [shape = 's32[1]{0}', space=sflag, size = 0x4, scoped, tag = 'scoped memory for _lambda_.7']
    %10 = vsyncpa [#allocation4], 0
    // Predicated region
    $region2: #{_lambda_.7} parent=1 // pred_check
      _
    $region3: #{_lambda_.7} parent=1 // pred_check_branch
      %12 = sbr.rel (0) target = $region5
    $region4: #{_lambda_.7} parent=1 // pred_region
      _
    $region5: #{_lambda_.7} parent=1 // pred_fallthru
      _
    // Predicated region
    $region6: #{_lambda_.7} parent=1 // pred_check
      _
    $region7: #{_lambda_.7} parent=1 // pred_check_branch
      %14 = sbr.rel (0) target = $region9
    $region8: #{_lambda_.7} parent=1 // pred_region
      _
    $region9: #{_lambda_.7} parent=1 // pred_fallthru
      _
    // Predicated region
    $region10: #{_lambda_.7} parent=1 // pred_check
      _
    $region11: #{_lambda_.7} parent=1 // pred_check_branch
      %16 = sbr.rel (0) target = $region13
    $region12: #{_lambda_.7} parent=1 // pred_region
      _
    $region13: #{_lambda_.7} parent=1 // pred_fallthru
      _
    // Predicated region
    $region14: #{_lambda_.7} parent=1 // pred_check
      _
    $region15: #{_lambda_.7} parent=1 // pred_check_branch
      %18 = sbr.rel (0) target = $region17
    $region16: #{_lambda_.7} parent=1 // pred_region
      _
    $region17: #{_lambda_.7} parent=1 // pred_fallthru
      _
    // Predicated region
    $region18: #{_lambda_.7} parent=1 // pred_check
      _
    $region19: #{_lambda_.7} parent=1 // pred_check_branch
      %20 = sbr.rel (0) target = $region21
    $region20: #{_lambda_.7} parent=1 // pred_region
      _
    $region21: #{_lambda_.7} parent=1 // pred_fallthru
      _
    %p22 = scmp.eq.s32.totalorder 0, 0
    // Predicated region
    $region22: #{_lambda_.7} parent=1 // pred_check
      %p23 = pneg %p22
    $region23: #{_lambda_.7} parent=1 // pred_check_branch
      %25 = sbr.rel (%p23) target = $region25
    $region24: #{_lambda_.7} parent=1 // pred_region
      %26 = vst [vmem:[#allocation2] sm:$0xff] 0.0
      %27 = vst [vmem:[#allocation2 + $0x8] sm:$0xff] 0.0
      %28 = vst [vmem:[#allocation2 + $0x10] sm:$0xff] 0.0
      %29 = vst [vmem:[#allocation2 + $0x18] sm:$0xff] 0.0
      %30 = vst [vmem:[#allocation2 + $0x20] sm:$0xff] 0.0
      %31 = vst [vmem:[#allocation2 + $0x28] sm:$0xff] 0.0
      %32 = vst [vmem:[#allocation2 + $0x30] sm:$0xff] 0.0
      %33 = vst [vmem:[#allocation2 + $0x38] sm:$0xff] 0.0
      %34 = vst [vmem:[#allocation2 + $0x40] sm:$0xff] 0.0
      %35 = vst [vmem:[#allocation2 + $0x48] sm:$0xff] 0.0
      %36 = vst [vmem:[#allocation2 + $0x50] sm:$0xff] 0.0
      %37 = vst [vmem:[#allocation2 + $0x58] sm:$0xff] 0.0
      %38 = vst [vmem:[#allocation2 + $0x60] sm:$0xff] 0.0
      %39 = vst [vmem:[#allocation2 + $0x68] sm:$0xff] 0.0
      %40 = vst [vmem:[#allocation2 + $0x70] sm:$0xff] 0.0
      %41 = vst [vmem:[#allocation2 + $0x78] sm:$0xff] 0.0
    $region25: #{_lambda_.7} parent=1 // pred_fallthru
      _
    %v42 = vld [vmem:[#allocation2] sm:$0xff]
    %v43 = vld [vmem:[#allocation2 + $0x8] sm:$0xff]
    %v44 = vld [vmem:[#allocation2 + $0x10] sm:$0xff]
    %v45 = vld [vmem:[#allocation2 + $0x18] sm:$0xff]
    %v46 = vld [vmem:[#allocation2 + $0x20] sm:$0xff]
    %v47 = vld [vmem:[#allocation2 + $0x28] sm:$0xff]
    %v48 = vld [vmem:[#allocation2 + $0x30] sm:$0xff]
    %v49 = vld [vmem:[#allocation2 + $0x38] sm:$0xff]
    %v50 = vld [vmem:[#allocation2 + $0x40] sm:$0xff]
    %v51 = vld [vmem:[#allocation2 + $0x48] sm:$0xff]
    %v52 = vld [vmem:[#allocation2 + $0x50] sm:$0xff]
    %v53 = vld [vmem:[#allocation2 + $0x58] sm:$0xff]
    %v54 = vld [vmem:[#allocation2 + $0x60] sm:$0xff]
    %v55 = vld [vmem:[#allocation2 + $0x68] sm:$0xff]
    %v56 = vld [vmem:[#allocation2 + $0x70] sm:$0xff]
    %v57 = vld [vmem:[#allocation2 + $0x78] sm:$0xff]
    %v58 = vld [vmem:[%s0] sm:$0xf]
    %v59 = vld [vmem:[%s0 + $0x4] sm:$0xf]
    %v60 = vld [vmem:[%s0 + $0x8] sm:$0xf]
    %v61 = vld [vmem:[%s0 + $0xc] sm:$0xf]
    %v62 = vld [vmem:[%s0 + $0x10] sm:$0xf]
    %v63 = vld [vmem:[%s0 + $0x14] sm:$0xf]
    %v64 = vld [vmem:[%s0 + $0x18] sm:$0xf]
    %v65 = vld [vmem:[%s0 + $0x1c] sm:$0xf]
    %v66 = vld [vmem:[%s0 + $0x20] sm:$0xf]
    %v67 = vld [vmem:[%s0 + $0x24] sm:$0xf]
    %v68 = vld [vmem:[%s0 + $0x28] sm:$0xf]
    %v69 = vld [vmem:[%s0 + $0x2c] sm:$0xf]
    %v70 = vld [vmem:[%s0 + $0x30] sm:$0xf]
    %v71 = vld [vmem:[%s0 + $0x34] sm:$0xf]
    %v72 = vld [vmem:[%s0 + $0x38] sm:$0xf]
    %v73 = vld [vmem:[%s0 + $0x3c] sm:$0xf]
    %v74 = vld [vmem:[%s1] sm:$0xf]
    %v75 = vld [vmem:[%s1 + $0x4] sm:$0xf]
    %v76 = vld [vmem:[%s1 + $0x8] sm:$0xf]
    %v77 = vld [vmem:[%s1 + $0xc] sm:$0xf]
    %v94 = vunpack.c.l.b16 %v58
    %v95 = vunpack.c.l.b16 %v59
    %v96 = vunpack.c.l.b16 %v60
    %v97 = vunpack.c.l.b16 %v61
    %v98 = vunpack.c.l.b16 %v62
    %v99 = vunpack.c.l.b16 %v63
    %v100 = vunpack.c.l.b16 %v64
    %v101 = vunpack.c.l.b16 %v65
    %v102 = vunpack.c.l.b16 %v66
    %v103 = vunpack.c.l.b16 %v67
    %v104 = vunpack.c.l.b16 %v68
    %v105 = vunpack.c.l.b16 %v69
    %v106 = vunpack.c.l.b16 %v70
    %v107 = vunpack.c.l.b16 %v71
    %v108 = vunpack.c.l.b16 %v72
    %v109 = vunpack.c.l.b16 %v73
    %v110 = vpack.c.b16 %v95, %v94
    %v111 = vpack.c.b16 %v97, %v96
    %v112 = vpack.c.b16 %v99, %v98
    %v113 = vpack.c.b16 %v101, %v100
    %v114 = vpack.c.b16 %v103, %v102
    %v115 = vpack.c.b16 %v105, %v104
    %v116 = vpack.c.b16 %v107, %v106
    %v117 = vpack.c.b16 %v109, %v108
    %v122 = vunpack.c.l.b16 %v74
    %v123 = vunpack.c.l.b16 %v75
    %v124 = vunpack.c.l.b16 %v76
    %v125 = vunpack.c.l.b16 %v77
    %v126 = vpack.c.b16 %v123, %v122
    %v127 = vpack.c.b16 %v125, %v124
    %vm130 = vcmask 261120
    %v132 = vsel %vm130, %v110, 0
    %v135 = vsel %vm130, %v111, 0
    %v138 = vsel %vm130, %v112, 0
    %v141 = vsel %vm130, %v113, 0
    %v144 = vsel %vm130, %v114, 0
    %v147 = vsel %vm130, %v115, 0
    %v150 = vsel %vm130, %v116, 0
    %v153 = vsel %vm130, %v117, 0
    %155 = vmatprep.subr.bf16.mxu0 0
    %156 = vmatpush1.bf16.msra.mxu0 %v126
    %157 = vmatprep.subr.bf16.mxu0 0
    %158 = vmatpush1.bf16.msra.mxu0 %v127
    %159 = vmatprep.subr.bf16.mxu0 0
    %160 = vmatpush1.bf16.msra.mxu0 0
    %161 = vmatprep.subr.bf16.mxu0 0
    %162 = vmatpush1.bf16.msra.mxu0 0
    %163 = vmatprep.subr.bf16.mxu0 0
    %164 = vmatpush1.bf16.msra.mxu0 0
    %165 = vmatprep.subr.bf16.mxu0 0
    %166 = vmatpush1.bf16.msra.mxu0 0
    %167 = vmatprep.subr.bf16.mxu0 0
    %168 = vmatpush1.bf16.msra.mxu0 0
    %169 = vmatprep.subr.bf16.mxu0 0
    %170 = vmatpush1.bf16.msra.mxu0 0
    %171 = vmatprep.subr.bf16.mxu0 0
    %172 = vmatpush1.bf16.msra.mxu0 0
    %173 = vmatprep.subr.bf16.mxu0 0
    %174 = vmatpush1.bf16.msra.mxu0 0
    %175 = vmatprep.subr.bf16.mxu0 0
    %176 = vmatpush1.bf16.msra.mxu0 0
    %177 = vmatprep.subr.bf16.mxu0 0
    %178 = vmatpush1.bf16.msra.mxu0 0
    %179 = vmatprep.subr.bf16.mxu0 0
    %180 = vmatpush1.bf16.msra.mxu0 0
    %181 = vmatprep.subr.bf16.mxu0 0
    %182 = vmatpush1.bf16.msra.mxu0 0
    %183 = vmatprep.subr.bf16.mxu0 0
    %184 = vmatpush1.bf16.msra.mxu0 0
    %185 = vmatprep.subr.bf16.mxu0 0
    %186 = vmatpush1.bf16.msra.mxu0 0
    %187 = vmatprep.mubr.bf16.mxu0 0
    %188 = vmatmul.mubr.bf16.gmra.mrb[0].mxu0 %v132
    %v189 = vpop.f32.mrb[0].mxu0
    %v190 = vadd.f32 0.0, %v189
    %v191 = vpop.f32.mrb[0].mxu0
    %v192 = vpop.f32.mrb[0].mxu0
    %v193 = vadd.f32 0.0, %v192
    %v194 = vpop.f32.mrb[0].mxu0
    %195 = vmatprep.mubr.bf16.mxu0 0
    %196 = vmatmul.mubr.bf16.gmra.mrb[0].mxu0 %v135
    %v197 = vpop.f32.mrb[0].mxu0
    %v198 = vadd.f32 0.0, %v197
    %v199 = vpop.f32.mrb[0].mxu0
    %v200 = vpop.f32.mrb[0].mxu0
    %v201 = vadd.f32 0.0, %v200
    %v202 = vpop.f32.mrb[0].mxu0
    %203 = vmatprep.mubr.bf16.mxu0 0
    %204 = vmatmul.mubr.bf16.gmra.mrb[0].mxu0 %v138
    %v205 = vpop.f32.mrb[0].mxu0
    %v206 = vadd.f32 0.0, %v205
    %v207 = vpop.f32.mrb[0].mxu0
    %v208 = vpop.f32.mrb[0].mxu0
    %v209 = vadd.f32 0.0, %v208
    %v210 = vpop.f32.mrb[0].mxu0
    %211 = vmatprep.mubr.bf16.mxu0 0
    %212 = vmatmul.mubr.bf16.gmra.mrb[0].mxu0 %v141
    %v213 = vpop.f32.mrb[0].mxu0
    %v214 = vadd.f32 0.0, %v213
    %v215 = vpop.f32.mrb[0].mxu0
    %v216 = vpop.f32.mrb[0].mxu0
    %v217 = vadd.f32 0.0, %v216
    %v218 = vpop.f32.mrb[0].mxu0
    %219 = vmatprep.mubr.bf16.mxu0 0
    %220 = vmatmul.mubr.bf16.gmra.mrb[0].mxu0 %v144
    %v221 = vpop.f32.mrb[0].mxu0
    %v222 = vadd.f32 0.0, %v221
    %v223 = vpop.f32.mrb[0].mxu0
    %v224 = vpop.f32.mrb[0].mxu0
    %v225 = vadd.f32 0.0, %v224
    %v226 = vpop.f32.mrb[0].mxu0
    %227 = vmatprep.mubr.bf16.mxu0 0
    %228 = vmatmul.mubr.bf16.gmra.mrb[0].mxu0 %v147
    %v229 = vpop.f32.mrb[0].mxu0
    %v230 = vadd.f32 0.0, %v229
    %v231 = vpop.f32.mrb[0].mxu0
    %v232 = vpop.f32.mrb[0].mxu0
    %v233 = vadd.f32 0.0, %v232
    %v234 = vpop.f32.mrb[0].mxu0
    %235 = vmatprep.mubr.bf16.mxu0 0
    %236 = vmatmul.mubr.bf16.gmra.mrb[0].mxu0 %v150
    %v237 = vpop.f32.mrb[0].mxu0
    %v238 = vadd.f32 0.0, %v237
    %v239 = vpop.f32.mrb[0].mxu0
    %v240 = vpop.f32.mrb[0].mxu0
    %v241 = vadd.f32 0.0, %v240
    %v242 = vpop.f32.mrb[0].mxu0
    %243 = vmatprep.mubr.bf16.mxu0 0
    %244 = vmatmul.mubr.bf16.gmra.mrb[0].mxu0 %v153
    %v245 = vpop.f32.mrb[0].mxu0
    %v246 = vadd.f32 0.0, %v245
    %v247 = vpop.f32.mrb[0].mxu0
    %v248 = vpop.f32.mrb[0].mxu0
    %v249 = vadd.f32 0.0, %v248
    %v250 = vpop.f32.mrb[0].mxu0
    %251 = vdwg.mxu0
    %v252 = vadd.f32 %v42, %v190
    %v253 = vadd.f32 %v43, %v193
    %v254 = vadd.f32 %v44, %v198
    %v255 = vadd.f32 %v45, %v201
    %v256 = vadd.f32 %v46, %v206
    %v257 = vadd.f32 %v47, %v209
    %v258 = vadd.f32 %v48, %v214
    %v259 = vadd.f32 %v49, %v217
    %v260 = vadd.f32 %v50, %v222
    %v261 = vadd.f32 %v51, %v225
    %v262 = vadd.f32 %v52, %v230
    %v263 = vadd.f32 %v53, %v233
    %v264 = vadd.f32 %v54, %v238
    %v265 = vadd.f32 %v55, %v241
    %v266 = vadd.f32 %v56, %v246
    %v267 = vadd.f32 %v57, %v249
    %268 = vst [vmem:[#allocation2] sm:$0xff] %v252
    %269 = vst [vmem:[#allocation2 + $0x8] sm:$0xff] %v253
    %270 = vst [vmem:[#allocation2 + $0x10] sm:$0xff] %v254
    %271 = vst [vmem:[#allocation2 + $0x18] sm:$0xff] %v255
    %272 = vst [vmem:[#allocation2 + $0x20] sm:$0xff] %v256
    %273 = vst [vmem:[#allocation2 + $0x28] sm:$0xff] %v257
    %274 = vst [vmem:[#allocation2 + $0x30] sm:$0xff] %v258
    %275 = vst [vmem:[#allocation2 + $0x38] sm:$0xff] %v259
    %276 = vst [vmem:[#allocation2 + $0x40] sm:$0xff] %v260
    %277 = vst [vmem:[#allocation2 + $0x48] sm:$0xff] %v261
    %278 = vst [vmem:[#allocation2 + $0x50] sm:$0xff] %v262
    %279 = vst [vmem:[#allocation2 + $0x58] sm:$0xff] %v263
    %280 = vst [vmem:[#allocation2 + $0x60] sm:$0xff] %v264
    %281 = vst [vmem:[#allocation2 + $0x68] sm:$0xff] %v265
    %282 = vst [vmem:[#allocation2 + $0x70] sm:$0xff] %v266
    %283 = vst [vmem:[#allocation2 + $0x78] sm:$0xff] %v267
    // Predicated region
    $region26: #{_lambda_.7} parent=1 // pred_check
      %p284 = pneg %p22
    $region27: #{_lambda_.7} parent=1 // pred_check_branch
      %286 = sbr.rel (%p284) target = $region29
    $region28: #{_lambda_.7} parent=1 // pred_region
      %v287 = vld [vmem:[#allocation2] sm:$0xff]
      %v288 = vld [vmem:[#allocation2 + $0x8] sm:$0xff]
      %v289 = vld [vmem:[#allocation2 + $0x10] sm:$0xff]
      %v290 = vld [vmem:[#allocation2 + $0x18] sm:$0xff]
      %v291 = vld [vmem:[#allocation2 + $0x20] sm:$0xff]
      %v292 = vld [vmem:[#allocation2 + $0x28] sm:$0xff]
      %v293 = vld [vmem:[#allocation2 + $0x30] sm:$0xff]
      %v294 = vld [vmem:[#allocation2 + $0x38] sm:$0xff]
      %v295 = vld [vmem:[#allocation2 + $0x40] sm:$0xff]
      %v296 = vld [vmem:[#allocation2 + $0x48] sm:$0xff]
      %v297 = vld [vmem:[#allocation2 + $0x50] sm:$0xff]
      %v298 = vld [vmem:[#allocation2 + $0x58] sm:$0xff]
      %v299 = vld [vmem:[#allocation2 + $0x60] sm:$0xff]
      %v300 = vld [vmem:[#allocation2 + $0x68] sm:$0xff]
      %v301 = vld [vmem:[#allocation2 + $0x70] sm:$0xff]
      %v302 = vld [vmem:[#allocation2 + $0x78] sm:$0xff]
      %v303 = vld [vmem:[%s2] sm:$0x1]
      %v305 = vlaneseq
      %v306 = vshrl.u32 %v305, 7
      %v307 = vsub.s32 0, %v306
      %v308 = vrot.slane %v303, %v307
      %v310 = vmul.f32 %v287, %v308
      %v311 = vmul.f32 %v288, %v308
      %v312 = vmul.f32 %v289, %v308
      %v313 = vmul.f32 %v290, %v308
      %v314 = vmul.f32 %v291, %v308
      %v315 = vmul.f32 %v292, %v308
      %v316 = vmul.f32 %v293, %v308
      %v317 = vmul.f32 %v294, %v308
      %v318 = vmul.f32 %v295, %v308
      %v319 = vmul.f32 %v296, %v308
      %v320 = vmul.f32 %v297, %v308
      %v321 = vmul.f32 %v298, %v308
      %v322 = vmul.f32 %v299, %v308
      %v323 = vmul.f32 %v300, %v308
      %v324 = vmul.f32 %v301, %v308
      %v325 = vmul.f32 %v302, %v308
      %v326 = vld [vmem:[%s3] sm:$0x1]
      %v328 = vlaneseq
      %v329 = vshrl.u32 %v328, 7
      %v330 = vsub.s32 0, %v329
      %v331 = vrot.slane %v326, %v330
      %v333 = vadd.f32 %v310, %v331
      %v334 = vadd.f32 %v311, %v331
      %v335 = vadd.f32 %v312, %v331
      %v336 = vadd.f32 %v313, %v331
      %v337 = vadd.f32 %v314, %v331
      %v338 = vadd.f32 %v315, %v331
      %v339 = vadd.f32 %v316, %v331
      %v340 = vadd.f32 %v317, %v331
      %v341 = vadd.f32 %v318, %v331
      %v342 = vadd.f32 %v319, %v331
      %v343 = vadd.f32 %v320, %v331
      %v344 = vadd.f32 %v321, %v331
      %v345 = vadd.f32 %v322, %v331
      %v346 = vadd.f32 %v323, %v331
      %v347 = vadd.f32 %v324, %v331
      %v348 = vadd.f32 %v325, %v331
      %v349 = vld [vmem:[%s4] sm:$0xf]
      %v350 = vld [vmem:[%s4 + $0x4] sm:$0xf]
      %v351 = vld [vmem:[%s4 + $0x8] sm:$0xf]
      %v352 = vld [vmem:[%s4 + $0xc] sm:$0xf]
      %v353 = vld [vmem:[%s4 + $0x10] sm:$0xf]
      %v354 = vld [vmem:[%s4 + $0x14] sm:$0xf]
      %v355 = vld [vmem:[%s4 + $0x18] sm:$0xf]
      %v356 = vld [vmem:[%s4 + $0x1c] sm:$0xf]
      %v357 = vld [vmem:[%s4 + $0x20] sm:$0xf]
      %v358 = vld [vmem:[%s4 + $0x24] sm:$0xf]
      %v359 = vld [vmem:[%s4 + $0x28] sm:$0xf]
      %v360 = vld [vmem:[%s4 + $0x2c] sm:$0xf]
      %v361 = vld [vmem:[%s4 + $0x30] sm:$0xf]
      %v362 = vld [vmem:[%s4 + $0x34] sm:$0xf]
      %v363 = vld [vmem:[%s4 + $0x38] sm:$0xf]
      %v364 = vld [vmem:[%s4 + $0x3c] sm:$0xf]
      %v365 = vunpack.c.l.bf16 %v349
      %v366 = vunpack.c.l.bf16 %v350
      %v367 = vunpack.c.l.bf16 %v351
      %v368 = vunpack.c.l.bf16 %v352
      %v369 = vunpack.c.l.bf16 %v353
      %v370 = vunpack.c.l.bf16 %v354
      %v371 = vunpack.c.l.bf16 %v355
      %v372 = vunpack.c.l.bf16 %v356
      %v373 = vunpack.c.l.bf16 %v357
      %v374 = vunpack.c.l.bf16 %v358
      %v375 = vunpack.c.l.bf16 %v359
      %v376 = vunpack.c.l.bf16 %v360
      %v377 = vunpack.c.l.bf16 %v361
      %v378 = vunpack.c.l.bf16 %v362
      %v379 = vunpack.c.l.bf16 %v363
      %v380 = vunpack.c.l.bf16 %v364
      %v381 = vadd.f32 %v333, %v365
      %v382 = vadd.f32 %v334, %v366
      %v383 = vadd.f32 %v335, %v367
      %v384 = vadd.f32 %v336, %v368
      %v385 = vadd.f32 %v337, %v369
      %v386 = vadd.f32 %v338, %v370
      %v387 = vadd.f32 %v339, %v371
      %v388 = vadd.f32 %v340, %v372
      %v389 = vadd.f32 %v341, %v373
      %v390 = vadd.f32 %v342, %v374
      %v391 = vadd.f32 %v343, %v375
      %v392 = vadd.f32 %v344, %v376
      %v393 = vadd.f32 %v345, %v377
      %v394 = vadd.f32 %v346, %v378
      %v395 = vadd.f32 %v347, %v379
      %v396 = vadd.f32 %v348, %v380
      %v397 = vmax.f32 %v381, 0.0
      %v398 = vmax.f32 %v382, 0.0
      %v399 = vmax.f32 %v383, 0.0
      %v400 = vmax.f32 %v384, 0.0
      %v401 = vmax.f32 %v385, 0.0
      %v402 = vmax.f32 %v386, 0.0
      %v403 = vmax.f32 %v387, 0.0
      %v404 = vmax.f32 %v388, 0.0
      %v405 = vmax.f32 %v389, 0.0
      %v406 = vmax.f32 %v390, 0.0
      %v407 = vmax.f32 %v391, 0.0
      %v408 = vmax.f32 %v392, 0.0
      %v409 = vmax.f32 %v393, 0.0
      %v410 = vmax.f32 %v394, 0.0
      %v411 = vmax.f32 %v395, 0.0
      %v412 = vmax.f32 %v396, 0.0
      %v413 = vpack.c.bf16 %v398, %v397
      %v414 = vpack.c.bf16 %v400, %v399
      %v415 = vpack.c.bf16 %v402, %v401
      %v416 = vpack.c.bf16 %v404, %v403
      %v417 = vpack.c.bf16 %v406, %v405
      %v418 = vpack.c.bf16 %v408, %v407
      %v419 = vpack.c.bf16 %v410, %v409
      %v420 = vpack.c.bf16 %v412, %v411
      %v429 = vunpack.c.l.b16 %v413
      %v430 = vunpack.c.h.b16 %v413
      %v431 = vunpack.c.l.b16 %v414
      %v432 = vunpack.c.h.b16 %v414
      %v433 = vunpack.c.l.b16 %v415
      %v434 = vunpack.c.h.b16 %v415
      %v435 = vunpack.c.l.b16 %v416
      %v436 = vunpack.c.h.b16 %v416
      %v437 = vunpack.c.l.b16 %v417
      %v438 = vunpack.c.h.b16 %v417
      %v439 = vunpack.c.l.b16 %v418
      %v440 = vunpack.c.h.b16 %v418
      %v441 = vunpack.c.l.b16 %v419
      %v442 = vunpack.c.h.b16 %v419
      %v443 = vunpack.c.l.b16 %v420
      %v444 = vunpack.c.h.b16 %v420
      %v445 = vpack.c.b16 %v429, %v429
      %v446 = vpack.c.b16 %v430, %v430
      %v447 = vpack.c.b16 %v431, %v431
      %v448 = vpack.c.b16 %v432, %v432
      %v449 = vpack.c.b16 %v433, %v433
      %v450 = vpack.c.b16 %v434, %v434
      %v451 = vpack.c.b16 %v435, %v435
      %v452 = vpack.c.b16 %v436, %v436
      %v453 = vpack.c.b16 %v437, %v437
      %v454 = vpack.c.b16 %v438, %v438
      %v455 = vpack.c.b16 %v439, %v439
      %v456 = vpack.c.b16 %v440, %v440
      %v457 = vpack.c.b16 %v441, %v441
      %v458 = vpack.c.b16 %v442, %v442
      %v459 = vpack.c.b16 %v443, %v443
      %v460 = vpack.c.b16 %v444, %v444
      %477 = vst [vmem:[#allocation3] sm:$0xf] %v445
      %478 = vst [vmem:[#allocation3 + $0x4] sm:$0xf] %v446
      %479 = vst [vmem:[#allocation3 + $0x8] sm:$0xf] %v447
      %480 = vst [vmem:[#allocation3 + $0xc] sm:$0xf] %v448
      %481 = vst [vmem:[#allocation3 + $0x10] sm:$0xf] %v449
      %482 = vst [vmem:[#allocation3 + $0x14] sm:$0xf] %v450
      %483 = vst [vmem:[#allocation3 + $0x18] sm:$0xf] %v451
      %484 = vst [vmem:[#allocation3 + $0x1c] sm:$0xf] %v452
      %485 = vst [vmem:[#allocation3 + $0x20] sm:$0xf] %v453
      %486 = vst [vmem:[#allocation3 + $0x24] sm:$0xf] %v454
      %487 = vst [vmem:[#allocation3 + $0x28] sm:$0xf] %v455
      %488 = vst [vmem:[#allocation3 + $0x2c] sm:$0xf] %v456
      %489 = vst [vmem:[#allocation3 + $0x30] sm:$0xf] %v457
      %490 = vst [vmem:[#allocation3 + $0x34] sm:$0xf] %v458
      %491 = vst [vmem:[#allocation3 + $0x38] sm:$0xf] %v459
      %492 = vst [vmem:[#allocation3 + $0x3c] sm:$0xf] %v460
    $region29: #{_lambda_.7} parent=1 // pred_fallthru
      _
    // Predicated region
    $region30: #{_lambda_.7} parent=1 // pred_check
      _
    $region31: #{_lambda_.7} parent=1 // pred_check_branch
      %494 = sbr.rel (0) target = $region33
    $region32: #{_lambda_.7} parent=1 // pred_region
      %s496 = ssub.s32 1024, 1024
      %497 = vsyncadd [#allocation4], %s496
      %s498 = sshll.u32 [#allocation3], 4
      %s499 = int_to_ptr.vmem [resolvable:$true] %s498
      %504 = dma.vmem_to_hbm [thread:$0]  %s499, 1024, %s5, [#allocation4], 64, 64, 4
    $region33: #{_lambda_.7} parent=1 // pred_fallthru
      _
    // Predicated region
    $region34: #{_lambda_.7} parent=1 // pred_check
      _
    $region35: #{_lambda_.7} parent=1 // pred_check_branch
      %506 = sbr.rel (0) target = $region37
    $region36: #{_lambda_.7} parent=1 // pred_region
      %507 = dma.done [#allocation4], 1024
    $region37: #{_lambda_.7} parent=1 // pred_fallthru
      _
    %508 = vsyncpa [#allocation4], 1

</llo_original>
